<compile_context>
chip_gen: v5e
topology: v5e:2x2
jax: 0.10.0
libtpu: 0.0.40
codegen_flags: <defaults>
</compile_context>

<pallas_src>
import jax
import jax.numpy as jnp
from jax.experimental import pallas as pl
from jax.experimental.pallas import tpu as pltpu


# ---------------------------------------------------------------------------
# helpers
# ---------------------------------------------------------------------------
def _round_up(a, b):
    return (a + b - 1) // b * b


def _tile_rows(m, tmax):
    """Return (padded_rows, tile): tile % 8 == 0, tile | padded, and the grid
    has >= 2 steps whenever there is enough work (v7x: two TensorCores)."""
    m8 = _round_up(m, 8)
    if m8 <= 8:
        return m8, m8
    tile = min(tmax, _round_up(m8 // 2, 8))
    return _round_up(m8, tile), tile


def _pad_rows(p, m_pad):
    m = p.shape[1]
    if m_pad > m:
        p = jnp.pad(p, ((0, 0), (0, m_pad - m), (0, 0)))
    return p


_COMPILER_PARAMS = pltpu.CompilerParams(
    dimension_semantics=("parallel",),
    vmem_limit_bytes=48 * 1024 * 1024,   # v5e default is 16 MiB; v7x phys 64 MiB
)


# ---------------------------------------------------------------------------
# Pallas kernels
# ---------------------------------------------------------------------------
def conv_pool_relu_kernel(p_ref, w_ref, b_ref, o_ref):
    """Fused conv1 GEMM + bias + 2x2 max-pool + ReLU.

    p_ref: (4, TM, 32)  bf16 -- im2col patches, one slab per pool-window pos.
    w_ref: (32, 128)    bf16 -- conv1 weight, K and Cout zero-padded.
    b_ref: (1, 128)     f32  -- bias, Cout zero-padded.
    o_ref: (TM, 128)    bf16 -- pooled + ReLU'd activations, lane-dense.
    """
    w = w_ref[...]
    acc = jnp.dot(p_ref[0], w, preferred_element_type=jnp.float32)
    for u in range(1, 4):
        acc = jnp.maximum(
            acc, jnp.dot(p_ref[u], w, preferred_element_type=jnp.float32))
    y = jnp.maximum(acc + b_ref[...], 0.0)            # f32 epilogue (v5e-safe)
    o_ref[...] = y.astype(o_ref.dtype)


def conv2_fc_head_kernel(p_ref, wc_ref, bc_ref, w1_ref, b1_ref,
                         w2_ref, b2_ref, o_ref):
    """Fused conv2 + pool + ReLU + fc1 + ReLU + fc2 + log_softmax.

    p_ref : (16, 4, TB, 256) bf16 -- conv2 im2col patches, indexed by
                                     (pooled output pixel, pool-window pos).
    wc_ref: (256, 128) bf16, bc_ref: (1, 128) f32   -- conv2 (K 250->256, C 20->128)
    w1_ref: (16, 128, 128) bf16, b1_ref: (1, 128) f32 -- fc1 per-pixel weights
    w2_ref: (128, 128) bf16, b2_ref: (1, 128) f32     -- fc2 (50->128, 10->128)
    o_ref : (TB, 128) f32 -- log-probs in cols 0..9, -inf elsewhere.
    """
    tb = o_ref.shape[0]
    wc = wc_ref[...]
    h = jnp.zeros((tb, 128), jnp.float32)
    for p in range(16):                               # 16 pooled conv2 pixels
        acc = jnp.dot(p_ref[p, 0], wc, preferred_element_type=jnp.float32)
        for u in range(1, 4):                         # 2x2 max-pool over window
            acc = jnp.maximum(
                acc, jnp.dot(p_ref[p, u], wc, preferred_element_type=jnp.float32))
        y = jnp.maximum(acc + bc_ref[...], 0.0)       # conv2 + pool + ReLU (f32)
        # fc1 contribution of this pixel; activation never leaves VMEM.
        h = h + jnp.dot(y.astype(jnp.bfloat16), w1_ref[p],
                        preferred_element_type=jnp.float32)
    h = jnp.maximum(h + b1_ref[...], 0.0)             # fc1 + ReLU (dropout = id)
    z = jnp.dot(h.astype(jnp.bfloat16), w2_ref[...],
                preferred_element_type=jnp.float32) + b2_ref[...]
    # log_softmax with a full-128-lane masked reduce (no narrow slice).
    lane = jax.lax.broadcasted_iota(jnp.int32, z.shape, 1)
    zm = jnp.where(lane < 10, z, -jnp.inf)            # padded logits -> -inf
    m = jnp.max(zm, axis=-1, keepdims=True)
    s = jnp.sum(jnp.exp(zm - m), axis=-1, keepdims=True)
    o_ref[...] = (zm - (m + jnp.log(s))).astype(o_ref.dtype)


# ---------------------------------------------------------------------------
# pallas_call wrappers
# ---------------------------------------------------------------------------
def conv_pool_relu(patches4, w, b, *, tm):
    _, m_pad, kp = patches4.shape
    return pl.pallas_call(
        conv_pool_relu_kernel,
        out_shape=jax.ShapeDtypeStruct((m_pad, 128), jnp.bfloat16),
        grid=(m_pad // tm,),
        in_specs=[
            pl.BlockSpec((4, tm, kp), lambda i: (0, i, 0)),
            pl.BlockSpec((kp, 128), lambda i: (0, 0)),
            pl.BlockSpec((1, 128), lambda i: (0, 0)),
        ],
        out_specs=pl.BlockSpec((tm, 128), lambda i: (i, 0)),
        compiler_params=_COMPILER_PARAMS,
    )(patches4, w, b)


def conv2_fc_head(patches, wc, bc, w1, b1, w2, b2, *, tb):
    b_pad = patches.shape[2]
    return pl.pallas_call(
        conv2_fc_head_kernel,
        out_shape=jax.ShapeDtypeStruct((b_pad, 128), jnp.float32),
        grid=(b_pad // tb,),
        in_specs=[
            pl.BlockSpec((16, 4, tb, 256), lambda i: (0, 0, i, 0)),
            pl.BlockSpec((256, 128), lambda i: (0, 0)),
            pl.BlockSpec((1, 128), lambda i: (0, 0)),
            pl.BlockSpec((16, 128, 128), lambda i: (0, 0, 0)),
            pl.BlockSpec((1, 128), lambda i: (0, 0)),
            pl.BlockSpec((128, 128), lambda i: (0, 0)),
            pl.BlockSpec((1, 128), lambda i: (0, 0)),
        ],
        out_specs=pl.BlockSpec((tb, 128), lambda i: (i, 0)),
        compiler_params=_COMPILER_PARAMS,
    )(patches, wc, bc, w1, b1, w2, b2)


# ---------------------------------------------------------------------------
# XLA glue: im2col patches grouped by pool-window position
# ---------------------------------------------------------------------------
def _pool_patches(x, k, k_pad):
    """x: (B,H,W,C) -> ((4, B*Hp*Wp, k_pad) bf16, Hp, Wp); rows are (b,ph,pw)."""
    B, H, W, C = x.shape
    Ho, Wo = H - k + 1, W - k + 1
    assert Ho % 2 == 0 and Wo % 2 == 0, "max_pool2d(2) needs even conv output"
    Hp, Wp = Ho // 2, Wo // 2
    mats = []
    for u in range(2):
        for v in range(2):
            slabs = []
            for di in range(k):
                for dj in range(k):
                    slabs.append(x[:, u + di: u + di + 2 * Hp: 2,
                                      v + dj: v + dj + 2 * Wp: 2, :])
            p = jnp.stack(slabs, axis=3)               # (B, Hp, Wp, k*k, C)
            mats.append(p.reshape(B * Hp * Wp, k * k * C))
    pm = jnp.stack(mats, axis=0)                       # (4, M, k*k*C)
    if k_pad > k * k * C:
        pm = jnp.pad(pm, ((0, 0), (0, 0), (0, k_pad - k * k * C)))
    return pm.astype(jnp.bfloat16), Hp, Wp


def _pool_patches_pixel_major(x, k, k_pad):
    """x: (B,H,W,C) -> ((Hp*Wp, 4, B, k_pad) bf16, Hp, Wp) for the fused kernel."""
    B, H, W, C = x.shape
    Ho, Wo = H - k + 1, W - k + 1
    assert Ho % 2 == 0 and Wo % 2 == 0
    Hp, Wp = Ho // 2, Wo // 2
    mats = []
    for u in range(2):
        for v in range(2):
            slabs = []
            for di in range(k):
                for dj in range(k):
                    slabs.append(x[:, u + di: u + di + 2 * Hp: 2,
                                      v + dj: v + dj + 2 * Wp: 2, :])
            p = jnp.stack(slabs, axis=3)               # (B, Hp, Wp, k*k, C)
            mats.append(p.reshape(B, Hp * Wp, k * k * C))
    pm = jnp.stack(mats, axis=0)                       # (4, B, Hp*Wp, K)
    pm = jnp.transpose(pm, (2, 0, 1, 3))               # (Hp*Wp, 4, B, K)
    if k_pad > k * k * C:
        pm = jnp.pad(pm, ((0, 0), (0, 0), (0, 0), (0, k_pad - k * k * C)))
    return pm.astype(jnp.bfloat16), Hp, Wp


# ---------------------------------------------------------------------------
# Full forward pass (matches myNetwork.forward, inference-mode dropout)
# ---------------------------------------------------------------------------
def my_network_forward(x_nchw, params):
    B = x_nchw.shape[0]
    x = jnp.transpose(x_nchw, (0, 2, 3, 1)).astype(jnp.bfloat16)   # NCHW->NHWC

    # conv1 (1 -> 10, k=5) + max_pool 2x2 + relu       (single fused kernel)
    p1, hp1, wp1 = _pool_patches(x, 5, 32)             # (4, B*144, 32)
    m1 = B * hp1 * wp1
    m1_pad, tm1 = _tile_rows(m1, 4096)
    y1 = conv_pool_relu(_pad_rows(p1, m1_pad),
                        params["conv1_wm"], params["conv1_b"], tm=tm1)
    y1 = y1[:m1, :10].reshape(B, hp1, wp1, 10)         # (B, 12, 12, 10) bf16

    # conv2 (10->20, k=5) + dropout2d(eval: id) + pool + relu + fc1 + relu
    # + dropout(eval: id) + fc2 + log_softmax -- ONE fused kernel over batch
    # tiles; the conv2 activation never leaves VMEM.
    p2, hp2, wp2 = _pool_patches_pixel_major(y1, 5, 256)   # (16, 4, B, 256)
    assert hp2 * wp2 == 16
    b_pad, tb = _tile_rows(B, 256)
    if b_pad > B:
        p2 = jnp.pad(p2, ((0, 0), (0, 0), (0, b_pad - B), (0, 0)))
    out = conv2_fc_head(p2, params["conv2_wm"], params["conv2_b"],
                        params["fc1_wm"], params["fc1_b"],
                        params["fc2_wm"], params["fc2_b"], tb=tb)
    return out[:B, :10]      # padded rows / lanes (garbage / -inf) sliced off


# ---------------------------------------------------------------------------
# Parameters (PyTorch-shaped) and kernel-layout packing
# ---------------------------------------------------------------------------
def init_params(key):
    ks = jax.random.split(key, 8)
    return {
        "conv1_w": jax.random.normal(ks[0], (10, 1, 5, 5), jnp.float32) * 0.1,
        "conv1_b": jax.random.normal(ks[1], (10,), jnp.float32) * 0.1,
        "conv2_w": jax.random.normal(ks[2], (20, 10, 5, 5), jnp.float32) * 0.05,
        "conv2_b": jax.random.normal(ks[3], (20,), jnp.float32) * 0.05,
        "fc1_w": jax.random.normal(ks[4], (50, 320), jnp.float32) * 0.05,
        "fc1_b": jax.random.normal(ks[5], (50,), jnp.float32) * 0.05,
        "fc2_w": jax.random.normal(ks[6], (10, 50), jnp.float32) * 0.1,
        "fc2_b": jax.random.normal(ks[7], (10,), jnp.float32) * 0.1,
    }


def pack_params(tp):
    """PyTorch-shaped params -> padded bf16 matrices in the kernels' layout."""
    def conv_mat(w, k_pad):
        co, ci, kh, kw = w.shape
        m = jnp.transpose(w, (2, 3, 1, 0)).reshape(kh * kw * ci, co)  # (K, Cout)
        m = jnp.pad(m, ((0, k_pad - kh * kw * ci), (0, 128 - co)))
        return m.astype(jnp.bfloat16)

    def pad_bias(b):
        return jnp.pad(b, (0, 128 - b.shape[0])).reshape(1, 128).astype(jnp.float32)

    # fc1: PyTorch's view(-1,320) is (c, ph, pw) order; repack as per-pixel
    # (pixel, c_pad=128, n_pad=128) weights matching the fused kernel's
    # per-pixel accumulation (channel padding 20->128 folded in as zeros).
    w1 = tp["fc1_w"].reshape(50, 20, 4, 4)             # (n, c, ph, pw)
    w1 = jnp.transpose(w1, (2, 3, 1, 0))               # (ph, pw, c, n)
    w1 = jnp.pad(w1, ((0, 0), (0, 0), (0, 128 - 20), (0, 128 - 50)))
    w1 = w1.reshape(16, 128, 128).astype(jnp.bfloat16)

    w2 = jnp.pad(tp["fc2_w"].T, ((0, 128 - 50), (0, 128 - 10))).astype(jnp.bfloat16)

    return {
        "conv1_wm": conv_mat(tp["conv1_w"], 32), "conv1_b": pad_bias(tp["conv1_b"]),
        "conv2_wm": conv_mat(tp["conv2_w"], 256), "conv2_b": pad_bias(tp["conv2_b"]),
        "fc1_wm": w1, "fc1_b": pad_bias(tp["fc1_b"]),
        "fc2_wm": w2, "fc2_b": pad_bias(tp["fc2_b"]),
    }


# ---------------------------------------------------------------------------
# Pure-JAX f32 reference (for a numerical sanity check)
# ---------------------------------------------------------------------------
def reference_forward(x_nchw, tp):
    x = jnp.transpose(x_nchw, (0, 2, 3, 1))

    def conv(x, w, b):
        w_hwio = jnp.transpose(w, (2, 3, 1, 0))
        y = jax.lax.conv_general_dilated(
            x, w_hwio, (1, 1), "VALID",
            dimension_numbers=("NHWC", "HWIO", "NHWC"))
        return y + b

    def pool_relu(y):
        b, h, w, c = y.shape
        y = y.reshape(b, h // 2, 2, w // 2, 2, c)
        return jnp.maximum(jnp.max(y, axis=(2, 4)), 0.0)

    y1 = pool_relu(conv(x, tp["conv1_w"], tp["conv1_b"]))
    y2 = pool_relu(conv(y1, tp["conv2_w"], tp["conv2_b"]))
    flat = jnp.transpose(y2, (0, 3, 1, 2)).reshape(x.shape[0], 320)
    h = jnp.maximum(flat @ tp["fc1_w"].T + tp["fc1_b"], 0.0)
    z = h @ tp["fc2_w"].T + tp["fc2_b"]
    return jax.nn.log_softmax(z, axis=-1)


if __name__ == "__main__":
    key = jax.random.PRNGKey(0)
    pkey, xkey = jax.random.split(key)
    torch_params = init_params(pkey)
    params = pack_params(torch_params)

    # Input consistent with the module: fc1 expects 320 = 20*4*4 => 1x28x28.
    x = jax.random.normal(xkey, (2, 1, 28, 28), jnp.float32)

    out = jax.jit(my_network_forward)(x, params)
    out = jax.block_until_ready(out)

    assert out.shape == (2, 10)
    # log_softmax rows should sum (in prob space) to ~1.
    assert bool(jnp.all(jnp.abs(jnp.sum(jnp.exp(out), axis=-1) - 1.0) < 1e-4))
    # Match the pure-JAX f32 reference (bf16 MXU operands => loose tolerance).
    ref = reference_forward(x, torch_params)
    assert float(jnp.max(jnp.abs(out - ref))) < 5e-2
    print("KERNEL_OK")
</pallas_src>

<mosaic_0001>
module attributes {stable_mosaic.version = 11 : i64} {
  func.func @conv_pool_relu_kernel(%arg0: i32, %arg1: memref<4x144x32xbf16, #tpu.memory_space<vmem>>, %arg2: memref<32x128xbf16, #tpu.memory_space<vmem>>, %arg3: memref<1x128xf32, #tpu.memory_space<vmem>>, %arg4: memref<144x128xbf16, #tpu.memory_space<vmem>>) attributes {dimension_semantics = [#tpu.dimension_semantics<parallel>], iteration_bounds = array<i64: 2>, scalar_prefetch = 0 : i64, scratch_operands = 0 : i64, tpu.core_type = #tpu.core_type<tc>, window_params = [{transform_indices = @transform_0, window_bounds = array<i64: 4, 144, 32>}, {pipeline_mode = #tpu.pipeline_mode<synchronous>, transform_indices = @transform_1, window_bounds = array<i64: 32, 128>}, {pipeline_mode = #tpu.pipeline_mode<synchronous>, transform_indices = @transform_2, window_bounds = array<i64: 1, 128>}, {transform_indices = @transform_3, window_bounds = array<i64: 144, 128>}]} {
    %c0 = arith.constant 0 : index
    %c0_0 = arith.constant 0 : index
    %0 = vector.load %arg2[%c0, %c0_0] : memref<32x128xbf16, #tpu.memory_space<vmem>>, vector<32x128xbf16>
    %c0_1 = arith.constant 0 : index
    %c0_2 = arith.constant 0 : index
    %c0_3 = arith.constant 0 : index
    %1 = vector.load %arg1[%c0_1, %c0_2, %c0_3] : memref<4x144x32xbf16, #tpu.memory_space<vmem>>, vector<1x144x32xbf16>
    %2 = vector.shape_cast %1 : vector<1x144x32xbf16> to vector<144x32xbf16>
    %cst = arith.constant dense<0.000000e+00> : vector<144x128xf32>
    %3 = tpu.matmul %2, %0, %cst {dimension_numbers = #tpu.dot_dimension_numbers<[1], [0], [0], [1], [0, 0, 1, 1], [], []>} : vector<144x32xbf16>, vector<32x128xbf16>, vector<144x128xf32> -> vector<144x128xf32>
    %c1 = arith.constant 1 : index
    %c0_4 = arith.constant 0 : index
    %c0_5 = arith.constant 0 : index
    %4 = vector.load %arg1[%c1, %c0_4, %c0_5] : memref<4x144x32xbf16, #tpu.memory_space<vmem>>, vector<1x144x32xbf16>
    %5 = vector.shape_cast %4 : vector<1x144x32xbf16> to vector<144x32xbf16>
    %cst_6 = arith.constant dense<0.000000e+00> : vector<144x128xf32>
    %6 = tpu.matmul %5, %0, %cst_6 {dimension_numbers = #tpu.dot_dimension_numbers<[1], [0], [0], [1], [0, 0, 1, 1], [], []>} : vector<144x32xbf16>, vector<32x128xbf16>, vector<144x128xf32> -> vector<144x128xf32>
    %7 = arith.maximumf %3, %6 : vector<144x128xf32>
    %c2 = arith.constant 2 : index
    %c0_7 = arith.constant 0 : index
    %c0_8 = arith.constant 0 : index
    %8 = vector.load %arg1[%c2, %c0_7, %c0_8] : memref<4x144x32xbf16, #tpu.memory_space<vmem>>, vector<1x144x32xbf16>
    %9 = vector.shape_cast %8 : vector<1x144x32xbf16> to vector<144x32xbf16>
    %cst_9 = arith.constant dense<0.000000e+00> : vector<144x128xf32>
    %10 = tpu.matmul %9, %0, %cst_9 {dimension_numbers = #tpu.dot_dimension_numbers<[1], [0], [0], [1], [0, 0, 1, 1], [], []>} : vector<144x32xbf16>, vector<32x128xbf16>, vector<144x128xf32> -> vector<144x128xf32>
    %11 = arith.maximumf %7, %10 : vector<144x128xf32>
    %c3 = arith.constant 3 : index
    %c0_10 = arith.constant 0 : index
    %c0_11 = arith.constant 0 : index
    %12 = vector.load %arg1[%c3, %c0_10, %c0_11] : memref<4x144x32xbf16, #tpu.memory_space<vmem>>, vector<1x144x32xbf16>
    %13 = vector.shape_cast %12 : vector<1x144x32xbf16> to vector<144x32xbf16>
    %cst_12 = arith.constant dense<0.000000e+00> : vector<144x128xf32>
    %14 = tpu.matmul %13, %0, %cst_12 {dimension_numbers = #tpu.dot_dimension_numbers<[1], [0], [0], [1], [0, 0, 1, 1], [], []>} : vector<144x32xbf16>, vector<32x128xbf16>, vector<144x128xf32> -> vector<144x128xf32>
    %15 = arith.maximumf %11, %14 : vector<144x128xf32>
    %c0_13 = arith.constant 0 : index
    %c0_14 = arith.constant 0 : index
    %16 = vector.load %arg3[%c0_13, %c0_14] : memref<1x128xf32, #tpu.memory_space<vmem>>, vector<1x128xf32>
    %17 = vector.broadcast %16 : vector<1x128xf32> to vector<144x128xf32>
    %18 = arith.addf %15, %17 : vector<144x128xf32>
    %cst_15 = arith.constant 0.000000e+00 : f32
    %19 = vector.broadcast %cst_15 : f32 to vector<144x128xf32>
    %20 = arith.maximumf %18, %19 : vector<144x128xf32>
    %21 = arith.truncf %20 : vector<144x128xf32> to vector<144x128xbf16>
    %c0_16 = arith.constant 0 : index
    %c0_17 = arith.constant 0 : index
    %22 = vector.load %arg4[%c0_16, %c0_17] : memref<144x128xbf16, #tpu.memory_space<vmem>>, vector<144x128xbf16>
    tpu.vector_store %arg4[%c0_16, %c0_17], %21 {strides = array<i32>} : memref<144x128xbf16, #tpu.memory_space<vmem>>, vector<144x128xbf16>,
    return
  }
  func.func @transform_0(%arg0: i32) -> (i32, i32, i32) {
    %c0_i32 = arith.constant 0 : i32
    %c0_i32_0 = arith.constant 0 : i32
    %c0_i32_1 = arith.constant 0 : i32
    return %c0_i32, %arg0, %c0_i32_0 : i32, i32, i32
  }
  func.func @transform_1(%arg0: i32) -> (i32, i32) {
    %c0_i32 = arith.constant 0 : i32
    %c0_i32_0 = arith.constant 0 : i32
    %c0_i32_1 = arith.constant 0 : i32
    return %c0_i32, %c0_i32_0 : i32, i32
  }
  func.func @transform_2(%arg0: i32) -> (i32, i32) {
    %c0_i32 = arith.constant 0 : i32
    %c0_i32_0 = arith.constant 0 : i32
    %c0_i32_1 = arith.constant 0 : i32
    return %c0_i32, %c0_i32_0 : i32, i32
  }
  func.func @transform_3(%arg0: i32) -> (i32, i32) {
    %c0_i32 = arith.constant 0 : i32
    %c0_i32_0 = arith.constant 0 : i32
    return %arg0, %c0_i32 : i32, i32
  }
}

module attributes {stable_mosaic.version = 11 : i64} {
  func.func @conv2_fc_head_kernel(%arg0: i32, %arg1: memref<16x4x8x256xbf16, #tpu.memory_space<vmem>>, %arg2: memref<256x128xbf16, #tpu.memory_space<vmem>>, %arg3: memref<1x128xf32, #tpu.memory_space<vmem>>, %arg4: memref<16x128x128xbf16, #tpu.memory_space<vmem>>, %arg5: memref<1x128xf32, #tpu.memory_space<vmem>>, %arg6: memref<128x128xbf16, #tpu.memory_space<vmem>>, %arg7: memref<1x128xf32, #tpu.memory_space<vmem>>, %arg8: memref<8x128xf32, #tpu.memory_space<vmem>>) attributes {dimension_semantics = [#tpu.dimension_semantics<parallel>], iteration_bounds = array<i64: 1>, scalar_prefetch = 0 : i64, scratch_operands = 0 : i64, tpu.core_type = #tpu.core_type<tc>, window_params = [{transform_indices = @transform_0, window_bounds = array<i64: 16, 4, 8, 256>}, {pipeline_mode = #tpu.pipeline_mode<synchronous>, transform_indices = @transform_1, window_bounds = array<i64: 256, 128>}, {pipeline_mode = #tpu.pipeline_mode<synchronous>, transform_indices = @transform_2, window_bounds = array<i64: 1, 128>}, {pipeline_mode = #tpu.pipeline_mode<synchronous>, transform_indices = @transform_3, window_bounds = array<i64: 16, 128, 128>}, {pipeline_mode = #tpu.pipeline_mode<synchronous>, transform_indices = @transform_4, window_bounds = array<i64: 1, 128>}, {pipeline_mode = #tpu.pipeline_mode<synchronous>, transform_indices = @transform_5, window_bounds = array<i64: 128, 128>}, {pipeline_mode = #tpu.pipeline_mode<synchronous>, transform_indices = @transform_6, window_bounds = array<i64: 1, 128>}, {transform_indices = @transform_7, window_bounds = array<i64: 8, 128>}]} {
    %c0 = arith.constant 0 : index
    %c0_0 = arith.constant 0 : index
    %0 = vector.load %arg2[%c0, %c0_0] : memref<256x128xbf16, #tpu.memory_space<vmem>>, vector<256x128xbf16>
    %cst = arith.constant 0.000000e+00 : f32
    %1 = vector.broadcast %cst : f32 to vector<8x128xf32>
    %c0_1 = arith.constant 0 : index
    %c0_2 = arith.constant 0 : index
    %c0_3 = arith.constant 0 : index
    %c0_4 = arith.constant 0 : index
    %2 = vector.load %arg1[%c0_1, %c0_2, %c0_3, %c0_4] : memref<16x4x8x256xbf16, #tpu.memory_space<vmem>>, vector<1x1x8x256xbf16>
    %3 = vector.shape_cast %2 : vector<1x1x8x256xbf16> to vector<8x256xbf16>
    %cst_5 = arith.constant dense<0.000000e+00> : vector<8x128xf32>
    %4 = tpu.matmul %3, %0, %cst_5 {dimension_numbers = #tpu.dot_dimension_numbers<[1], [0], [0], [1], [0, 0, 1, 1], [], []>} : vector<8x256xbf16>, vector<256x128xbf16>, vector<8x128xf32> -> vector<8x128xf32>
    %c0_6 = arith.constant 0 : index
    %c1 = arith.constant 1 : index
    %c0_7 = arith.constant 0 : index
    %c0_8 = arith.constant 0 : index
    %5 = vector.load %arg1[%c0_6, %c1, %c0_7, %c0_8] : memref<16x4x8x256xbf16, #tpu.memory_space<vmem>>, vector<1x1x8x256xbf16>
    %6 = vector.shape_cast %5 : vector<1x1x8x256xbf16> to vector<8x256xbf16>
    %cst_9 = arith.constant dense<0.000000e+00> : vector<8x128xf32>
    %7 = tpu.matmul %6, %0, %cst_9 {dimension_numbers = #tpu.dot_dimension_numbers<[1], [0], [0], [1], [0, 0, 1, 1], [], []>} : vector<8x256xbf16>, vector<256x128xbf16>, vector<8x128xf32> -> vector<8x128xf32>
    %8 = arith.maximumf %4, %7 : vector<8x128xf32>
    %c0_10 = arith.constant 0 : index
    %c2 = arith.constant 2 : index
    %c0_11 = arith.constant 0 : index
    %c0_12 = arith.constant 0 : index
    %9 = vector.load %arg1[%c0_10, %c2, %c0_11, %c0_12] : memref<16x4x8x256xbf16, #tpu.memory_space<vmem>>, vector<1x1x8x256xbf16>
    %10 = vector.shape_cast %9 : vector<1x1x8x256xbf16> to vector<8x256xbf16>
    %cst_13 = arith.constant dense<0.000000e+00> : vector<8x128xf32>
    %11 = tpu.matmul %10, %0, %cst_13 {dimension_numbers = #tpu.dot_dimension_numbers<[1], [0], [0], [1], [0, 0, 1, 1], [], []>} : vector<8x256xbf16>, vector<256x128xbf16>, vector<8x128xf32> -> vector<8x128xf32>
    %12 = arith.maximumf %8, %11 : vector<8x128xf32>
    %c0_14 = arith.constant 0 : index
    %c3 = arith.constant 3 : index
    %c0_15 = arith.constant 0 : index
    %c0_16 = arith.constant 0 : index
    %13 = vector.load %arg1[%c0_14, %c3, %c0_15, %c0_16] : memref<16x4x8x256xbf16, #tpu.memory_space<vmem>>, vector<1x1x8x256xbf16>
    %14 = vector.shape_cast %13 : vector<1x1x8x256xbf16> to vector<8x256xbf16>
    %cst_17 = arith.constant dense<0.000000e+00> : vector<8x128xf32>
    %15 = tpu.matmul %14, %0, %cst_17 {dimension_numbers = #tpu.dot_dimension_numbers<[1], [0], [0], [1], [0, 0, 1, 1], [], []>} : vector<8x256xbf16>, vector<256x128xbf16>, vector<8x128xf32> -> vector<8x128xf32>
    %16 = arith.maximumf %12, %15 : vector<8x128xf32>
    %c0_18 = arith.constant 0 : index
    %c0_19 = arith.constant 0 : index
    %17 = vector.load %arg3[%c0_18, %c0_19] : memref<1x128xf32, #tpu.memory_space<vmem>>, vector<1x128xf32>
    %18 = vector.broadcast %17 : vector<1x128xf32> to vector<8x128xf32>
    %19 = arith.addf %16, %18 : vector<8x128xf32>
    %cst_20 = arith.constant 0.000000e+00 : f32
    %20 = vector.broadcast %cst_20 : f32 to vector<8x128xf32>
    %21 = arith.maximumf %19, %20 : vector<8x128xf32>
    %22 = arith.truncf %21 : vector<8x128xf32> to vector<8x128xbf16>
    %c0_21 = arith.constant 0 : index
    %c0_22 = arith.constant 0 : index
    %c0_23 = arith.constant 0 : index
    %23 = vector.load %arg4[%c0_21, %c0_22, %c0_23] : memref<16x128x128xbf16, #tpu.memory_space<vmem>>, vector<1x128x128xbf16>
    %24 = vector.shape_cast %23 : vector<1x128x128xbf16> to vector<128x128xbf16>
    %cst_24 = arith.constant dense<0.000000e+00> : vector<8x128xf32>
    %25 = tpu.matmul %22, %24, %cst_24 {dimension_numbers = #tpu.dot_dimension_numbers<[1], [0], [0], [1], [0, 0, 1, 1], [], []>} : vector<8x128xbf16>, vector<128x128xbf16>, vector<8x128xf32> -> vector<8x128xf32>
    %26 = arith.addf %1, %25 : vector<8x128xf32>
    %c1_25 = arith.constant 1 : index
    %c0_26 = arith.constant 0 : index
    %c0_27 = arith.constant 0 : index
    %c0_28 = arith.constant 0 : index
    %27 = vector.load %arg1[%c1_25, %c0_26, %c0_27, %c0_28] : memref<16x4x8x256xbf16, #tpu.memory_space<vmem>>, vector<1x1x8x256xbf16>
    %28 = vector.shape_cast %27 : vector<1x1x8x256xbf16> to vector<8x256xbf16>
    %cst_29 = arith.constant dense<0.000000e+00> : vector<8x128xf32>
    %29 = tpu.matmul %28, %0, %cst_29 {dimension_numbers = #tpu.dot_dimension_numbers<[1], [0], [0], [1], [0, 0, 1, 1], [], []>} : vector<8x256xbf16>, vector<256x128xbf16>, vector<8x128xf32> -> vector<8x128xf32>
    %c1_30 = arith.constant 1 : index
    %c1_31 = arith.constant 1 : index
    %c0_32 = arith.constant 0 : index
    %c0_33 = arith.constant 0 : index
    %30 = vector.load %arg1[%c1_30, %c1_31, %c0_32, %c0_33] : memref<16x4x8x256xbf16, #tpu.memory_space<vmem>>, vector<1x1x8x256xbf16>
    %31 = vector.shape_cast %30 : vector<1x1x8x256xbf16> to vector<8x256xbf16>
    %cst_34 = arith.constant dense<0.000000e+00> : vector<8x128xf32>
    %32 = tpu.matmul %31, %0, %cst_34 {dimension_numbers = #tpu.dot_dimension_numbers<[1], [0], [0], [1], [0, 0, 1, 1], [], []>} : vector<8x256xbf16>, vector<256x128xbf16>, vector<8x128xf32> -> vector<8x128xf32>
    %33 = arith.maximumf %29, %32 : vector<8x128xf32>
    %c1_35 = arith.constant 1 : index
    %c2_36 = arith.constant 2 : index
    %c0_37 = arith.constant 0 : index
    %c0_38 = arith.constant 0 : index
    %34 = vector.load %arg1[%c1_35, %c2_36, %c0_37, %c0_38] : memref<16x4x8x256xbf16, #tpu.memory_space<vmem>>, vector<1x1x8x256xbf16>
    %35 = vector.shape_cast %34 : vector<1x1x8x256xbf16> to vector<8x256xbf16>
    %cst_39 = arith.constant dense<0.000000e+00> : vector<8x128xf32>
    %36 = tpu.matmul %35, %0, %cst_39 {dimension_numbers = #tpu.dot_dimension_numbers<[1], [0], [0], [1], [0, 0, 1, 1], [], []>} : vector<8x256xbf16>, vector<256x128xbf16>, vector<8x128xf32> -> vector<8x128xf32>
    %37 = arith.maximumf %33, %36 : vector<8x128xf32>
    %c1_40 = arith.constant 1 : index
    %c3_41 = arith.constant 3 : index
    %c0_42 = arith.constant 0 : index
    %c0_43 = arith.constant 0 : index
    %38 = vector.load %arg1[%c1_40, %c3_41, %c0_42, %c0_43] : memref<16x4x8x256xbf16, #tpu.memory_space<vmem>>, vector<1x1x8x256xbf16>
    %39 = vector.shape_cast %38 : vector<1x1x8x256xbf16> to vector<8x256xbf16>
    %cst_44 = arith.constant dense<0.000000e+00> : vector<8x128xf32>
    %40 = tpu.matmul %39, %0, %cst_44 {dimension_numbers = #tpu.dot_dimension_numbers<[1], [0], [0], [1], [0, 0, 1, 1], [], []>} : vector<8x256xbf16>, vector<256x128xbf16>, vector<8x128xf32> -> vector<8x128xf32>
    %41 = arith.maximumf %37, %40 : vector<8x128xf32>
    %c0_45 = arith.constant 0 : index
    %c0_46 = arith.constant 0 : index
    %42 = vector.load %arg3[%c0_45, %c0_46] : memref<1x128xf32, #tpu.memory_space<vmem>>, vector<1x128xf32>
    %43 = vector.broadcast %42 : vector<1x128xf32> to vector<8x128xf32>
    %44 = arith.addf %41, %43 : vector<8x128xf32>
    %cst_47 = arith.constant 0.000000e+00 : f32
    %45 = vector.broadcast %cst_47 : f32 to vector<8x128xf32>
    %46 = arith.maximumf %44, %45 : vector<8x128xf32>
    %47 = arith.truncf %46 : vector<8x128xf32> to vector<8x128xbf16>
    %c1_48 = arith.constant 1 : index
    %c0_49 = arith.constant 0 : index
    %c0_50 = arith.constant 0 : index
    %48 = vector.load %arg4[%c1_48, %c0_49, %c0_50] : memref<16x128x128xbf16, #tpu.memory_space<vmem>>, vector<1x128x128xbf16>
    %49 = vector.shape_cast %48 : vector<1x128x128xbf16> to vector<128x128xbf16>
    %cst_51 = arith.constant dense<0.000000e+00> : vector<8x128xf32>
    %50 = tpu.matmul %47, %49, %cst_51 {dimension_numbers = #tpu.dot_dimension_numbers<[1], [0], [0], [1], [0, 0, 1, 1], [], []>} : vector<8x128xbf16>, vector<128x128xbf16>, vector<8x128xf32> -> vector<8x128xf32>
    %51 = arith.addf %26, %50 : vector<8x128xf32>
    %c2_52 = arith.constant 2 : index
    %c0_53 = arith.constant 0 : index
    %c0_54 = arith.constant 0 : index
    %c0_55 = arith.constant 0 : index
    %52 = vector.load %arg1[%c2_52, %c0_53, %c0_54, %c0_55] : memref<16x4x8x256xbf16, #tpu.memory_space<vmem>>, vector<1x1x8x256xbf16>
    %53 = vector.shape_cast %52 : vector<1x1x8x256xbf16> to vector<8x256xbf16>
    %cst_56 = arith.constant dense<0.000000e+00> : vector<8x128xf32>
    %54 = tpu.matmul %53, %0, %cst_56 {dimension_numbers = #tpu.dot_dimension_numbers<[1], [0], [0], [1], [0, 0, 1, 1], [], []>} : vector<8x256xbf16>, vector<256x128xbf16>, vector<8x128xf32> -> vector<8x128xf32>
    %c2_57 = arith.constant 2 : index
    %c1_58 = arith.constant 1 : index
    %c0_59 = arith.constant 0 : index
    %c0_60 = arith.constant 0 : index
    %55 = vector.load %arg1[%c2_57, %c1_58, %c0_59, %c0_60] : memref<16x4x8x256xbf16, #tpu.memory_space<vmem>>, vector<1x1x8x256xbf16>
    %56 = vector.shape_cast %55 : vector<1x1x8x256xbf16> to vector<8x256xbf16>
    %cst_61 = arith.constant dense<0.000000e+00> : vector<8x128xf32>
    %57 = tpu.matmul %56, %0, %cst_61 {dimension_numbers = #tpu.dot_dimension_numbers<[1], [0], [0], [1], [0, 0, 1, 1], [], []>} : vector<8x256xbf16>, vector<256x128xbf16>, vector<8x128xf32> -> vector<8x128xf32>
    %58 = arith.maximumf %54, %57 : vector<8x128xf32>
    %c2_62 = arith.constant 2 : index
    %c2_63 = arith.constant 2 : index
    %c0_64 = arith.constant 0 : index
    %c0_65 = arith.constant 0 : index
    %59 = vector.load %arg1[%c2_62, %c2_63, %c0_64, %c0_65] : memref<16x4x8x256xbf16, #tpu.memory_space<vmem>>, vector<1x1x8x256xbf16>
    %60 = vector.shape_cast %59 : vector<1x1x8x256xbf16> to vector<8x256xbf16>
    %cst_66 = arith.constant dense<0.000000e+00> : vector<8x128xf32>
    %61 = tpu.matmul %60, %0, %cst_66 {dimension_numbers = #tpu.dot_dimension_numbers<[1], [0], [0], [1], [0, 0, 1, 1], [], []>} : vector<8x256xbf16>, vector<256x128xbf16>, vector<8x128xf32> -> vector<8x128xf32>
    %62 = arith.maximumf %58, %61 : vector<8x128xf32>
    %c2_67 = arith.constant 2 : index
    %c3_68 = arith.constant 3 : index
    %c0_69 = arith.constant 0 : index
    %c0_70 = arith.constant 0 : index
    %63 = vector.load %arg1[%c2_67, %c3_68, %c0_69, %c0_70] : memref<16x4x8x256xbf16, #tpu.memory_space<vmem>>, vector<1x1x8x256xbf16>
    %64 = vector.shape_cast %63 : vector<1x1x8x256xbf16> to vector<8x256xbf16>
    %cst_71 = arith.constant dense<0.000000e+00> : vector<8x128xf32>
    %65 = tpu.matmul %64, %0, %cst_71 {dimension_numbers = #tpu.dot_dimension_numbers<[1], [0], [0], [1], [0, 0, 1, 1], [], []>} : vector<8x256xbf16>, vector<256x128xbf16>, vector<8x128xf32> -> vector<8x128xf32>
    %66 = arith.maximumf %62, %65 : vector<8x128xf32>
    %c0_72 = arith.constant 0 : index
    %c0_73 = arith.constant 0 : index
    %67 = vector.load %arg3[%c0_72, %c0_73] : memref<1x128xf32, #tpu.memory_space<vmem>>, vector<1x128xf32>
    %68 = vector.broadcast %67 : vector<1x128xf32> to vector<8x128xf32>
    %69 = arith.addf %66, %68 : vector<8x128xf32>
    %cst_74 = arith.constant 0.000000e+00 : f32
    %70 = vector.broadcast %cst_74 : f32 to vector<8x128xf32>
    %71 = arith.maximumf %69, %70 : vector<8x128xf32>
    %72 = arith.truncf %71 : vector<8x128xf32> to vector<8x128xbf16>
    %c2_75 = arith.constant 2 : index
    %c0_76 = arith.constant 0 : index
    %c0_77 = arith.constant 0 : index
    %73 = vector.load %arg4[%c2_75, %c0_76, %c0_77] : memref<16x128x128xbf16, #tpu.memory_space<vmem>>, vector<1x128x128xbf16>
    %74 = vector.shape_cast %73 : vector<1x128x128xbf16> to vector<128x128xbf16>
    %cst_78 = arith.constant dense<0.000000e+00> : vector<8x128xf32>
    %75 = tpu.matmul %72, %74, %cst_78 {dimension_numbers = #tpu.dot_dimension_numbers<[1], [0], [0], [1], [0, 0, 1, 1], [], []>} : vector<8x128xbf16>, vector<128x128xbf16>, vector<8x128xf32> -> vector<8x128xf32>
    %76 = arith.addf %51, %75 : vector<8x128xf32>
    %c3_79 = arith.constant 3 : index
    %c0_80 = arith.constant 0 : index
    %c0_81 = arith.constant 0 : index
    %c0_82 = arith.constant 0 : index
    %77 = vector.load %arg1[%c3_79, %c0_80, %c0_81, %c0_82] : memref<16x4x8x256xbf16, #tpu.memory_space<vmem>>, vector<1x1x8x256xbf16>
    %78 = vector.shape_cast %77 : vector<1x1x8x256xbf16> to vector<8x256xbf16>
    %cst_83 = arith.constant dense<0.000000e+00> : vector<8x128xf32>
    %79 = tpu.matmul %78, %0, %cst_83 {dimension_numbers = #tpu.dot_dimension_numbers<[1], [0], [0], [1], [0, 0, 1, 1], [], []>} : vector<8x256xbf16>, vector<256x128xbf16>, vector<8x128xf32> -> vector<8x128xf32>
    %c3_84 = arith.constant 3 : index
    %c1_85 = arith.constant 1 : index
    %c0_86 = arith.constant 0 : index
    %c0_87 = arith.constant 0 : index
    %80 = vector.load %arg1[%c3_84, %c1_85, %c0_86, %c0_87] : memref<16x4x8x256xbf16, #tpu.memory_space<vmem>>, vector<1x1x8x256xbf16>
    %81 = vector.shape_cast %80 : vector<1x1x8x256xbf16> to vector<8x256xbf16>
    %cst_88 = arith.constant dense<0.000000e+00> : vector<8x128xf32>
    %82 = tpu.matmul %81, %0, %cst_88 {dimension_numbers = #tpu.dot_dimension_numbers<[1], [0], [0], [1], [0, 0, 1, 1], [], []>} : vector<8x256xbf16>, vector<256x128xbf16>, vector<8x128xf32> -> vector<8x128xf32>
    %83 = arith.maximumf %79, %82 : vector<8x128xf32>
    %c3_89 = arith.constant 3 : index
    %c2_90 = arith.constant 2 : index
    %c0_91 = arith.constant 0 : index
    %c0_92 = arith.constant 0 : index
    %84 = vector.load %arg1[%c3_89, %c2_90, %c0_91, %c0_92] : memref<16x4x8x256xbf16, #tpu.memory_space<vmem>>, vector<1x1x8x256xbf16>
    %85 = vector.shape_cast %84 : vector<1x1x8x256xbf16> to vector<8x256xbf16>
    %cst_93 = arith.constant dense<0.000000e+00> : vector<8x128xf32>
    %86 = tpu.matmul %85, %0, %cst_93 {dimension_numbers = #tpu.dot_dimension_numbers<[1], [0], [0], [1], [0, 0, 1, 1], [], []>} : vector<8x256xbf16>, vector<256x128xbf16>, vector<8x128xf32> -> vector<8x128xf32>
    %87 = arith.maximumf %83, %86 : vector<8x128xf32>
    %c3_94 = arith.constant 3 : index
    %c3_95 = arith.constant 3 : index
    %c0_96 = arith.constant 0 : index
    %c0_97 = arith.constant 0 : index
    %88 = vector.load %arg1[%c3_94, %c3_95, %c0_96, %c0_97] : memref<16x4x8x256xbf16, #tpu.memory_space<vmem>>, vector<1x1x8x256xbf16>
    %89 = vector.shape_cast %88 : vector<1x1x8x256xbf16> to vector<8x256xbf16>
    %cst_98 = arith.constant dense<0.000000e+00> : vector<8x128xf32>
    %90 = tpu.matmul %89, %0, %cst_98 {dimension_numbers = #tpu.dot_dimension_numbers<[1], [0], [0], [1], [0, 0, 1, 1], [], []>} : vector<8x256xbf16>, vector<256x128xbf16>, vector<8x128xf32> -> vector<8x128xf32>
    %91 = arith.maximumf %87, %90 : vector<8x128xf32>
    %c0_99 = arith.constant 0 : index
    %c0_100 = arith.constant 0 : index
    %92 = vector.load %arg3[%c0_99, %c0_100] : memref<1x128xf32, #tpu.memory_space<vmem>>, vector<1x128xf32>
    %93 = vector.broadcast %92 : vector<1x128xf32> to vector<8x128xf32>
    %94 = arith.addf %91, %93 : vector<8x128xf32>
    %cst_101 = arith.constant 0.000000e+00 : f32
    %95 = vector.broadcast %cst_101 : f32 to vector<8x128xf32>
    %96 = arith.maximumf %94, %95 : vector<8x128xf32>
    %97 = arith.truncf %96 : vector<8x128xf32> to vector<8x128xbf16>
    %c3_102 = arith.constant 3 : index
    %c0_103 = arith.constant 0 : index
    %c0_104 = arith.constant 0 : index
    %98 = vector.load %arg4[%c3_102, %c0_103, %c0_104] : memref<16x128x128xbf16, #tpu.memory_space<vmem>>, vector<1x128x128xbf16>
    %99 = vector.shape_cast %98 : vector<1x128x128xbf16> to vector<128x128xbf16>
    %cst_105 = arith.constant dense<0.000000e+00> : vector<8x128xf32>
    %100 = tpu.matmul %97, %99, %cst_105 {dimension_numbers = #tpu.dot_dimension_numbers<[1], [0], [0], [1], [0, 0, 1, 1], [], []>} : vector<8x128xbf16>, vector<128x128xbf16>, vector<8x128xf32> -> vector<8x128xf32>
    %101 = arith.addf %76, %100 : vector<8x128xf32>
    %c4 = arith.constant 4 : index
    %c0_106 = arith.constant 0 : index
    %c0_107 = arith.constant 0 : index
    %c0_108 = arith.constant 0 : index
    %102 = vector.load %arg1[%c4, %c0_106, %c0_107, %c0_108] : memref<16x4x8x256xbf16, #tpu.memory_space<vmem>>, vector<1x1x8x256xbf16>
    %103 = vector.shape_cast %102 : vector<1x1x8x256xbf16> to vector<8x256xbf16>
    %cst_109 = arith.constant dense<0.000000e+00> : vector<8x128xf32>
    %104 = tpu.matmul %103, %0, %cst_109 {dimension_numbers = #tpu.dot_dimension_numbers<[1], [0], [0], [1], [0, 0, 1, 1], [], []>} : vector<8x256xbf16>, vector<256x128xbf16>, vector<8x128xf32> -> vector<8x128xf32>
    %c4_110 = arith.constant 4 : index
    %c1_111 = arith.constant 1 : index
    %c0_112 = arith.constant 0 : index
    %c0_113 = arith.constant 0 : index
    %105 = vector.load %arg1[%c4_110, %c1_111, %c0_112, %c0_113] : memref<16x4x8x256xbf16, #tpu.memory_space<vmem>>, vector<1x1x8x256xbf16>
    %106 = vector.shape_cast %105 : vector<1x1x8x256xbf16> to vector<8x256xbf16>
    %cst_114 = arith.constant dense<0.000000e+00> : vector<8x128xf32>
    %107 = tpu.matmul %106, %0, %cst_114 {dimension_numbers = #tpu.dot_dimension_numbers<[1], [0], [0], [1], [0, 0, 1, 1], [], []>} : vector<8x256xbf16>, vector<256x128xbf16>, vector<8x128xf32> -> vector<8x128xf32>
    %108 = arith.maximumf %104, %107 : vector<8x128xf32>
    %c4_115 = arith.constant 4 : index
    %c2_116 = arith.constant 2 : index
    %c0_117 = arith.constant 0 : index
    %c0_118 = arith.constant 0 : index
    %109 = vector.load %arg1[%c4_115, %c2_116, %c0_117, %c0_118] : memref<16x4x8x256xbf16, #tpu.memory_space<vmem>>, vector<1x1x8x256xbf16>
    %110 = vector.shape_cast %109 : vector<1x1x8x256xbf16> to vector<8x256xbf16>
    %cst_119 = arith.constant dense<0.000000e+00> : vector<8x128xf32>
    %111 = tpu.matmul %110, %0, %cst_119 {dimension_numbers = #tpu.dot_dimension_numbers<[1], [0], [0], [1], [0, 0, 1, 1], [], []>} : vector<8x256xbf16>, vector<256x128xbf16>, vector<8x128xf32> -> vector<8x128xf32>
    %112 = arith.maximumf %108, %111 : vector<8x128xf32>
    %c4_120 = arith.constant 4 : index
    %c3_121 = arith.constant 3 : index
    %c0_122 = arith.constant 0 : index
    %c0_123 = arith.constant 0 : index
    %113 = vector.load %arg1[%c4_120, %c3_121, %c0_122, %c0_123] : memref<16x4x8x256xbf16, #tpu.memory_space<vmem>>, vector<1x1x8x256xbf16>
    %114 = vector.shape_cast %113 : vector<1x1x8x256xbf16> to vector<8x256xbf16>
    %cst_124 = arith.constant dense<0.000000e+00> : vector<8x128xf32>
    %115 = tpu.matmul %114, %0, %cst_124 {dimension_numbers = #tpu.dot_dimension_numbers<[1], [0], [0], [1], [0, 0, 1, 1], [], []>} : vector<8x256xbf16>, vector<256x128xbf16>, vector<8x128xf32> -> vector<8x128xf32>
    %116 = arith.maximumf %112, %115 : vector<8x128xf32>
    %c0_125 = arith.constant 0 : index
    %c0_126 = arith.constant 0 : index
    %117 = vector.load %arg3[%c0_125, %c0_126] : memref<1x128xf32, #tpu.memory_space<vmem>>, vector<1x128xf32>
    %118 = vector.broadcast %117 : vector<1x128xf32> to vector<8x128xf32>
    %119 = arith.addf %116, %118 : vector<8x128xf32>
    %cst_127 = arith.constant 0.000000e+00 : f32
    %120 = vector.broadcast %cst_127 : f32 to vector<8x128xf32>
    %121 = arith.maximumf %119, %120 : vector<8x128xf32>
    %122 = arith.truncf %121 : vector<8x128xf32> to vector<8x128xbf16>
    %c4_128 = arith.constant 4 : index
    %c0_129 = arith.constant 0 : index
    %c0_130 = arith.constant 0 : index
    %123 = vector.load %arg4[%c4_128, %c0_129, %c0_130] : memref<16x128x128xbf16, #tpu.memory_space<vmem>>, vector<1x128x128xbf16>
    %124 = vector.shape_cast %123 : vector<1x128x128xbf16> to vector<128x128xbf16>
    %cst_131 = arith.constant dense<0.000000e+00> : vector<8x128xf32>
    %125 = tpu.matmul %122, %124, %cst_131 {dimension_numbers = #tpu.dot_dimension_numbers<[1], [0], [0], [1], [0, 0, 1, 1], [], []>} : vector<8x128xbf16>, vector<128x128xbf16>, vector<8x128xf32> -> vector<8x128xf32>
    %126 = arith.addf %101, %125 : vector<8x128xf32>
    %c5 = arith.constant 5 : index
    %c0_132 = arith.constant 0 : index
    %c0_133 = arith.constant 0 : index
    %c0_134 = arith.constant 0 : index
    %127 = vector.load %arg1[%c5, %c0_132, %c0_133, %c0_134] : memref<16x4x8x256xbf16, #tpu.memory_space<vmem>>, vector<1x1x8x256xbf16>
    %128 = vector.shape_cast %127 : vector<1x1x8x256xbf16> to vector<8x256xbf16>
    %cst_135 = arith.constant dense<0.000000e+00> : vector<8x128xf32>
    %129 = tpu.matmul %128, %0, %cst_135 {dimension_numbers = #tpu.dot_dimension_numbers<[1], [0], [0], [1], [0, 0, 1, 1], [], []>} : vector<8x256xbf16>, vector<256x128xbf16>, vector<8x128xf32> -> vector<8x128xf32>
    %c5_136 = arith.constant 5 : index
    %c1_137 = arith.constant 1 : index
    %c0_138 = arith.constant 0 : index
    %c0_139 = arith.constant 0 : index
    %130 = vector.load %arg1[%c5_136, %c1_137, %c0_138, %c0_139] : memref<16x4x8x256xbf16, #tpu.memory_space<vmem>>, vector<1x1x8x256xbf16>
    %131 = vector.shape_cast %130 : vector<1x1x8x256xbf16> to vector<8x256xbf16>
    %cst_140 = arith.constant dense<0.000000e+00> : vector<8x128xf32>
    %132 = tpu.matmul %131, %0, %cst_140 {dimension_numbers = #tpu.dot_dimension_numbers<[1], [0], [0], [1], [0, 0, 1, 1], [], []>} : vector<8x256xbf16>, vector<256x128xbf16>, vector<8x128xf32> -> vector<8x128xf32>
    %133 = arith.maximumf %129, %132 : vector<8x128xf32>
    %c5_141 = arith.constant 5 : index
    %c2_142 = arith.constant 2 : index
    %c0_143 = arith.constant 0 : index
    %c0_144 = arith.constant 0 : index
    %134 = vector.load %arg1[%c5_141, %c2_142, %c0_143, %c0_144] : memref<16x4x8x256xbf16, #tpu.memory_space<vmem>>, vector<1x1x8x256xbf16>
    %135 = vector.shape_cast %134 : vector<1x1x8x256xbf16> to vector<8x256xbf16>
    %cst_145 = arith.constant dense<0.000000e+00> : vector<8x128xf32>
    %136 = tpu.matmul %135, %0, %cst_145 {dimension_numbers = #tpu.dot_dimension_numbers<[1], [0], [0], [1], [0, 0, 1, 1], [], []>} : vector<8x256xbf16>, vector<256x128xbf16>, vector<8x128xf32> -> vector<8x128xf32>
    %137 = arith.maximumf %133, %136 : vector<8x128xf32>
    %c5_146 = arith.constant 5 : index
    %c3_147 = arith.constant 3 : index
    %c0_148 = arith.constant 0 : index
    %c0_149 = arith.constant 0 : index
    %138 = vector.load %arg1[%c5_146, %c3_147, %c0_148, %c0_149] : memref<16x4x8x256xbf16, #tpu.memory_space<vmem>>, vector<1x1x8x256xbf16>
    %139 = vector.shape_cast %138 : vector<1x1x8x256xbf16> to vector<8x256xbf16>
    %cst_150 = arith.constant dense<0.000000e+00> : vector<8x128xf32>
    %140 = tpu.matmul %139, %0, %cst_150 {dimension_numbers = #tpu.dot_dimension_numbers<[1], [0], [0], [1], [0, 0, 1, 1], [], []>} : vector<8x256xbf16>, vector<256x128xbf16>, vector<8x128xf32> -> vector<8x128xf32>
    %141 = arith.maximumf %137, %140 : vector<8x128xf32>
    %c0_151 = arith.constant 0 : index
    %c0_152 = arith.constant 0 : index
    %142 = vector.load %arg3[%c0_151, %c0_152] : memref<1x128xf32, #tpu.memory_space<vmem>>, vector<1x128xf32>
    %143 = vector.broadcast %142 : vector<1x128xf32> to vector<8x128xf32>
    %144 = arith.addf %141, %143 : vector<8x128xf32>
    %cst_153 = arith.constant 0.000000e+00 : f32
    %145 = vector.broadcast %cst_153 : f32 to vector<8x128xf32>
    %146 = arith.maximumf %144, %145 : vector<8x128xf32>
    %147 = arith.truncf %146 : vector<8x128xf32> to vector<8x128xbf16>
    %c5_154 = arith.constant 5 : index
    %c0_155 = arith.constant 0 : index
    %c0_156 = arith.constant 0 : index
    %148 = vector.load %arg4[%c5_154, %c0_155, %c0_156] : memref<16x128x128xbf16, #tpu.memory_space<vmem>>, vector<1x128x128xbf16>
    %149 = vector.shape_cast %148 : vector<1x128x128xbf16> to vector<128x128xbf16>
    %cst_157 = arith.constant dense<0.000000e+00> : vector<8x128xf32>
    %150 = tpu.matmul %147, %149, %cst_157 {dimension_numbers = #tpu.dot_dimension_numbers<[1], [0], [0], [1], [0, 0, 1, 1], [], []>} : vector<8x128xbf16>, vector<128x128xbf16>, vector<8x128xf32> -> vector<8x128xf32>
    %151 = arith.addf %126, %150 : vector<8x128xf32>
    %c6 = arith.constant 6 : index
    %c0_158 = arith.constant 0 : index
    %c0_159 = arith.constant 0 : index
    %c0_160 = arith.constant 0 : index
    %152 = vector.load %arg1[%c6, %c0_158, %c0_159, %c0_160] : memref<16x4x8x256xbf16, #tpu.memory_space<vmem>>, vector<1x1x8x256xbf16>
    %153 = vector.shape_cast %152 : vector<1x1x8x256xbf16> to vector<8x256xbf16>
    %cst_161 = arith.constant dense<0.000000e+00> : vector<8x128xf32>
    %154 = tpu.matmul %153, %0, %cst_161 {dimension_numbers = #tpu.dot_dimension_numbers<[1], [0], [0], [1], [0, 0, 1, 1], [], []>} : vector<8x256xbf16>, vector<256x128xbf16>, vector<8x128xf32> -> vector<8x128xf32>
    %c6_162 = arith.constant 6 : index
    %c1_163 = arith.constant 1 : index
    %c0_164 = arith.constant 0 : index
    %c0_165 = arith.constant 0 : index
    %155 = vector.load %arg1[%c6_162, %c1_163, %c0_164, %c0_165] : memref<16x4x8x256xbf16, #tpu.memory_space<vmem>>, vector<1x1x8x256xbf16>
    %156 = vector.shape_cast %155 : vector<1x1x8x256xbf16> to vector<8x256xbf16>
    %cst_166 = arith.constant dense<0.000000e+00> : vector<8x128xf32>
    %157 = tpu.matmul %156, %0, %cst_166 {dimension_numbers = #tpu.dot_dimension_numbers<[1], [0], [0], [1], [0, 0, 1, 1], [], []>} : vector<8x256xbf16>, vector<256x128xbf16>, vector<8x128xf32> -> vector<8x128xf32>
    %158 = arith.maximumf %154, %157 : vector<8x128xf32>
    %c6_167 = arith.constant 6 : index
    %c2_168 = arith.constant 2 : index
    %c0_169 = arith.constant 0 : index
    %c0_170 = arith.constant 0 : index
    %159 = vector.load %arg1[%c6_167, %c2_168, %c0_169, %c0_170] : memref<16x4x8x256xbf16, #tpu.memory_space<vmem>>, vector<1x1x8x256xbf16>
    %160 = vector.shape_cast %159 : vector<1x1x8x256xbf16> to vector<8x256xbf16>
    %cst_171 = arith.constant dense<0.000000e+00> : vector<8x128xf32>
    %161 = tpu.matmul %160, %0, %cst_171 {dimension_numbers = #tpu.dot_dimension_numbers<[1], [0], [0], [1], [0, 0, 1, 1], [], []>} : vector<8x256xbf16>, vector<256x128xbf16>, vector<8x128xf32> -> vector<8x128xf32>
    %162 = arith.maximumf %158, %161 : vector<8x128xf32>
    %c6_172 = arith.constant 6 : index
    %c3_173 = arith.constant 3 : index
    %c0_174 = arith.constant 0 : index
    %c0_175 = arith.constant 0 : index
    %163 = vector.load %arg1[%c6_172, %c3_173, %c0_174, %c0_175] : memref<16x4x8x256xbf16, #tpu.memory_space<vmem>>, vector<1x1x8x256xbf16>
    %164 = vector.shape_cast %163 : vector<1x1x8x256xbf16> to vector<8x256xbf16>
    %cst_176 = arith.constant dense<0.000000e+00> : vector<8x128xf32>
    %165 = tpu.matmul %164, %0, %cst_176 {dimension_numbers = #tpu.dot_dimension_numbers<[1], [0], [0], [1], [0, 0, 1, 1], [], []>} : vector<8x256xbf16>, vector<256x128xbf16>, vector<8x128xf32> -> vector<8x128xf32>
    %166 = arith.maximumf %162, %165 : vector<8x128xf32>
    %c0_177 = arith.constant 0 : index
    %c0_178 = arith.constant 0 : index
    %167 = vector.load %arg3[%c0_177, %c0_178] : memref<1x128xf32, #tpu.memory_space<vmem>>, vector<1x128xf32>
    %168 = vector.broadcast %167 : vector<1x128xf32> to vector<8x128xf32>
    %169 = arith.addf %166, %168 : vector<8x128xf32>
    %cst_179 = arith.constant 0.000000e+00 : f32
    %170 = vector.broadcast %cst_179 : f32 to vector<8x128xf32>
    %171 = arith.maximumf %169, %170 : vector<8x128xf32>
    %172 = arith.truncf %171 : vector<8x128xf32> to vector<8x128xbf16>
    %c6_180 = arith.constant 6 : index
    %c0_181 = arith.constant 0 : index
    %c0_182 = arith.constant 0 : index
    %173 = vector.load %arg4[%c6_180, %c0_181, %c0_182] : memref<16x128x128xbf16, #tpu.memory_space<vmem>>, vector<1x128x128xbf16>
    %174 = vector.shape_cast %173 : vector<1x128x128xbf16> to vector<128x128xbf16>
    %cst_183 = arith.constant dense<0.000000e+00> : vector<8x128xf32>
    %175 = tpu.matmul %172, %174, %cst_183 {dimension_numbers = #tpu.dot_dimension_numbers<[1], [0], [0], [1], [0, 0, 1, 1], [], []>} : vector<8x128xbf16>, vector<128x128xbf16>, vector<8x128xf32> -> vector<8x128xf32>
    %176 = arith.addf %151, %175 : vector<8x128xf32>
    %c7 = arith.constant 7 : index
    %c0_184 = arith.constant 0 : index
    %c0_185 = arith.constant 0 : index
    %c0_186 = arith.constant 0 : index
    %177 = vector.load %arg1[%c7, %c0_184, %c0_185, %c0_186] : memref<16x4x8x256xbf16, #tpu.memory_space<vmem>>, vector<1x1x8x256xbf16>
    %178 = vector.shape_cast %177 : vector<1x1x8x256xbf16> to vector<8x256xbf16>
    %cst_187 = arith.constant dense<0.000000e+00> : vector<8x128xf32>
    %179 = tpu.matmul %178, %0, %cst_187 {dimension_numbers = #tpu.dot_dimension_numbers<[1], [0], [0], [1], [0, 0, 1, 1], [], []>} : vector<8x256xbf16>, vector<256x128xbf16>, vector<8x128xf32> -> vector<8x128xf32>
    %c7_188 = arith.constant 7 : index
    %c1_189 = arith.constant 1 : index
    %c0_190 = arith.constant 0 : index
    %c0_191 = arith.constant 0 : index
    %180 = vector.load %arg1[%c7_188, %c1_189, %c0_190, %c0_191] : memref<16x4x8x256xbf16, #tpu.memory_space<vmem>>, vector<1x1x8x256xbf16>
    %181 = vector.shape_cast %180 : vector<1x1x8x256xbf16> to vector<8x256xbf16>
    %cst_192 = arith.constant dense<0.000000e+00> : vector<8x128xf32>
    %182 = tpu.matmul %181, %0, %cst_192 {dimension_numbers = #tpu.dot_dimension_numbers<[1], [0], [0], [1], [0, 0, 1, 1], [], []>} : vector<8x256xbf16>, vector<256x128xbf16>, vector<8x128xf32> -> vector<8x128xf32>
    %183 = arith.maximumf %179, %182 : vector<8x128xf32>
    %c7_193 = arith.constant 7 : index
    %c2_194 = arith.constant 2 : index
    %c0_195 = arith.constant 0 : index
    %c0_196 = arith.constant 0 : index
    %184 = vector.load %arg1[%c7_193, %c2_194, %c0_195, %c0_196] : memref<16x4x8x256xbf16, #tpu.memory_space<vmem>>, vector<1x1x8x256xbf16>
    %185 = vector.shape_cast %184 : vector<1x1x8x256xbf16> to vector<8x256xbf16>
    %cst_197 = arith.constant dense<0.000000e+00> : vector<8x128xf32>
    %186 = tpu.matmul %185, %0, %cst_197 {dimension_numbers = #tpu.dot_dimension_numbers<[1], [0], [0], [1], [0, 0, 1, 1], [], []>} : vector<8x256xbf16>, vector<256x128xbf16>, vector<8x128xf32> -> vector<8x128xf32>
    %187 = arith.maximumf %183, %186 : vector<8x128xf32>
    %c7_198 = arith.constant 7 : index
    %c3_199 = arith.constant 3 : index
    %c0_200 = arith.constant 0 : index
    %c0_201 = arith.constant 0 : index
    %188 = vector.load %arg1[%c7_198, %c3_199, %c0_200, %c0_201] : memref<16x4x8x256xbf16, #tpu.memory_space<vmem>>, vector<1x1x8x256xbf16>
    %189 = vector.shape_cast %188 : vector<1x1x8x256xbf16> to vector<8x256xbf16>
    %cst_202 = arith.constant dense<0.000000e+00> : vector<8x128xf32>
    %190 = tpu.matmul %189, %0, %cst_202 {dimension_numbers = #tpu.dot_dimension_numbers<[1], [0], [0], [1], [0, 0, 1, 1], [], []>} : vector<8x256xbf16>, vector<256x128xbf16>, vector<8x128xf32> -> vector<8x128xf32>
    %191 = arith.maximumf %187, %190 : vector<8x128xf32>
    %c0_203 = arith.constant 0 : index
    %c0_204 = arith.constant 0 : index
    %192 = vector.load %arg3[%c0_203, %c0_204] : memref<1x128xf32, #tpu.memory_space<vmem>>, vector<1x128xf32>
    %193 = vector.broadcast %192 : vector<1x128xf32> to vector<8x128xf32>
    %194 = arith.addf %191, %193 : vector<8x128xf32>
    %cst_205 = arith.constant 0.000000e+00 : f32
    %195 = vector.broadcast %cst_205 : f32 to vector<8x128xf32>
    %196 = arith.maximumf %194, %195 : vector<8x128xf32>
    %197 = arith.truncf %196 : vector<8x128xf32> to vector<8x128xbf16>
    %c7_206 = arith.constant 7 : index
    %c0_207 = arith.constant 0 : index
    %c0_208 = arith.constant 0 : index
    %198 = vector.load %arg4[%c7_206, %c0_207, %c0_208] : memref<16x128x128xbf16, #tpu.memory_space<vmem>>, vector<1x128x128xbf16>
    %199 = vector.shape_cast %198 : vector<1x128x128xbf16> to vector<128x128xbf16>
    %cst_209 = arith.constant dense<0.000000e+00> : vector<8x128xf32>
    %200 = tpu.matmul %197, %199, %cst_209 {dimension_numbers = #tpu.dot_dimension_numbers<[1], [0], [0], [1], [0, 0, 1, 1], [], []>} : vector<8x128xbf16>, vector<128x128xbf16>, vector<8x128xf32> -> vector<8x128xf32>
    %201 = arith.addf %176, %200 : vector<8x128xf32>
    %c8 = arith.constant 8 : index
    %c0_210 = arith.constant 0 : index
    %c0_211 = arith.constant 0 : index
    %c0_212 = arith.constant 0 : index
    %202 = vector.load %arg1[%c8, %c0_210, %c0_211, %c0_212] : memref<16x4x8x256xbf16, #tpu.memory_space<vmem>>, vector<1x1x8x256xbf16>
    %203 = vector.shape_cast %202 : vector<1x1x8x256xbf16> to vector<8x256xbf16>
    %cst_213 = arith.constant dense<0.000000e+00> : vector<8x128xf32>
    %204 = tpu.matmul %203, %0, %cst_213 {dimension_numbers = #tpu.dot_dimension_numbers<[1], [0], [0], [1], [0, 0, 1, 1], [], []>} : vector<8x256xbf16>, vector<256x128xbf16>, vector<8x128xf32> -> vector<8x128xf32>
    %c8_214 = arith.constant 8 : index
    %c1_215 = arith.constant 1 : index
    %c0_216 = arith.constant 0 : index
    %c0_217 = arith.constant 0 : index
    %205 = vector.load %arg1[%c8_214, %c1_215, %c0_216, %c0_217] : memref<16x4x8x256xbf16, #tpu.memory_space<vmem>>, vector<1x1x8x256xbf16>
    %206 = vector.shape_cast %205 : vector<1x1x8x256xbf16> to vector<8x256xbf16>
    %cst_218 = arith.constant dense<0.000000e+00> : vector<8x128xf32>
    %207 = tpu.matmul %206, %0, %cst_218 {dimension_numbers = #tpu.dot_dimension_numbers<[1], [0], [0], [1], [0, 0, 1, 1], [], []>} : vector<8x256xbf16>, vector<256x128xbf16>, vector<8x128xf32> -> vector<8x128xf32>
    %208 = arith.maximumf %204, %207 : vector<8x128xf32>
    %c8_219 = arith.constant 8 : index
    %c2_220 = arith.constant 2 : index
    %c0_221 = arith.constant 0 : index
    %c0_222 = arith.constant 0 : index
    %209 = vector.load %arg1[%c8_219, %c2_220, %c0_221, %c0_222] : memref<16x4x8x256xbf16, #tpu.memory_space<vmem>>, vector<1x1x8x256xbf16>
    %210 = vector.shape_cast %209 : vector<1x1x8x256xbf16> to vector<8x256xbf16>
    %cst_223 = arith.constant dense<0.000000e+00> : vector<8x128xf32>
    %211 = tpu.matmul %210, %0, %cst_223 {dimension_numbers = #tpu.dot_dimension_numbers<[1], [0], [0], [1], [0, 0, 1, 1], [], []>} : vector<8x256xbf16>, vector<256x128xbf16>, vector<8x128xf32> -> vector<8x128xf32>
    %212 = arith.maximumf %208, %211 : vector<8x128xf32>
    %c8_224 = arith.constant 8 : index
    %c3_225 = arith.constant 3 : index
    %c0_226 = arith.constant 0 : index
    %c0_227 = arith.constant 0 : index
    %213 = vector.load %arg1[%c8_224, %c3_225, %c0_226, %c0_227] : memref<16x4x8x256xbf16, #tpu.memory_space<vmem>>, vector<1x1x8x256xbf16>
    %214 = vector.shape_cast %213 : vector<1x1x8x256xbf16> to vector<8x256xbf16>
    %cst_228 = arith.constant dense<0.000000e+00> : vector<8x128xf32>
    %215 = tpu.matmul %214, %0, %cst_228 {dimension_numbers = #tpu.dot_dimension_numbers<[1], [0], [0], [1], [0, 0, 1, 1], [], []>} : vector<8x256xbf16>, vector<256x128xbf16>, vector<8x128xf32> -> vector<8x128xf32>
    %216 = arith.maximumf %212, %215 : vector<8x128xf32>
    %c0_229 = arith.constant 0 : index
    %c0_230 = arith.constant 0 : index
    %217 = vector.load %arg3[%c0_229, %c0_230] : memref<1x128xf32, #tpu.memory_space<vmem>>, vector<1x128xf32>
    %218 = vector.broadcast %217 : vector<1x128xf32> to vector<8x128xf32>
    %219 = arith.addf %216, %218 : vector<8x128xf32>
    %cst_231 = arith.constant 0.000000e+00 : f32
    %220 = vector.broadcast %cst_231 : f32 to vector<8x128xf32>
    %221 = arith.maximumf %219, %220 : vector<8x128xf32>
    %222 = arith.truncf %221 : vector<8x128xf32> to vector<8x128xbf16>
    %c8_232 = arith.constant 8 : index
    %c0_233 = arith.constant 0 : index
    %c0_234 = arith.constant 0 : index
    %223 = vector.load %arg4[%c8_232, %c0_233, %c0_234] : memref<16x128x128xbf16, #tpu.memory_space<vmem>>, vector<1x128x128xbf16>
    %224 = vector.shape_cast %223 : vector<1x128x128xbf16> to vector<128x128xbf16>
    %cst_235 = arith.constant dense<0.000000e+00> : vector<8x128xf32>
    %225 = tpu.matmul %222, %224, %cst_235 {dimension_numbers = #tpu.dot_dimension_numbers<[1], [0], [0], [1], [0, 0, 1, 1], [], []>} : vector<8x128xbf16>, vector<128x128xbf16>, vector<8x128xf32> -> vector<8x128xf32>
    %226 = arith.addf %201, %225 : vector<8x128xf32>
    %c9 = arith.constant 9 : index
    %c0_236 = arith.constant 0 : index
    %c0_237 = arith.constant 0 : index
    %c0_238 = arith.constant 0 : index
    %227 = vector.load %arg1[%c9, %c0_236, %c0_237, %c0_238] : memref<16x4x8x256xbf16, #tpu.memory_space<vmem>>, vector<1x1x8x256xbf16>
    %228 = vector.shape_cast %227 : vector<1x1x8x256xbf16> to vector<8x256xbf16>
    %cst_239 = arith.constant dense<0.000000e+00> : vector<8x128xf32>
    %229 = tpu.matmul %228, %0, %cst_239 {dimension_numbers = #tpu.dot_dimension_numbers<[1], [0], [0], [1], [0, 0, 1, 1], [], []>} : vector<8x256xbf16>, vector<256x128xbf16>, vector<8x128xf32> -> vector<8x128xf32>
    %c9_240 = arith.constant 9 : index
    %c1_241 = arith.constant 1 : index
    %c0_242 = arith.constant 0 : index
    %c0_243 = arith.constant 0 : index
    %230 = vector.load %arg1[%c9_240, %c1_241, %c0_242, %c0_243] : memref<16x4x8x256xbf16, #tpu.memory_space<vmem>>, vector<1x1x8x256xbf16>
    %231 = vector.shape_cast %230 : vector<1x1x8x256xbf16> to vector<8x256xbf16>
    %cst_244 = arith.constant dense<0.000000e+00> : vector<8x128xf32>
    %232 = tpu.matmul %231, %0, %cst_244 {dimension_numbers = #tpu.dot_dimension_numbers<[1], [0], [0], [1], [0, 0, 1, 1], [], []>} : vector<8x256xbf16>, vector<256x128xbf16>, vector<8x128xf32> -> vector<8x128xf32>
    %233 = arith.maximumf %229, %232 : vector<8x128xf32>
    %c9_245 = arith.constant 9 : index
    %c2_246 = arith.constant 2 : index
    %c0_247 = arith.constant 0 : index
    %c0_248 = arith.constant 0 : index
    %234 = vector.load %arg1[%c9_245, %c2_246, %c0_247, %c0_248] : memref<16x4x8x256xbf16, #tpu.memory_space<vmem>>, vector<1x1x8x256xbf16>
    %235 = vector.shape_cast %234 : vector<1x1x8x256xbf16> to vector<8x256xbf16>
    %cst_249 = arith.constant dense<0.000000e+00> : vector<8x128xf32>
    %236 = tpu.matmul %235, %0, %cst_249 {dimension_numbers = #tpu.dot_dimension_numbers<[1], [0], [0], [1], [0, 0, 1, 1], [], []>} : vector<8x256xbf16>, vector<256x128xbf16>, vector<8x128xf32> -> vector<8x128xf32>
    %237 = arith.maximumf %233, %236 : vector<8x128xf32>
    %c9_250 = arith.constant 9 : index
    %c3_251 = arith.constant 3 : index
    %c0_252 = arith.constant 0 : index
    %c0_253 = arith.constant 0 : index
    %238 = vector.load %arg1[%c9_250, %c3_251, %c0_252, %c0_253] : memref<16x4x8x256xbf16, #tpu.memory_space<vmem>>, vector<1x1x8x256xbf16>
    %239 = vector.shape_cast %238 : vector<1x1x8x256xbf16> to vector<8x256xbf16>
    %cst_254 = arith.constant dense<0.000000e+00> : vector<8x128xf32>
    %240 = tpu.matmul %239, %0, %cst_254 {dimension_numbers = #tpu.dot_dimension_numbers<[1], [0], [0], [1], [0, 0, 1, 1], [], []>} : vector<8x256xbf16>, vector<256x128xbf16>, vector<8x128xf32> -> vector<8x128xf32>
    %241 = arith.maximumf %237, %240 : vector<8x128xf32>
    %c0_255 = arith.constant 0 : index
    %c0_256 = arith.constant 0 : index
    %242 = vector.load %arg3[%c0_255, %c0_256] : memref<1x128xf32, #tpu.memory_space<vmem>>, vector<1x128xf32>
    %243 = vector.broadcast %242 : vector<1x128xf32> to vector<8x128xf32>
    %244 = arith.addf %241, %243 : vector<8x128xf32>
    %cst_257 = arith.constant 0.000000e+00 : f32
    %245 = vector.broadcast %cst_257 : f32 to vector<8x128xf32>
    %246 = arith.maximumf %244, %245 : vector<8x128xf32>
    %247 = arith.truncf %246 : vector<8x128xf32> to vector<8x128xbf16>
    %c9_258 = arith.constant 9 : index
    %c0_259 = arith.constant 0 : index
    %c0_260 = arith.constant 0 : index
    %248 = vector.load %arg4[%c9_258, %c0_259, %c0_260] : memref<16x128x128xbf16, #tpu.memory_space<vmem>>, vector<1x128x128xbf16>
    %249 = vector.shape_cast %248 : vector<1x128x128xbf16> to vector<128x128xbf16>
    %cst_261 = arith.constant dense<0.000000e+00> : vector<8x128xf32>
    %250 = tpu.matmul %247, %249, %cst_261 {dimension_numbers = #tpu.dot_dimension_numbers<[1], [0], [0], [1], [0, 0, 1, 1], [], []>} : vector<8x128xbf16>, vector<128x128xbf16>, vector<8x128xf32> -> vector<8x128xf32>
    %251 = arith.addf %226, %250 : vector<8x128xf32>
    %c10 = arith.constant 10 : index
    %c0_262 = arith.constant 0 : index
    %c0_263 = arith.constant 0 : index
    %c0_264 = arith.constant 0 : index
    %252 = vector.load %arg1[%c10, %c0_262, %c0_263, %c0_264] : memref<16x4x8x256xbf16, #tpu.memory_space<vmem>>, vector<1x1x8x256xbf16>
    %253 = vector.shape_cast %252 : vector<1x1x8x256xbf16> to vector<8x256xbf16>
    %cst_265 = arith.constant dense<0.000000e+00> : vector<8x128xf32>
    %254 = tpu.matmul %253, %0, %cst_265 {dimension_numbers = #tpu.dot_dimension_numbers<[1], [0], [0], [1], [0, 0, 1, 1], [], []>} : vector<8x256xbf16>, vector<256x128xbf16>, vector<8x128xf32> -> vector<8x128xf32>
    %c10_266 = arith.constant 10 : index
    %c1_267 = arith.constant 1 : index
    %c0_268 = arith.constant 0 : index
    %c0_269 = arith.constant 0 : index
    %255 = vector.load %arg1[%c10_266, %c1_267, %c0_268, %c0_269] : memref<16x4x8x256xbf16, #tpu.memory_space<vmem>>, vector<1x1x8x256xbf16>
    %256 = vector.shape_cast %255 : vector<1x1x8x256xbf16> to vector<8x256xbf16>
    %cst_270 = arith.constant dense<0.000000e+00> : vector<8x128xf32>
    %257 = tpu.matmul %256, %0, %cst_270 {dimension_numbers = #tpu.dot_dimension_numbers<[1], [0], [0], [1], [0, 0, 1, 1], [], []>} : vector<8x256xbf16>, vector<256x128xbf16>, vector<8x128xf32> -> vector<8x128xf32>
    %258 = arith.maximumf %254, %257 : vector<8x128xf32>
    %c10_271 = arith.constant 10 : index
    %c2_272 = arith.constant 2 : index
    %c0_273 = arith.constant 0 : index
    %c0_274 = arith.constant 0 : index
    %259 = vector.load %arg1[%c10_271, %c2_272, %c0_273, %c0_274] : memref<16x4x8x256xbf16, #tpu.memory_space<vmem>>, vector<1x1x8x256xbf16>
    %260 = vector.shape_cast %259 : vector<1x1x8x256xbf16> to vector<8x256xbf16>
    %cst_275 = arith.constant dense<0.000000e+00> : vector<8x128xf32>
    %261 = tpu.matmul %260, %0, %cst_275 {dimension_numbers = #tpu.dot_dimension_numbers<[1], [0], [0], [1], [0, 0, 1, 1], [], []>} : vector<8x256xbf16>, vector<256x128xbf16>, vector<8x128xf32> -> vector<8x128xf32>
    %262 = arith.maximumf %258, %261 : vector<8x128xf32>
    %c10_276 = arith.constant 10 : index
    %c3_277 = arith.constant 3 : index
    %c0_278 = arith.constant 0 : index
    %c0_279 = arith.constant 0 : index
    %263 = vector.load %arg1[%c10_276, %c3_277, %c0_278, %c0_279] : memref<16x4x8x256xbf16, #tpu.memory_space<vmem>>, vector<1x1x8x256xbf16>
    %264 = vector.shape_cast %263 : vector<1x1x8x256xbf16> to vector<8x256xbf16>
    %cst_280 = arith.constant dense<0.000000e+00> : vector<8x128xf32>
    %265 = tpu.matmul %264, %0, %cst_280 {dimension_numbers = #tpu.dot_dimension_numbers<[1], [0], [0], [1], [0, 0, 1, 1], [], []>} : vector<8x256xbf16>, vector<256x128xbf16>, vector<8x128xf32> -> vector<8x128xf32>
    %266 = arith.maximumf %262, %265 : vector<8x128xf32>
    %c0_281 = arith.constant 0 : index
    %c0_282 = arith.constant 0 : index
    %267 = vector.load %arg3[%c0_281, %c0_282] : memref<1x128xf32, #tpu.memory_space<vmem>>, vector<1x128xf32>
    %268 = vector.broadcast %267 : vector<1x128xf32> to vector<8x128xf32>
    %269 = arith.addf %266, %268 : vector<8x128xf32>
    %cst_283 = arith.constant 0.000000e+00 : f32
    %270 = vector.broadcast %cst_283 : f32 to vector<8x128xf32>
    %271 = arith.maximumf %269, %270 : vector<8x128xf32>
    %272 = arith.truncf %271 : vector<8x128xf32> to vector<8x128xbf16>
    %c10_284 = arith.constant 10 : index
    %c0_285 = arith.constant 0 : index
    %c0_286 = arith.constant 0 : index
    %273 = vector.load %arg4[%c10_284, %c0_285, %c0_286] : memref<16x128x128xbf16, #tpu.memory_space<vmem>>, vector<1x128x128xbf16>
    %274 = vector.shape_cast %273 : vector<1x128x128xbf16> to vector<128x128xbf16>
    %cst_287 = arith.constant dense<0.000000e+00> : vector<8x128xf32>
    %275 = tpu.matmul %272, %274, %cst_287 {dimension_numbers = #tpu.dot_dimension_numbers<[1], [0], [0], [1], [0, 0, 1, 1], [], []>} : vector<8x128xbf16>, vector<128x128xbf16>, vector<8x128xf32> -> vector<8x128xf32>
    %276 = arith.addf %251, %275 : vector<8x128xf32>
    %c11 = arith.constant 11 : index
    %c0_288 = arith.constant 0 : index
    %c0_289 = arith.constant 0 : index
    %c0_290 = arith.constant 0 : index
    %277 = vector.load %arg1[%c11, %c0_288, %c0_289, %c0_290] : memref<16x4x8x256xbf16, #tpu.memory_space<vmem>>, vector<1x1x8x256xbf16>
    %278 = vector.shape_cast %277 : vector<1x1x8x256xbf16> to vector<8x256xbf16>
    %cst_291 = arith.constant dense<0.000000e+00> : vector<8x128xf32>
    %279 = tpu.matmul %278, %0, %cst_291 {dimension_numbers = #tpu.dot_dimension_numbers<[1], [0], [0], [1], [0, 0, 1, 1], [], []>} : vector<8x256xbf16>, vector<256x128xbf16>, vector<8x128xf32> -> vector<8x128xf32>
    %c11_292 = arith.constant 11 : index
    %c1_293 = arith.constant 1 : index
    %c0_294 = arith.constant 0 : index
    %c0_295 = arith.constant 0 : index
    %280 = vector.load %arg1[%c11_292, %c1_293, %c0_294, %c0_295] : memref<16x4x8x256xbf16, #tpu.memory_space<vmem>>, vector<1x1x8x256xbf16>
    %281 = vector.shape_cast %280 : vector<1x1x8x256xbf16> to vector<8x256xbf16>
    %cst_296 = arith.constant dense<0.000000e+00> : vector<8x128xf32>
    %282 = tpu.matmul %281, %0, %cst_296 {dimension_numbers = #tpu.dot_dimension_numbers<[1], [0], [0], [1], [0, 0, 1, 1], [], []>} : vector<8x256xbf16>, vector<256x128xbf16>, vector<8x128xf32> -> vector<8x128xf32>
    %283 = arith.maximumf %279, %282 : vector<8x128xf32>
    %c11_297 = arith.constant 11 : index
    %c2_298 = arith.constant 2 : index
    %c0_299 = arith.constant 0 : index
    %c0_300 = arith.constant 0 : index
    %284 = vector.load %arg1[%c11_297, %c2_298, %c0_299, %c0_300] : memref<16x4x8x256xbf16, #tpu.memory_space<vmem>>, vector<1x1x8x256xbf16>
    %285 = vector.shape_cast %284 : vector<1x1x8x256xbf16> to vector<8x256xbf16>
    %cst_301 = arith.constant dense<0.000000e+00> : vector<8x128xf32>
    %286 = tpu.matmul %285, %0, %cst_301 {dimension_numbers = #tpu.dot_dimension_numbers<[1], [0], [0], [1], [0, 0, 1, 1], [], []>} : vector<8x256xbf16>, vector<256x128xbf16>, vector<8x128xf32> -> vector<8x128xf32>
    %287 = arith.maximumf %283, %286 : vector<8x128xf32>
    %c11_302 = arith.constant 11 : index
    %c3_303 = arith.constant 3 : index
    %c0_304 = arith.constant 0 : index
    %c0_305 = arith.constant 0 : index
    %288 = vector.load %arg1[%c11_302, %c3_303, %c0_304, %c0_305] : memref<16x4x8x256xbf16, #tpu.memory_space<vmem>>, vector<1x1x8x256xbf16>
    %289 = vector.shape_cast %288 : vector<1x1x8x256xbf16> to vector<8x256xbf16>
    %cst_306 = arith.constant dense<0.000000e+00> : vector<8x128xf32>
    %290 = tpu.matmul %289, %0, %cst_306 {dimension_numbers = #tpu.dot_dimension_numbers<[1], [0], [0], [1], [0, 0, 1, 1], [], []>} : vector<8x256xbf16>, vector<256x128xbf16>, vector<8x128xf32> -> vector<8x128xf32>
    %291 = arith.maximumf %287, %290 : vector<8x128xf32>
    %c0_307 = arith.constant 0 : index
    %c0_308 = arith.constant 0 : index
    %292 = vector.load %arg3[%c0_307, %c0_308] : memref<1x128xf32, #tpu.memory_space<vmem>>, vector<1x128xf32>
    %293 = vector.broadcast %292 : vector<1x128xf32> to vector<8x128xf32>
    %294 = arith.addf %291, %293 : vector<8x128xf32>
    %cst_309 = arith.constant 0.000000e+00 : f32
    %295 = vector.broadcast %cst_309 : f32 to vector<8x128xf32>
    %296 = arith.maximumf %294, %295 : vector<8x128xf32>
    %297 = arith.truncf %296 : vector<8x128xf32> to vector<8x128xbf16>
    %c11_310 = arith.constant 11 : index
    %c0_311 = arith.constant 0 : index
    %c0_312 = arith.constant 0 : index
    %298 = vector.load %arg4[%c11_310, %c0_311, %c0_312] : memref<16x128x128xbf16, #tpu.memory_space<vmem>>, vector<1x128x128xbf16>
    %299 = vector.shape_cast %298 : vector<1x128x128xbf16> to vector<128x128xbf16>
    %cst_313 = arith.constant dense<0.000000e+00> : vector<8x128xf32>
    %300 = tpu.matmul %297, %299, %cst_313 {dimension_numbers = #tpu.dot_dimension_numbers<[1], [0], [0], [1], [0, 0, 1, 1], [], []>} : vector<8x128xbf16>, vector<128x128xbf16>, vector<8x128xf32> -> vector<8x128xf32>
    %301 = arith.addf %276, %300 : vector<8x128xf32>
    %c12 = arith.constant 12 : index
    %c0_314 = arith.constant 0 : index
    %c0_315 = arith.constant 0 : index
    %c0_316 = arith.constant 0 : index
    %302 = vector.load %arg1[%c12, %c0_314, %c0_315, %c0_316] : memref<16x4x8x256xbf16, #tpu.memory_space<vmem>>, vector<1x1x8x256xbf16>
    %303 = vector.shape_cast %302 : vector<1x1x8x256xbf16> to vector<8x256xbf16>
    %cst_317 = arith.constant dense<0.000000e+00> : vector<8x128xf32>
    %304 = tpu.matmul %303, %0, %cst_317 {dimension_numbers = #tpu.dot_dimension_numbers<[1], [0], [0], [1], [0, 0, 1, 1], [], []>} : vector<8x256xbf16>, vector<256x128xbf16>, vector<8x128xf32> -> vector<8x128xf32>
    %c12_318 = arith.constant 12 : index
    %c1_319 = arith.constant 1 : index
    %c0_320 = arith.constant 0 : index
    %c0_321 = arith.constant 0 : index
    %305 = vector.load %arg1[%c12_318, %c1_319, %c0_320, %c0_321] : memref<16x4x8x256xbf16, #tpu.memory_space<vmem>>, vector<1x1x8x256xbf16>
    %306 = vector.shape_cast %305 : vector<1x1x8x256xbf16> to vector<8x256xbf16>
    %cst_322 = arith.constant dense<0.000000e+00> : vector<8x128xf32>
    %307 = tpu.matmul %306, %0, %cst_322 {dimension_numbers = #tpu.dot_dimension_numbers<[1], [0], [0], [1], [0, 0, 1, 1], [], []>} : vector<8x256xbf16>, vector<256x128xbf16>, vector<8x128xf32> -> vector<8x128xf32>
    %308 = arith.maximumf %304, %307 : vector<8x128xf32>
    %c12_323 = arith.constant 12 : index
    %c2_324 = arith.constant 2 : index
    %c0_325 = arith.constant 0 : index
    %c0_326 = arith.constant 0 : index
    %309 = vector.load %arg1[%c12_323, %c2_324, %c0_325, %c0_326] : memref<16x4x8x256xbf16, #tpu.memory_space<vmem>>, vector<1x1x8x256xbf16>
    %310 = vector.shape_cast %309 : vector<1x1x8x256xbf16> to vector<8x256xbf16>
    %cst_327 = arith.constant dense<0.000000e+00> : vector<8x128xf32>
    %311 = tpu.matmul %310, %0, %cst_327 {dimension_numbers = #tpu.dot_dimension_numbers<[1], [0], [0], [1], [0, 0, 1, 1], [], []>} : vector<8x256xbf16>, vector<256x128xbf16>, vector<8x128xf32> -> vector<8x128xf32>
    %312 = arith.maximumf %308, %311 : vector<8x128xf32>
    %c12_328 = arith.constant 12 : index
    %c3_329 = arith.constant 3 : index
    %c0_330 = arith.constant 0 : index
    %c0_331 = arith.constant 0 : index
    %313 = vector.load %arg1[%c12_328, %c3_329, %c0_330, %c0_331] : memref<16x4x8x256xbf16, #tpu.memory_space<vmem>>, vector<1x1x8x256xbf16>
    %314 = vector.shape_cast %313 : vector<1x1x8x256xbf16> to vector<8x256xbf16>
    %cst_332 = arith.constant dense<0.000000e+00> : vector<8x128xf32>
    %315 = tpu.matmul %314, %0, %cst_332 {dimension_numbers = #tpu.dot_dimension_numbers<[1], [0], [0], [1], [0, 0, 1, 1], [], []>} : vector<8x256xbf16>, vector<256x128xbf16>, vector<8x128xf32> -> vector<8x128xf32>
    %316 = arith.maximumf %312, %315 : vector<8x128xf32>
    %c0_333 = arith.constant 0 : index
    %c0_334 = arith.constant 0 : index
    %317 = vector.load %arg3[%c0_333, %c0_334] : memref<1x128xf32, #tpu.memory_space<vmem>>, vector<1x128xf32>
    %318 = vector.broadcast %317 : vector<1x128xf32> to vector<8x128xf32>
    %319 = arith.addf %316, %318 : vector<8x128xf32>
    %cst_335 = arith.constant 0.000000e+00 : f32
    %320 = vector.broadcast %cst_335 : f32 to vector<8x128xf32>
    %321 = arith.maximumf %319, %320 : vector<8x128xf32>
    %322 = arith.truncf %321 : vector<8x128xf32> to vector<8x128xbf16>
    %c12_336 = arith.constant 12 : index
    %c0_337 = arith.constant 0 : index
    %c0_338 = arith.constant 0 : index
    %323 = vector.load %arg4[%c12_336, %c0_337, %c0_338] : memref<16x128x128xbf16, #tpu.memory_space<vmem>>, vector<1x128x128xbf16>
    %324 = vector.shape_cast %323 : vector<1x128x128xbf16> to vector<128x128xbf16>
    %cst_339 = arith.constant dense<0.000000e+00> : vector<8x128xf32>
    %325 = tpu.matmul %322, %324, %cst_339 {dimension_numbers = #tpu.dot_dimension_numbers<[1], [0], [0], [1], [0, 0, 1, 1], [], []>} : vector<8x128xbf16>, vector<128x128xbf16>, vector<8x128xf32> -> vector<8x128xf32>
    %326 = arith.addf %301, %325 : vector<8x128xf32>
    %c13 = arith.constant 13 : index
    %c0_340 = arith.constant 0 : index
    %c0_341 = arith.constant 0 : index
    %c0_342 = arith.constant 0 : index
    %327 = vector.load %arg1[%c13, %c0_340, %c0_341, %c0_342] : memref<16x4x8x256xbf16, #tpu.memory_space<vmem>>, vector<1x1x8x256xbf16>
    %328 = vector.shape_cast %327 : vector<1x1x8x256xbf16> to vector<8x256xbf16>
    %cst_343 = arith.constant dense<0.000000e+00> : vector<8x128xf32>
    %329 = tpu.matmul %328, %0, %cst_343 {dimension_numbers = #tpu.dot_dimension_numbers<[1], [0], [0], [1], [0, 0, 1, 1], [], []>} : vector<8x256xbf16>, vector<256x128xbf16>, vector<8x128xf32> -> vector<8x128xf32>
    %c13_344 = arith.constant 13 : index
    %c1_345 = arith.constant 1 : index
    %c0_346 = arith.constant 0 : index
    %c0_347 = arith.constant 0 : index
    %330 = vector.load %arg1[%c13_344, %c1_345, %c0_346, %c0_347] : memref<16x4x8x256xbf16, #tpu.memory_space<vmem>>, vector<1x1x8x256xbf16>
    %331 = vector.shape_cast %330 : vector<1x1x8x256xbf16> to vector<8x256xbf16>
    %cst_348 = arith.constant dense<0.000000e+00> : vector<8x128xf32>
    %332 = tpu.matmul %331, %0, %cst_348 {dimension_numbers = #tpu.dot_dimension_numbers<[1], [0], [0], [1], [0, 0, 1, 1], [], []>} : vector<8x256xbf16>, vector<256x128xbf16>, vector<8x128xf32> -> vector<8x128xf32>
    %333 = arith.maximumf %329, %332 : vector<8x128xf32>
    %c13_349 = arith.constant 13 : index
    %c2_350 = arith.constant 2 : index
    %c0_351 = arith.constant 0 : index
    %c0_352 = arith.constant 0 : index
    %334 = vector.load %arg1[%c13_349, %c2_350, %c0_351, %c0_352] : memref<16x4x8x256xbf16, #tpu.memory_space<vmem>>, vector<1x1x8x256xbf16>
    %335 = vector.shape_cast %334 : vector<1x1x8x256xbf16> to vector<8x256xbf16>
    %cst_353 = arith.constant dense<0.000000e+00> : vector<8x128xf32>
    %336 = tpu.matmul %335, %0, %cst_353 {dimension_numbers = #tpu.dot_dimension_numbers<[1], [0], [0], [1], [0, 0, 1, 1], [], []>} : vector<8x256xbf16>, vector<256x128xbf16>, vector<8x128xf32> -> vector<8x128xf32>
    %337 = arith.maximumf %333, %336 : vector<8x128xf32>
    %c13_354 = arith.constant 13 : index
    %c3_355 = arith.constant 3 : index
    %c0_356 = arith.constant 0 : index
    %c0_357 = arith.constant 0 : index
    %338 = vector.load %arg1[%c13_354, %c3_355, %c0_356, %c0_357] : memref<16x4x8x256xbf16, #tpu.memory_space<vmem>>, vector<1x1x8x256xbf16>
    %339 = vector.shape_cast %338 : vector<1x1x8x256xbf16> to vector<8x256xbf16>
    %cst_358 = arith.constant dense<0.000000e+00> : vector<8x128xf32>
    %340 = tpu.matmul %339, %0, %cst_358 {dimension_numbers = #tpu.dot_dimension_numbers<[1], [0], [0], [1], [0, 0, 1, 1], [], []>} : vector<8x256xbf16>, vector<256x128xbf16>, vector<8x128xf32> -> vector<8x128xf32>
    %341 = arith.maximumf %337, %340 : vector<8x128xf32>
    %c0_359 = arith.constant 0 : index
    %c0_360 = arith.constant 0 : index
    %342 = vector.load %arg3[%c0_359, %c0_360] : memref<1x128xf32, #tpu.memory_space<vmem>>, vector<1x128xf32>
    %343 = vector.broadcast %342 : vector<1x128xf32> to vector<8x128xf32>
    %344 = arith.addf %341, %343 : vector<8x128xf32>
    %cst_361 = arith.constant 0.000000e+00 : f32
    %345 = vector.broadcast %cst_361 : f32 to vector<8x128xf32>
    %346 = arith.maximumf %344, %345 : vector<8x128xf32>
    %347 = arith.truncf %346 : vector<8x128xf32> to vector<8x128xbf16>
    %c13_362 = arith.constant 13 : index
    %c0_363 = arith.constant 0 : index
    %c0_364 = arith.constant 0 : index
    %348 = vector.load %arg4[%c13_362, %c0_363, %c0_364] : memref<16x128x128xbf16, #tpu.memory_space<vmem>>, vector<1x128x128xbf16>
    %349 = vector.shape_cast %348 : vector<1x128x128xbf16> to vector<128x128xbf16>
    %cst_365 = arith.constant dense<0.000000e+00> : vector<8x128xf32>
    %350 = tpu.matmul %347, %349, %cst_365 {dimension_numbers = #tpu.dot_dimension_numbers<[1], [0], [0], [1], [0, 0, 1, 1], [], []>} : vector<8x128xbf16>, vector<128x128xbf16>, vector<8x128xf32> -> vector<8x128xf32>
    %351 = arith.addf %326, %350 : vector<8x128xf32>
    %c14 = arith.constant 14 : index
    %c0_366 = arith.constant 0 : index
    %c0_367 = arith.constant 0 : index
    %c0_368 = arith.constant 0 : index
    %352 = vector.load %arg1[%c14, %c0_366, %c0_367, %c0_368] : memref<16x4x8x256xbf16, #tpu.memory_space<vmem>>, vector<1x1x8x256xbf16>
    %353 = vector.shape_cast %352 : vector<1x1x8x256xbf16> to vector<8x256xbf16>
    %cst_369 = arith.constant dense<0.000000e+00> : vector<8x128xf32>
    %354 = tpu.matmul %353, %0, %cst_369 {dimension_numbers = #tpu.dot_dimension_numbers<[1], [0], [0], [1], [0, 0, 1, 1], [], []>} : vector<8x256xbf16>, vector<256x128xbf16>, vector<8x128xf32> -> vector<8x128xf32>
    %c14_370 = arith.constant 14 : index
    %c1_371 = arith.constant 1 : index
    %c0_372 = arith.constant 0 : index
    %c0_373 = arith.constant 0 : index
    %355 = vector.load %arg1[%c14_370, %c1_371, %c0_372, %c0_373] : memref<16x4x8x256xbf16, #tpu.memory_space<vmem>>, vector<1x1x8x256xbf16>
    %356 = vector.shape_cast %355 : vector<1x1x8x256xbf16> to vector<8x256xbf16>
    %cst_374 = arith.constant dense<0.000000e+00> : vector<8x128xf32>
    %357 = tpu.matmul %356, %0, %cst_374 {dimension_numbers = #tpu.dot_dimension_numbers<[1], [0], [0], [1], [0, 0, 1, 1], [], []>} : vector<8x256xbf16>, vector<256x128xbf16>, vector<8x128xf32> -> vector<8x128xf32>
    %358 = arith.maximumf %354, %357 : vector<8x128xf32>
    %c14_375 = arith.constant 14 : index
    %c2_376 = arith.constant 2 : index
    %c0_377 = arith.constant 0 : index
    %c0_378 = arith.constant 0 : index
    %359 = vector.load %arg1[%c14_375, %c2_376, %c0_377, %c0_378] : memref<16x4x8x256xbf16, #tpu.memory_space<vmem>>, vector<1x1x8x256xbf16>
    %360 = vector.shape_cast %359 : vector<1x1x8x256xbf16> to vector<8x256xbf16>
    %cst_379 = arith.constant dense<0.000000e+00> : vector<8x128xf32>
    %361 = tpu.matmul %360, %0, %cst_379 {dimension_numbers = #tpu.dot_dimension_numbers<[1], [0], [0], [1], [0, 0, 1, 1], [], []>} : vector<8x256xbf16>, vector<256x128xbf16>, vector<8x128xf32> -> vector<8x128xf32>
    %362 = arith.maximumf %358, %361 : vector<8x128xf32>
    %c14_380 = arith.constant 14 : index
    %c3_381 = arith.constant 3 : index
    %c0_382 = arith.constant 0 : index
    %c0_383 = arith.constant 0 : index
    %363 = vector.load %arg1[%c14_380, %c3_381, %c0_382, %c0_383] : memref<16x4x8x256xbf16, #tpu.memory_space<vmem>>, vector<1x1x8x256xbf16>
    %364 = vector.shape_cast %363 : vector<1x1x8x256xbf16> to vector<8x256xbf16>
    %cst_384 = arith.constant dense<0.000000e+00> : vector<8x128xf32>
    %365 = tpu.matmul %364, %0, %cst_384 {dimension_numbers = #tpu.dot_dimension_numbers<[1], [0], [0], [1], [0, 0, 1, 1], [], []>} : vector<8x256xbf16>, vector<256x128xbf16>, vector<8x128xf32> -> vector<8x128xf32>
    %366 = arith.maximumf %362, %365 : vector<8x128xf32>
    %c0_385 = arith.constant 0 : index
    %c0_386 = arith.constant 0 : index
    %367 = vector.load %arg3[%c0_385, %c0_386] : memref<1x128xf32, #tpu.memory_space<vmem>>, vector<1x128xf32>
    %368 = vector.broadcast %367 : vector<1x128xf32> to vector<8x128xf32>
    %369 = arith.addf %366, %368 : vector<8x128xf32>
    %cst_387 = arith.constant 0.000000e+00 : f32
    %370 = vector.broadcast %cst_387 : f32 to vector<8x128xf32>
    %371 = arith.maximumf %369, %370 : vector<8x128xf32>
    %372 = arith.truncf %371 : vector<8x128xf32> to vector<8x128xbf16>
    %c14_388 = arith.constant 14 : index
    %c0_389 = arith.constant 0 : index
    %c0_390 = arith.constant 0 : index
    %373 = vector.load %arg4[%c14_388, %c0_389, %c0_390] : memref<16x128x128xbf16, #tpu.memory_space<vmem>>, vector<1x128x128xbf16>
    %374 = vector.shape_cast %373 : vector<1x128x128xbf16> to vector<128x128xbf16>
    %cst_391 = arith.constant dense<0.000000e+00> : vector<8x128xf32>
    %375 = tpu.matmul %372, %374, %cst_391 {dimension_numbers = #tpu.dot_dimension_numbers<[1], [0], [0], [1], [0, 0, 1, 1], [], []>} : vector<8x128xbf16>, vector<128x128xbf16>, vector<8x128xf32> -> vector<8x128xf32>
    %376 = arith.addf %351, %375 : vector<8x128xf32>
    %c15 = arith.constant 15 : index
    %c0_392 = arith.constant 0 : index
    %c0_393 = arith.constant 0 : index
    %c0_394 = arith.constant 0 : index
    %377 = vector.load %arg1[%c15, %c0_392, %c0_393, %c0_394] : memref<16x4x8x256xbf16, #tpu.memory_space<vmem>>, vector<1x1x8x256xbf16>
    %378 = vector.shape_cast %377 : vector<1x1x8x256xbf16> to vector<8x256xbf16>
    %cst_395 = arith.constant dense<0.000000e+00> : vector<8x128xf32>
    %379 = tpu.matmul %378, %0, %cst_395 {dimension_numbers = #tpu.dot_dimension_numbers<[1], [0], [0], [1], [0, 0, 1, 1], [], []>} : vector<8x256xbf16>, vector<256x128xbf16>, vector<8x128xf32> -> vector<8x128xf32>
    %c15_396 = arith.constant 15 : index
    %c1_397 = arith.constant 1 : index
    %c0_398 = arith.constant 0 : index
    %c0_399 = arith.constant 0 : index
    %380 = vector.load %arg1[%c15_396, %c1_397, %c0_398, %c0_399] : memref<16x4x8x256xbf16, #tpu.memory_space<vmem>>, vector<1x1x8x256xbf16>
    %381 = vector.shape_cast %380 : vector<1x1x8x256xbf16> to vector<8x256xbf16>
    %cst_400 = arith.constant dense<0.000000e+00> : vector<8x128xf32>
    %382 = tpu.matmul %381, %0, %cst_400 {dimension_numbers = #tpu.dot_dimension_numbers<[1], [0], [0], [1], [0, 0, 1, 1], [], []>} : vector<8x256xbf16>, vector<256x128xbf16>, vector<8x128xf32> -> vector<8x128xf32>
    %383 = arith.maximumf %379, %382 : vector<8x128xf32>
    %c15_401 = arith.constant 15 : index
    %c2_402 = arith.constant 2 : index
    %c0_403 = arith.constant 0 : index
    %c0_404 = arith.constant 0 : index
    %384 = vector.load %arg1[%c15_401, %c2_402, %c0_403, %c0_404] : memref<16x4x8x256xbf16, #tpu.memory_space<vmem>>, vector<1x1x8x256xbf16>
    %385 = vector.shape_cast %384 : vector<1x1x8x256xbf16> to vector<8x256xbf16>
    %cst_405 = arith.constant dense<0.000000e+00> : vector<8x128xf32>
    %386 = tpu.matmul %385, %0, %cst_405 {dimension_numbers = #tpu.dot_dimension_numbers<[1], [0], [0], [1], [0, 0, 1, 1], [], []>} : vector<8x256xbf16>, vector<256x128xbf16>, vector<8x128xf32> -> vector<8x128xf32>
    %387 = arith.maximumf %383, %386 : vector<8x128xf32>
    %c15_406 = arith.constant 15 : index
    %c3_407 = arith.constant 3 : index
    %c0_408 = arith.constant 0 : index
    %c0_409 = arith.constant 0 : index
    %388 = vector.load %arg1[%c15_406, %c3_407, %c0_408, %c0_409] : memref<16x4x8x256xbf16, #tpu.memory_space<vmem>>, vector<1x1x8x256xbf16>
    %389 = vector.shape_cast %388 : vector<1x1x8x256xbf16> to vector<8x256xbf16>
    %cst_410 = arith.constant dense<0.000000e+00> : vector<8x128xf32>
    %390 = tpu.matmul %389, %0, %cst_410 {dimension_numbers = #tpu.dot_dimension_numbers<[1], [0], [0], [1], [0, 0, 1, 1], [], []>} : vector<8x256xbf16>, vector<256x128xbf16>, vector<8x128xf32> -> vector<8x128xf32>
    %391 = arith.maximumf %387, %390 : vector<8x128xf32>
    %c0_411 = arith.constant 0 : index
    %c0_412 = arith.constant 0 : index
    %392 = vector.load %arg3[%c0_411, %c0_412] : memref<1x128xf32, #tpu.memory_space<vmem>>, vector<1x128xf32>
    %393 = vector.broadcast %392 : vector<1x128xf32> to vector<8x128xf32>
    %394 = arith.addf %391, %393 : vector<8x128xf32>
    %cst_413 = arith.constant 0.000000e+00 : f32
    %395 = vector.broadcast %cst_413 : f32 to vector<8x128xf32>
    %396 = arith.maximumf %394, %395 : vector<8x128xf32>
    %397 = arith.truncf %396 : vector<8x128xf32> to vector<8x128xbf16>
    %c15_414 = arith.constant 15 : index
    %c0_415 = arith.constant 0 : index
    %c0_416 = arith.constant 0 : index
    %398 = vector.load %arg4[%c15_414, %c0_415, %c0_416] : memref<16x128x128xbf16, #tpu.memory_space<vmem>>, vector<1x128x128xbf16>
    %399 = vector.shape_cast %398 : vector<1x128x128xbf16> to vector<128x128xbf16>
    %cst_417 = arith.constant dense<0.000000e+00> : vector<8x128xf32>
    %400 = tpu.matmul %397, %399, %cst_417 {dimension_numbers = #tpu.dot_dimension_numbers<[1], [0], [0], [1], [0, 0, 1, 1], [], []>} : vector<8x128xbf16>, vector<128x128xbf16>, vector<8x128xf32> -> vector<8x128xf32>
    %401 = arith.addf %376, %400 : vector<8x128xf32>
    %c0_418 = arith.constant 0 : index
    %c0_419 = arith.constant 0 : index
    %402 = vector.load %arg5[%c0_418, %c0_419] : memref<1x128xf32, #tpu.memory_space<vmem>>, vector<1x128xf32>
    %403 = vector.broadcast %402 : vector<1x128xf32> to vector<8x128xf32>
    %404 = arith.addf %401, %403 : vector<8x128xf32>
    %cst_420 = arith.constant 0.000000e+00 : f32
    %405 = vector.broadcast %cst_420 : f32 to vector<8x128xf32>
    %406 = arith.maximumf %404, %405 : vector<8x128xf32>
    %407 = arith.truncf %406 : vector<8x128xf32> to vector<8x128xbf16>
    %c0_421 = arith.constant 0 : index
    %c0_422 = arith.constant 0 : index
    %408 = vector.load %arg6[%c0_421, %c0_422] : memref<128x128xbf16, #tpu.memory_space<vmem>>, vector<128x128xbf16>
    %cst_423 = arith.constant dense<0.000000e+00> : vector<8x128xf32>
    %409 = tpu.matmul %407, %408, %cst_423 {dimension_numbers = #tpu.dot_dimension_numbers<[1], [0], [0], [1], [0, 0, 1, 1], [], []>} : vector<8x128xbf16>, vector<128x128xbf16>, vector<8x128xf32> -> vector<8x128xf32>
    %c0_424 = arith.constant 0 : index
    %c0_425 = arith.constant 0 : index
    %410 = vector.load %arg7[%c0_424, %c0_425] : memref<1x128xf32, #tpu.memory_space<vmem>>, vector<1x128xf32>
    %411 = vector.broadcast %410 : vector<1x128xf32> to vector<8x128xf32>
    %412 = arith.addf %409, %411 : vector<8x128xf32>
    %413 = tpu.iota {dimensions = array<i32: 1>} : vector<8x128xi32>
    %c10_i32 = arith.constant 10 : i32
    %414 = vector.broadcast %c10_i32 : i32 to vector<8x128xi32>
    %415 = arith.cmpi slt, %413, %414 : vector<8x128xi32>
    %cst_426 = arith.constant 0xFF800000 : f32
    %416 = vector.broadcast %cst_426 : f32 to vector<8x128xf32>
    %417 = arith.select %415, %412, %416 : vector<8x128xi1>, vector<8x128xf32>
    %cst_427 = arith.constant dense<0xFF800000> : vector<8xf32>
    %418 = vector.multi_reduction <maximumf>, %417, %cst_427 [1] : vector<8x128xf32> to vector<8xf32>
    %419 = vector.shape_cast %418 : vector<8xf32> to vector<8x1xf32>
    %420 = vector.broadcast %419 : vector<8x1xf32> to vector<8x128xf32>
    %421 = arith.subf %417, %420 : vector<8x128xf32>
    %422 = math.exp %421 : vector<8x128xf32>
    %cst_428 = arith.constant dense<0.000000e+00> : vector<8xf32>
    %423 = vector.multi_reduction <add>, %422, %cst_428 [1] : vector<8x128xf32> to vector<8xf32>
    %424 = vector.shape_cast %423 : vector<8xf32> to vector<8x1xf32>
    %425 = math.log %424 : vector<8x1xf32>
    %426 = arith.addf %419, %425 : vector<8x1xf32>
    %427 = vector.broadcast %426 : vector<8x1xf32> to vector<8x128xf32>
    %428 = arith.subf %417, %427 : vector<8x128xf32>
    %c0_429 = arith.constant 0 : index
    %c0_430 = arith.constant 0 : index
    %429 = vector.load %arg8[%c0_429, %c0_430] : memref<8x128xf32, #tpu.memory_space<vmem>>, vector<8x128xf32>
    tpu.vector_store %arg8[%c0_429, %c0_430], %428 {strides = array<i32>} : memref<8x128xf32, #tpu.memory_space<vmem>>, vector<8x128xf32>,
    return
  }
  func.func @transform_0(%arg0: i32) -> (i32, i32, i32, i32) {
    %c0_i32 = arith.constant 0 : i32
    %c0_i32_0 = arith.constant 0 : i32
    %c0_i32_1 = arith.constant 0 : i32
    %c0_i32_2 = arith.constant 0 : i32
    return %c0_i32, %c0_i32_0, %arg0, %c0_i32_1 : i32, i32, i32, i32
  }
  func.func @transform_1(%arg0: i32) -> (i32, i32) {
    %c0_i32 = arith.constant 0 : i32
    %c0_i32_0 = arith.constant 0 : i32
    %c0_i32_1 = arith.constant 0 : i32
    return %c0_i32, %c0_i32_0 : i32, i32
  }
  func.func @transform_2(%arg0: i32) -> (i32, i32) {
    %c0_i32 = arith.constant 0 : i32
    %c0_i32_0 = arith.constant 0 : i32
    %c0_i32_1 = arith.constant 0 : i32
    return %c0_i32, %c0_i32_0 : i32, i32
  }
  func.func @transform_3(%arg0: i32) -> (i32, i32, i32) {
    %c0_i32 = arith.constant 0 : i32
    %c0_i32_0 = arith.constant 0 : i32
    %c0_i32_1 = arith.constant 0 : i32
    %c0_i32_2 = arith.constant 0 : i32
    return %c0_i32, %c0_i32_0, %c0_i32_1 : i32, i32, i32
  }
  func.func @transform_4(%arg0: i32) -> (i32, i32) {
    %c0_i32 = arith.constant 0 : i32
    %c0_i32_0 = arith.constant 0 : i32
    %c0_i32_1 = arith.constant 0 : i32
    return %c0_i32, %c0_i32_0 : i32, i32
  }
  func.func @transform_5(%arg0: i32) -> (i32, i32) {
    %c0_i32 = arith.constant 0 : i32
    %c0_i32_0 = arith.constant 0 : i32
    %c0_i32_1 = arith.constant 0 : i32
    return %c0_i32, %c0_i32_0 : i32, i32
  }
  func.func @transform_6(%arg0: i32) -> (i32, i32) {
    %c0_i32 = arith.constant 0 : i32
    %c0_i32_0 = arith.constant 0 : i32
    %c0_i32_1 = arith.constant 0 : i32
    return %c0_i32, %c0_i32_0 : i32, i32
  }
  func.func @transform_7(%arg0: i32) -> (i32, i32) {
    %c0_i32 = arith.constant 0 : i32
    %c0_i32_0 = arith.constant 0 : i32
    return %arg0, %c0_i32 : i32, i32
  }
}

</mosaic_0001>

<llo_original>
// kernel: my_network_forward.2
$region0: #{my_network_forward.2}
  #allocation0 [shape = 'u32[]', space=smem, size = 0x4, offset = 0x4, fixed_abs, tag = 'smem constant byte address 0x4 - core index']
  #allocation1 [shape = 'u32[72,128]{1,0:T(1,128)}', space=vmem, size = 0x9000, scoped, tag = 'internal scratch']
  %s0 = inlined_call_operand.vmem [shape: bf16[4,288,32], index: 0, kind: input, shape index: {}]
  %s1 = inlined_call_operand.vmem [shape: bf16[32,128], index: 1, kind: input, shape index: {}]
  %s2 = inlined_call_operand.vmem [shape: f32[1,128], index: 2, kind: input, shape index: {}]
  %s3 = inlined_call_operand.vmem [shape: bf16[288,128], index: 3, kind: output, shape index: {}]
  %s4 = sld [smem:[#allocation0]]
  $region86: #{my_network_forward.2} parent=0
    _
  %s6 = ssub.s32 1, %s4
  %s7 = scalar_select 0, %s6, %s4
  $region1: #{my_network_forward.2} parent=0
    #allocation2 [shape = 'u8[294912]{0}', space=vmem, size = 0x48000, scoped, tag = 'input window, operand 0']
    loop: start=0, step=1, limit=4
    $region2: #{my_network_forward.2} parent=1 // loop_pre_header
      _
    $region3: #{my_network_forward.2} parent=1 // loop_header
      %s9 = sphi 0, %s13
      %p10 = scmp.ge.s32.totalorder %s9, 4
      %s19 = sphi 0, %s21
      %s22 = sphi 0, %s19
      %s23 = sphi 0, %s22
      %s39 = sphi 0, %s23
      %s43 = sphi 0, %s43
      %s45 = sphi 0, %s43
      %s46 = sphi 0, %s45
      %s60 = sphi 0, %s46
      %s64 = sphi 0, %s64
      %s66 = sphi 0, %s64
      %s67 = sphi 0, %s66
      %s81 = sphi 0, %s67
      %s87 = sphi 0, %s89
      %s90 = sphi 0, %s87
      %s91 = sphi 0, %s90
      %s107 = sphi 0, %s91
    $region4: #{my_network_forward.2} parent=1 // loop_header_branch
      %12 = sbr.rel (%p10) target = $region8
    $region5: #{my_network_forward.2} parent=1 // loop_body
      %s14 = ssub.s32 %s9, 1
      %s15 = ssub.s32 %s9, 2
      %s16 = sadd.s32 %s9, 1
      %s17 = ssub.s32 %s9, %s16
      %p18 = scmp.eq.s32.totalorder %s17, 0
      %s20 = sadd.s32 %s19, 1
      %s21 = scalar_select %p18, %s19, %s20
      %p24 = pneg %p18
      %p25 = scmp.eq.s32.totalorder %s9, 1
      %p26 = por %p24, %p25
      %p27 = scmp.ne.s32.totalorder %s19, %s22
      %p28 = scmp.eq.s32.totalorder %s9, 0
      %p29 = por %p27, %p28
      %p30 = scmp.ne.s32.totalorder %s19, %s22
      %p31 = scmp.eq.s32.totalorder %s14, 1
      %p32 = por %p30, %p31
      %p33 = scmp.ne.s32.totalorder %s22, %s23
      %p34 = scmp.eq.s32.totalorder %s14, 0
      %p35 = por %p33, %p34
      %p36 = scmp.ne.s32.totalorder %s22, %s23
      %p37 = scmp.eq.s32.totalorder %s15, 1
      %p38 = por %p36, %p37
      %p40 = scmp.ne.s32.totalorder %s23, %s39
      %p41 = scmp.eq.s32.totalorder %s15, 0
      %p42 = por %p40, %p41
      %s44 = sadd.s32 %s43, 1
      %p47 = scmp.eq.s32.totalorder %s9, 1
      %p48 = scmp.ne.s32.totalorder %s43, %s45
      %p49 = scmp.eq.s32.totalorder %s9, 0
      %p50 = por %p48, %p49
      %p51 = scmp.ne.s32.totalorder %s43, %s45
      %p52 = scmp.eq.s32.totalorder %s14, 1
      %p53 = por %p51, %p52
      %p54 = scmp.ne.s32.totalorder %s45, %s46
      %p55 = scmp.eq.s32.totalorder %s14, 0
      %p56 = por %p54, %p55
      %p57 = scmp.ne.s32.totalorder %s45, %s46
      %p58 = scmp.eq.s32.totalorder %s15, 1
      %p59 = por %p57, %p58
      %p61 = scmp.ne.s32.totalorder %s46, %s60
      %p62 = scmp.eq.s32.totalorder %s15, 0
      %p63 = por %p61, %p62
      %s65 = sadd.s32 %s64, 1
      %p68 = scmp.eq.s32.totalorder %s9, 1
      %p69 = scmp.ne.s32.totalorder %s64, %s66
      %p70 = scmp.eq.s32.totalorder %s9, 0
      %p71 = por %p69, %p70
      %p72 = scmp.ne.s32.totalorder %s64, %s66
      %p73 = scmp.eq.s32.totalorder %s14, 1
      %p74 = por %p72, %p73
      %p75 = scmp.ne.s32.totalorder %s66, %s67
      %p76 = scmp.eq.s32.totalorder %s14, 0
      %p77 = por %p75, %p76
      %p78 = scmp.ne.s32.totalorder %s66, %s67
      %p79 = scmp.eq.s32.totalorder %s15, 1
      %p80 = por %p78, %p79
      %p82 = scmp.ne.s32.totalorder %s67, %s81
      %p83 = scmp.eq.s32.totalorder %s15, 0
      %p84 = por %p82, %p83
      %s85 = ssub.s32 %s9, %s16
      %p86 = scmp.eq.s32.totalorder %s85, 0
      %s88 = sadd.s32 %s87, 1
      %s89 = scalar_select %p86, %s87, %s88
      %p92 = pneg %p86
      %p93 = scmp.eq.s32.totalorder %s9, 1
      %p94 = por %p92, %p93
      %p95 = scmp.ne.s32.totalorder %s87, %s90
      %p96 = scmp.eq.s32.totalorder %s9, 0
      %p97 = por %p95, %p96
      %p98 = scmp.ne.s32.totalorder %s87, %s90
      %p99 = scmp.eq.s32.totalorder %s14, 1
      %p100 = por %p98, %p99
      %p101 = scmp.ne.s32.totalorder %s90, %s91
      %p102 = scmp.eq.s32.totalorder %s14, 0
      %p103 = por %p101, %p102
      %p104 = scmp.ne.s32.totalorder %s90, %s91
      %p105 = scmp.eq.s32.totalorder %s15, 1
      %p106 = por %p104, %p105
      %p108 = scmp.ne.s32.totalorder %s91, %s107
      %p109 = scmp.eq.s32.totalorder %s15, 0
      %p110 = por %p108, %p109
      %p111 = scmp.le.s32.totalorder 1, %s9
      %p112 = scmp.lt.s32.totalorder %s9, 3
      %p113 = pnand %p111, %p112
      %p114 = pneg %p113
      // Predicated region
      $region9: #{my_network_forward.2} parent=5 // pred_check
        _
      $region10: #{my_network_forward.2} parent=5 // pred_check_branch
        %116 = sbr.rel (%p113) target = $region12
      $region11: #{my_network_forward.2} parent=5 // pred_region
        %s117 = ssub.s32 %s9, 1
        // Predicated region
        $region13: #{my_network_forward.2} parent=11 // pred_check
          %p118 = pneg %p56
        $region14: #{my_network_forward.2} parent=11 // pred_check_branch
          %120 = sbr.rel (%p118) target = $region16
        $region15: #{my_network_forward.2} parent=11 // pred_region
          _
        $region16: #{my_network_forward.2} parent=11 // pred_fallthru
          _
        // Predicated region
        $region17: #{my_network_forward.2} parent=11 // pred_check
          %p121 = pneg %p77
        $region18: #{my_network_forward.2} parent=11 // pred_check_branch
          %123 = sbr.rel (%p121) target = $region20
        $region19: #{my_network_forward.2} parent=11 // pred_region
          _
        $region20: #{my_network_forward.2} parent=11 // pred_fallthru
          _
      $region12: #{my_network_forward.2} parent=5 // pred_fallthru
        _
      %p124 = scmp.lt.s32.totalorder %s9, 2
      // Predicated region
      $region21: #{my_network_forward.2} parent=5 // pred_check
        %p125 = pneg %p124
      $region22: #{my_network_forward.2} parent=5 // pred_check_branch
        %127 = sbr.rel (%p125) target = $region24
      $region23: #{my_network_forward.2} parent=5 // pred_region
        // Predicated region
        $region25: #{my_network_forward.2} parent=23 // pred_check
          %p128 = pneg %p29
        $region26: #{my_network_forward.2} parent=23 // pred_check_branch
          %130 = sbr.rel (%p128) target = $region28
        $region27: #{my_network_forward.2} parent=23 // pred_region
          %s131 = sand.u32 %s19, 1
          %s132 = sand.u32 %s19, 1
          %s133 = smul.addr %s132, 288
          %s134 = scalar_lea.vmem [#allocation2], %s133
          %s135 = smul.u32 18, %s9
          %s136 = smul.addr %s135, 4
          %s137 = scalar_lea.vmem %s0, %s136
          // Predicated region
          $region29: #{my_network_forward.2} parent=27 // pred_check
            _
          $region30: #{my_network_forward.2} parent=27 // pred_check_branch
            %139 = sbr.rel (0) target = $region32
          $region31: #{my_network_forward.2} parent=27 // pred_region
            // Predicated region
            $region33: #{my_network_forward.2} parent=31 // pred_check
              _
            $region34: #{my_network_forward.2} parent=31 // pred_check_branch
              %141 = sbr.rel target = $region36
            $region35: #{my_network_forward.2} parent=31 // pred_region
              // Predicated region
              $region48: #{my_network_forward.2} parent=35 // pred_check
                _
              $region49: #{my_network_forward.2} parent=35 // pred_check_branch
                %299 = sbr.rel (0) target = $region51
              $region50: #{my_network_forward.2} parent=35 // pred_region
                loop: start=0, step=1, limit=1
                $region52: #{my_network_forward.2} parent=50 // loop_pre_header
                  _
                $region53: #{my_network_forward.2} parent=50 // loop_header
                  %s301 = sphi 0, %s305
                  %p302 = scmp.ge.s32.totalorder %s301, 1
                  %s306 = sphi %s137, %s137
                  %s307 = sphi %s134, %s134
                $region54: #{my_network_forward.2} parent=50 // loop_header_branch
                  %304 = sbr.rel (%p302) target = $region58
                $region55: #{my_network_forward.2} parent=50 // loop_body
                  _
                $region56: #{my_network_forward.2} parent=50 // loop_footer
                  %s305 = sadd.s32 1, %s301
                $region57: #{my_network_forward.2} parent=50 // loop_footer_branch
                  %300 = sbr.rel target = $region53
                $region58: #{my_network_forward.2} parent=50 // loop_exit
                  _
                %s309 = ssub.s32 16, 1
                loop: start=0, step=1, limit=1
                $region59: #{my_network_forward.2} parent=50 // loop_pre_header
                  _
                $region60: #{my_network_forward.2} parent=50 // loop_header
                  %s311 = sphi 0, %s315
                  %p312 = scmp.ge.s32.totalorder %s311, 1
                  %s316 = sphi %s137, %s137
                  %s317 = sphi %s134, %s134
                $region61: #{my_network_forward.2} parent=50 // loop_header_branch
                  %314 = sbr.rel (%p312) target = $region65
                $region62: #{my_network_forward.2} parent=50 // loop_body
                  %v318 = vld [vmem:[%s316] sm:%s309]
                  %319 = vst [vmem:[%s317] sm:%s309] %v318
                  %v320 = vld [vmem:[%s316 + $0x4] sm:%s309]
                  %321 = vst [vmem:[%s317 + $0x4] sm:%s309] %v320
                  %v322 = vld [vmem:[%s316 + $0x8] sm:%s309]
                  %323 = vst [vmem:[%s317 + $0x8] sm:%s309] %v322
                  %v324 = vld [vmem:[%s316 + $0xc] sm:%s309]
                  %325 = vst [vmem:[%s317 + $0xc] sm:%s309] %v324
                  %v326 = vld [vmem:[%s316 + $0x10] sm:%s309]
                  %327 = vst [vmem:[%s317 + $0x10] sm:%s309] %v326
                  %v328 = vld [vmem:[%s316 + $0x14] sm:%s309]
                  %329 = vst [vmem:[%s317 + $0x14] sm:%s309] %v328
                  %v330 = vld [vmem:[%s316 + $0x18] sm:%s309]
                  %331 = vst [vmem:[%s317 + $0x18] sm:%s309] %v330
                  %v332 = vld [vmem:[%s316 + $0x1c] sm:%s309]
                  %333 = vst [vmem:[%s317 + $0x1c] sm:%s309] %v332
                  %v334 = vld [vmem:[%s316 + $0x20] sm:%s309]
                  %335 = vst [vmem:[%s317 + $0x20] sm:%s309] %v334
                  %v336 = vld [vmem:[%s316 + $0x24] sm:%s309]
                  %337 = vst [vmem:[%s317 + $0x24] sm:%s309] %v336
                  %v338 = vld [vmem:[%s316 + $0x28] sm:%s309]
                  %339 = vst [vmem:[%s317 + $0x28] sm:%s309] %v338
                  %v340 = vld [vmem:[%s316 + $0x2c] sm:%s309]
                  %341 = vst [vmem:[%s317 + $0x2c] sm:%s309] %v340
                  %v342 = vld [vmem:[%s316 + $0x30] sm:%s309]
                  %343 = vst [vmem:[%s317 + $0x30] sm:%s309] %v342
                  %v344 = vld [vmem:[%s316 + $0x34] sm:%s309]
                  %345 = vst [vmem:[%s317 + $0x34] sm:%s309] %v344
                  %v346 = vld [vmem:[%s316 + $0x38] sm:%s309]
                  %347 = vst [vmem:[%s317 + $0x38] sm:%s309] %v346
                  %v348 = vld [vmem:[%s316 + $0x3c] sm:%s309]
                  %349 = vst [vmem:[%s317 + $0x3c] sm:%s309] %v348
                  %v350 = vld [vmem:[%s316 + $0x40] sm:%s309]
                  %351 = vst [vmem:[%s317 + $0x40] sm:%s309] %v350
                  %v352 = vld [vmem:[%s316 + $0x44] sm:%s309]
                  %353 = vst [vmem:[%s317 + $0x44] sm:%s309] %v352
                  %v354 = vld [vmem:[%s316 + $0x90] sm:%s309]
                  %355 = vst [vmem:[%s317 + $0x48] sm:%s309] %v354
                  %v356 = vld [vmem:[%s316 + $0x94] sm:%s309]
                  %357 = vst [vmem:[%s317 + $0x4c] sm:%s309] %v356
                  %v358 = vld [vmem:[%s316 + $0x98] sm:%s309]
                  %359 = vst [vmem:[%s317 + $0x50] sm:%s309] %v358
                  %v360 = vld [vmem:[%s316 + $0x9c] sm:%s309]
                  %361 = vst [vmem:[%s317 + $0x54] sm:%s309] %v360
                  %v362 = vld [vmem:[%s316 + $0xa0] sm:%s309]
                  %363 = vst [vmem:[%s317 + $0x58] sm:%s309] %v362
                  %v364 = vld [vmem:[%s316 + $0xa4] sm:%s309]
                  %365 = vst [vmem:[%s317 + $0x5c] sm:%s309] %v364
                  %v366 = vld [vmem:[%s316 + $0xa8] sm:%s309]
                  %367 = vst [vmem:[%s317 + $0x60] sm:%s309] %v366
                  %v368 = vld [vmem:[%s316 + $0xac] sm:%s309]
                  %369 = vst [vmem:[%s317 + $0x64] sm:%s309] %v368
                  %v370 = vld [vmem:[%s316 + $0xb0] sm:%s309]
                  %371 = vst [vmem:[%s317 + $0x68] sm:%s309] %v370
                  %v372 = vld [vmem:[%s316 + $0xb4] sm:%s309]
                  %373 = vst [vmem:[%s317 + $0x6c] sm:%s309] %v372
                  %v374 = vld [vmem:[%s316 + $0xb8] sm:%s309]
                  %375 = vst [vmem:[%s317 + $0x70] sm:%s309] %v374
                  %v376 = vld [vmem:[%s316 + $0xbc] sm:%s309]
                  %377 = vst [vmem:[%s317 + $0x74] sm:%s309] %v376
                  %v378 = vld [vmem:[%s316 + $0xc0] sm:%s309]
                  %379 = vst [vmem:[%s317 + $0x78] sm:%s309] %v378
                  %v380 = vld [vmem:[%s316 + $0xc4] sm:%s309]
                  %381 = vst [vmem:[%s317 + $0x7c] sm:%s309] %v380
                  %v382 = vld [vmem:[%s316 + $0xc8] sm:%s309]
                  %383 = vst [vmem:[%s317 + $0x80] sm:%s309] %v382
                  %v384 = vld [vmem:[%s316 + $0xcc] sm:%s309]
                  %385 = vst [vmem:[%s317 + $0x84] sm:%s309] %v384
                  %v386 = vld [vmem:[%s316 + $0xd0] sm:%s309]
                  %387 = vst [vmem:[%s317 + $0x88] sm:%s309] %v386
                  %v388 = vld [vmem:[%s316 + $0xd4] sm:%s309]
                  %389 = vst [vmem:[%s317 + $0x8c] sm:%s309] %v388
                  %v390 = vld [vmem:[%s316 + $0x120] sm:%s309]
                  %391 = vst [vmem:[%s317 + $0x90] sm:%s309] %v390
                  %v392 = vld [vmem:[%s316 + $0x124] sm:%s309]
                  %393 = vst [vmem:[%s317 + $0x94] sm:%s309] %v392
                  %v394 = vld [vmem:[%s316 + $0x128] sm:%s309]
                  %395 = vst [vmem:[%s317 + $0x98] sm:%s309] %v394
                  %v396 = vld [vmem:[%s316 + $0x12c] sm:%s309]
                  %397 = vst [vmem:[%s317 + $0x9c] sm:%s309] %v396
                  %v398 = vld [vmem:[%s316 + $0x130] sm:%s309]
                  %399 = vst [vmem:[%s317 + $0xa0] sm:%s309] %v398
                  %v400 = vld [vmem:[%s316 + $0x134] sm:%s309]
                  %401 = vst [vmem:[%s317 + $0xa4] sm:%s309] %v400
                  %v402 = vld [vmem:[%s316 + $0x138] sm:%s309]
                  %403 = vst [vmem:[%s317 + $0xa8] sm:%s309] %v402
                  %v404 = vld [vmem:[%s316 + $0x13c] sm:%s309]
                  %405 = vst [vmem:[%s317 + $0xac] sm:%s309] %v404
                  %v406 = vld [vmem:[%s316 + $0x140] sm:%s309]
                  %407 = vst [vmem:[%s317 + $0xb0] sm:%s309] %v406
                  %v408 = vld [vmem:[%s316 + $0x144] sm:%s309]
                  %409 = vst [vmem:[%s317 + $0xb4] sm:%s309] %v408
                  %v410 = vld [vmem:[%s316 + $0x148] sm:%s309]
                  %411 = vst [vmem:[%s317 + $0xb8] sm:%s309] %v410
                  %v412 = vld [vmem:[%s316 + $0x14c] sm:%s309]
                  %413 = vst [vmem:[%s317 + $0xbc] sm:%s309] %v412
                  %v414 = vld [vmem:[%s316 + $0x150] sm:%s309]
                  %415 = vst [vmem:[%s317 + $0xc0] sm:%s309] %v414
                  %v416 = vld [vmem:[%s316 + $0x154] sm:%s309]
                  %417 = vst [vmem:[%s317 + $0xc4] sm:%s309] %v416
                  %v418 = vld [vmem:[%s316 + $0x158] sm:%s309]
                  %419 = vst [vmem:[%s317 + $0xc8] sm:%s309] %v418
                  %v420 = vld [vmem:[%s316 + $0x15c] sm:%s309]
                  %421 = vst [vmem:[%s317 + $0xcc] sm:%s309] %v420
                  %v422 = vld [vmem:[%s316 + $0x160] sm:%s309]
                  %423 = vst [vmem:[%s317 + $0xd0] sm:%s309] %v422
                  %v424 = vld [vmem:[%s316 + $0x164] sm:%s309]
                  %425 = vst [vmem:[%s317 + $0xd4] sm:%s309] %v424
                  %v426 = vld [vmem:[%s316 + $0x1b0] sm:%s309]
                  %427 = vst [vmem:[%s317 + $0xd8] sm:%s309] %v426
                  %v428 = vld [vmem:[%s316 + $0x1b4] sm:%s309]
                  %429 = vst [vmem:[%s317 + $0xdc] sm:%s309] %v428
                  %v430 = vld [vmem:[%s316 + $0x1b8] sm:%s309]
                  %431 = vst [vmem:[%s317 + $0xe0] sm:%s309] %v430
                  %v432 = vld [vmem:[%s316 + $0x1bc] sm:%s309]
                  %433 = vst [vmem:[%s317 + $0xe4] sm:%s309] %v432
                  %v434 = vld [vmem:[%s316 + $0x1c0] sm:%s309]
                  %435 = vst [vmem:[%s317 + $0xe8] sm:%s309] %v434
                  %v436 = vld [vmem:[%s316 + $0x1c4] sm:%s309]
                  %437 = vst [vmem:[%s317 + $0xec] sm:%s309] %v436
                  %v438 = vld [vmem:[%s316 + $0x1c8] sm:%s309]
                  %439 = vst [vmem:[%s317 + $0xf0] sm:%s309] %v438
                  %v440 = vld [vmem:[%s316 + $0x1cc] sm:%s309]
                  %441 = vst [vmem:[%s317 + $0xf4] sm:%s309] %v440
                  %v442 = vld [vmem:[%s316 + $0x1d0] sm:%s309]
                  %443 = vst [vmem:[%s317 + $0xf8] sm:%s309] %v442
                  %v444 = vld [vmem:[%s316 + $0x1d4] sm:%s309]
                  %445 = vst [vmem:[%s317 + $0xfc] sm:%s309] %v444
                  %v446 = vld [vmem:[%s316 + $0x1d8] sm:%s309]
                  %447 = vst [vmem:[%s317 + $0x100] sm:%s309] %v446
                  %v448 = vld [vmem:[%s316 + $0x1dc] sm:%s309]
                  %449 = vst [vmem:[%s317 + $0x104] sm:%s309] %v448
                  %v450 = vld [vmem:[%s316 + $0x1e0] sm:%s309]
                  %451 = vst [vmem:[%s317 + $0x108] sm:%s309] %v450
                  %v452 = vld [vmem:[%s316 + $0x1e4] sm:%s309]
                  %453 = vst [vmem:[%s317 + $0x10c] sm:%s309] %v452
                  %v454 = vld [vmem:[%s316 + $0x1e8] sm:%s309]
                  %455 = vst [vmem:[%s317 + $0x110] sm:%s309] %v454
                  %v456 = vld [vmem:[%s316 + $0x1ec] sm:%s309]
                  %457 = vst [vmem:[%s317 + $0x114] sm:%s309] %v456
                  %v458 = vld [vmem:[%s316 + $0x1f0] sm:%s309]
                  %459 = vst [vmem:[%s317 + $0x118] sm:%s309] %v458
                  %v460 = vld [vmem:[%s316 + $0x1f4] sm:%s309]
                  %461 = vst [vmem:[%s317 + $0x11c] sm:%s309] %v460
                $region63: #{my_network_forward.2} parent=50 // loop_footer
                  %s315 = sadd.s32 1, %s311
                $region64: #{my_network_forward.2} parent=50 // loop_footer_branch
                  %310 = sbr.rel target = $region60
                $region65: #{my_network_forward.2} parent=50 // loop_exit
                  _
              $region51: #{my_network_forward.2} parent=35 // pred_fallthru
                _
            $region36: #{my_network_forward.2} parent=31 // pred_fallthru
              _
            // Predicated region
            $region37: #{my_network_forward.2} parent=31 // pred_check
              _
            $region38: #{my_network_forward.2} parent=31 // pred_check_branch
              %143 = sbr.rel (0) target = $region40
            $region39: #{my_network_forward.2} parent=31 // pred_region
              %s145 = ssub.s32 16, 1
              loop: start=0, step=1, limit=1
              $region41: #{my_network_forward.2} parent=39 // loop_pre_header
                _
              $region42: #{my_network_forward.2} parent=39 // loop_header
                %s147 = sphi 0, %s151
                %p148 = scmp.ge.s32.totalorder %s147, 1
                %s152 = sphi %s137, %s137
                %s153 = sphi %s134, %s134
              $region43: #{my_network_forward.2} parent=39 // loop_header_branch
                %150 = sbr.rel (%p148) target = $region47
              $region44: #{my_network_forward.2} parent=39 // loop_body
                %v154 = vld [vmem:[%s152] sm:%s145]
                %155 = vst [vmem:[%s153] sm:%s145] %v154
                %v156 = vld [vmem:[%s152 + $0x4] sm:%s145]
                %157 = vst [vmem:[%s153 + $0x4] sm:%s145] %v156
                %v158 = vld [vmem:[%s152 + $0x8] sm:%s145]
                %159 = vst [vmem:[%s153 + $0x8] sm:%s145] %v158
                %v160 = vld [vmem:[%s152 + $0xc] sm:%s145]
                %161 = vst [vmem:[%s153 + $0xc] sm:%s145] %v160
                %v162 = vld [vmem:[%s152 + $0x10] sm:%s145]
                %163 = vst [vmem:[%s153 + $0x10] sm:%s145] %v162
                %v164 = vld [vmem:[%s152 + $0x14] sm:%s145]
                %165 = vst [vmem:[%s153 + $0x14] sm:%s145] %v164
                %v166 = vld [vmem:[%s152 + $0x18] sm:%s145]
                %167 = vst [vmem:[%s153 + $0x18] sm:%s145] %v166
                %v168 = vld [vmem:[%s152 + $0x1c] sm:%s145]
                %169 = vst [vmem:[%s153 + $0x1c] sm:%s145] %v168
                %v170 = vld [vmem:[%s152 + $0x20] sm:%s145]
                %171 = vst [vmem:[%s153 + $0x20] sm:%s145] %v170
                %v172 = vld [vmem:[%s152 + $0x24] sm:%s145]
                %173 = vst [vmem:[%s153 + $0x24] sm:%s145] %v172
                %v174 = vld [vmem:[%s152 + $0x28] sm:%s145]
                %175 = vst [vmem:[%s153 + $0x28] sm:%s145] %v174
                %v176 = vld [vmem:[%s152 + $0x2c] sm:%s145]
                %177 = vst [vmem:[%s153 + $0x2c] sm:%s145] %v176
                %v178 = vld [vmem:[%s152 + $0x30] sm:%s145]
                %179 = vst [vmem:[%s153 + $0x30] sm:%s145] %v178
                %v180 = vld [vmem:[%s152 + $0x34] sm:%s145]
                %181 = vst [vmem:[%s153 + $0x34] sm:%s145] %v180
                %v182 = vld [vmem:[%s152 + $0x38] sm:%s145]
                %183 = vst [vmem:[%s153 + $0x38] sm:%s145] %v182
                %v184 = vld [vmem:[%s152 + $0x3c] sm:%s145]
                %185 = vst [vmem:[%s153 + $0x3c] sm:%s145] %v184
                %v186 = vld [vmem:[%s152 + $0x40] sm:%s145]
                %187 = vst [vmem:[%s153 + $0x40] sm:%s145] %v186
                %v188 = vld [vmem:[%s152 + $0x44] sm:%s145]
                %189 = vst [vmem:[%s153 + $0x44] sm:%s145] %v188
                %v190 = vld [vmem:[%s152 + $0x90] sm:%s145]
                %191 = vst [vmem:[%s153 + $0x48] sm:%s145] %v190
                %v192 = vld [vmem:[%s152 + $0x94] sm:%s145]
                %193 = vst [vmem:[%s153 + $0x4c] sm:%s145] %v192
                %v194 = vld [vmem:[%s152 + $0x98] sm:%s145]
                %195 = vst [vmem:[%s153 + $0x50] sm:%s145] %v194
                %v196 = vld [vmem:[%s152 + $0x9c] sm:%s145]
                %197 = vst [vmem:[%s153 + $0x54] sm:%s145] %v196
                %v198 = vld [vmem:[%s152 + $0xa0] sm:%s145]
                %199 = vst [vmem:[%s153 + $0x58] sm:%s145] %v198
                %v200 = vld [vmem:[%s152 + $0xa4] sm:%s145]
                %201 = vst [vmem:[%s153 + $0x5c] sm:%s145] %v200
                %v202 = vld [vmem:[%s152 + $0xa8] sm:%s145]
                %203 = vst [vmem:[%s153 + $0x60] sm:%s145] %v202
                %v204 = vld [vmem:[%s152 + $0xac] sm:%s145]
                %205 = vst [vmem:[%s153 + $0x64] sm:%s145] %v204
                %v206 = vld [vmem:[%s152 + $0xb0] sm:%s145]
                %207 = vst [vmem:[%s153 + $0x68] sm:%s145] %v206
                %v208 = vld [vmem:[%s152 + $0xb4] sm:%s145]
                %209 = vst [vmem:[%s153 + $0x6c] sm:%s145] %v208
                %v210 = vld [vmem:[%s152 + $0xb8] sm:%s145]
                %211 = vst [vmem:[%s153 + $0x70] sm:%s145] %v210
                %v212 = vld [vmem:[%s152 + $0xbc] sm:%s145]
                %213 = vst [vmem:[%s153 + $0x74] sm:%s145] %v212
                %v214 = vld [vmem:[%s152 + $0xc0] sm:%s145]
                %215 = vst [vmem:[%s153 + $0x78] sm:%s145] %v214
                %v216 = vld [vmem:[%s152 + $0xc4] sm:%s145]
                %217 = vst [vmem:[%s153 + $0x7c] sm:%s145] %v216
                %v218 = vld [vmem:[%s152 + $0xc8] sm:%s145]
                %219 = vst [vmem:[%s153 + $0x80] sm:%s145] %v218
                %v220 = vld [vmem:[%s152 + $0xcc] sm:%s145]
                %221 = vst [vmem:[%s153 + $0x84] sm:%s145] %v220
                %v222 = vld [vmem:[%s152 + $0xd0] sm:%s145]
                %223 = vst [vmem:[%s153 + $0x88] sm:%s145] %v222
                %v224 = vld [vmem:[%s152 + $0xd4] sm:%s145]
                %225 = vst [vmem:[%s153 + $0x8c] sm:%s145] %v224
                %v226 = vld [vmem:[%s152 + $0x120] sm:%s145]
                %227 = vst [vmem:[%s153 + $0x90] sm:%s145] %v226
                %v228 = vld [vmem:[%s152 + $0x124] sm:%s145]
                %229 = vst [vmem:[%s153 + $0x94] sm:%s145] %v228
                %v230 = vld [vmem:[%s152 + $0x128] sm:%s145]
                %231 = vst [vmem:[%s153 + $0x98] sm:%s145] %v230
                %v232 = vld [vmem:[%s152 + $0x12c] sm:%s145]
                %233 = vst [vmem:[%s153 + $0x9c] sm:%s145] %v232
                %v234 = vld [vmem:[%s152 + $0x130] sm:%s145]
                %235 = vst [vmem:[%s153 + $0xa0] sm:%s145] %v234
                %v236 = vld [vmem:[%s152 + $0x134] sm:%s145]
                %237 = vst [vmem:[%s153 + $0xa4] sm:%s145] %v236
                %v238 = vld [vmem:[%s152 + $0x138] sm:%s145]
                %239 = vst [vmem:[%s153 + $0xa8] sm:%s145] %v238
                %v240 = vld [vmem:[%s152 + $0x13c] sm:%s145]
                %241 = vst [vmem:[%s153 + $0xac] sm:%s145] %v240
                %v242 = vld [vmem:[%s152 + $0x140] sm:%s145]
                %243 = vst [vmem:[%s153 + $0xb0] sm:%s145] %v242
                %v244 = vld [vmem:[%s152 + $0x144] sm:%s145]
                %245 = vst [vmem:[%s153 + $0xb4] sm:%s145] %v244
                %v246 = vld [vmem:[%s152 + $0x148] sm:%s145]
                %247 = vst [vmem:[%s153 + $0xb8] sm:%s145] %v246
                %v248 = vld [vmem:[%s152 + $0x14c] sm:%s145]
                %249 = vst [vmem:[%s153 + $0xbc] sm:%s145] %v248
                %v250 = vld [vmem:[%s152 + $0x150] sm:%s145]
                %251 = vst [vmem:[%s153 + $0xc0] sm:%s145] %v250
                %v252 = vld [vmem:[%s152 + $0x154] sm:%s145]
                %253 = vst [vmem:[%s153 + $0xc4] sm:%s145] %v252
                %v254 = vld [vmem:[%s152 + $0x158] sm:%s145]
                %255 = vst [vmem:[%s153 + $0xc8] sm:%s145] %v254
                %v256 = vld [vmem:[%s152 + $0x15c] sm:%s145]
                %257 = vst [vmem:[%s153 + $0xcc] sm:%s145] %v256
                %v258 = vld [vmem:[%s152 + $0x160] sm:%s145]
                %259 = vst [vmem:[%s153 + $0xd0] sm:%s145] %v258
                %v260 = vld [vmem:[%s152 + $0x164] sm:%s145]
                %261 = vst [vmem:[%s153 + $0xd4] sm:%s145] %v260
                %v262 = vld [vmem:[%s152 + $0x1b0] sm:%s145]
                %263 = vst [vmem:[%s153 + $0xd8] sm:%s145] %v262
                %v264 = vld [vmem:[%s152 + $0x1b4] sm:%s145]
                %265 = vst [vmem:[%s153 + $0xdc] sm:%s145] %v264
                %v266 = vld [vmem:[%s152 + $0x1b8] sm:%s145]
                %267 = vst [vmem:[%s153 + $0xe0] sm:%s145] %v266
                %v268 = vld [vmem:[%s152 + $0x1bc] sm:%s145]
                %269 = vst [vmem:[%s153 + $0xe4] sm:%s145] %v268
                %v270 = vld [vmem:[%s152 + $0x1c0] sm:%s145]
                %271 = vst [vmem:[%s153 + $0xe8] sm:%s145] %v270
                %v272 = vld [vmem:[%s152 + $0x1c4] sm:%s145]
                %273 = vst [vmem:[%s153 + $0xec] sm:%s145] %v272
                %v274 = vld [vmem:[%s152 + $0x1c8] sm:%s145]
                %275 = vst [vmem:[%s153 + $0xf0] sm:%s145] %v274
                %v276 = vld [vmem:[%s152 + $0x1cc] sm:%s145]
                %277 = vst [vmem:[%s153 + $0xf4] sm:%s145] %v276
                %v278 = vld [vmem:[%s152 + $0x1d0] sm:%s145]
                %279 = vst [vmem:[%s153 + $0xf8] sm:%s145] %v278
                %v280 = vld [vmem:[%s152 + $0x1d4] sm:%s145]
                %281 = vst [vmem:[%s153 + $0xfc] sm:%s145] %v280
                %v282 = vld [vmem:[%s152 + $0x1d8] sm:%s145]
                %283 = vst [vmem:[%s153 + $0x100] sm:%s145] %v282
                %v284 = vld [vmem:[%s152 + $0x1dc] sm:%s145]
                %285 = vst [vmem:[%s153 + $0x104] sm:%s145] %v284
                %v286 = vld [vmem:[%s152 + $0x1e0] sm:%s145]
                %287 = vst [vmem:[%s153 + $0x108] sm:%s145] %v286
                %v288 = vld [vmem:[%s152 + $0x1e4] sm:%s145]
                %289 = vst [vmem:[%s153 + $0x10c] sm:%s145] %v288
                %v290 = vld [vmem:[%s152 + $0x1e8] sm:%s145]
                %291 = vst [vmem:[%s153 + $0x110] sm:%s145] %v290
                %v292 = vld [vmem:[%s152 + $0x1ec] sm:%s145]
                %293 = vst [vmem:[%s153 + $0x114] sm:%s145] %v292
                %v294 = vld [vmem:[%s152 + $0x1f0] sm:%s145]
                %295 = vst [vmem:[%s153 + $0x118] sm:%s145] %v294
                %v296 = vld [vmem:[%s152 + $0x1f4] sm:%s145]
                %297 = vst [vmem:[%s153 + $0x11c] sm:%s145] %v296
              $region45: #{my_network_forward.2} parent=39 // loop_footer
                %s151 = sadd.s32 1, %s147
              $region46: #{my_network_forward.2} parent=39 // loop_footer_branch
                %146 = sbr.rel target = $region42
              $region47: #{my_network_forward.2} parent=39 // loop_exit
                _
            $region40: #{my_network_forward.2} parent=31 // pred_fallthru
              _
          $region32: #{my_network_forward.2} parent=27 // pred_fallthru
            _
          %462 = vnop
        $region28: #{my_network_forward.2} parent=23 // pred_fallthru
          _
      $region24: #{my_network_forward.2} parent=5 // pred_fallthru
        _
      %p463 = scmp.le.s32.totalorder 1, %s9
      %p464 = scmp.lt.s32.totalorder %s9, 3
      %p465 = pnand %p463, %p464
      %p466 = pneg %p465
      // Predicated region
      $region66: #{my_network_forward.2} parent=5 // pred_check
        _
      $region67: #{my_network_forward.2} parent=5 // pred_check_branch
        %468 = sbr.rel (%p465) target = $region69
      $region68: #{my_network_forward.2} parent=5 // pred_region
        %s469 = ssub.s32 %s9, 1
        %s470 = sand.u32 %s22, 1
        %s471 = sand.u32 %s22, 1
        %s472 = smul.addr %s471, 288
        %s473 = scalar_lea.vmem [#allocation2], %s472
        // Predicated region
        $region70: #{my_network_forward.2} parent=68 // pred_check
          %p474 = pneg %p35
        $region71: #{my_network_forward.2} parent=68 // pred_check_branch
          %476 = sbr.rel (%p474) target = $region73
        $region72: #{my_network_forward.2} parent=68 // pred_region
          _
        $region73: #{my_network_forward.2} parent=68 // pred_fallthru
          _
        %s477 = sand.u32 %s22, 1
        %s478 = sand.u32 %s22, 1
        %s479 = smul.addr %s478, 288
        %s480 = scalar_lea.vmem [#allocation2], %s479
        %p481 = pneg %p35
        %p482 = pneg %p32
        %p483 = pneg %p56
        %p484 = pneg %p53
        %p485 = pneg %p77
        %p486 = pneg %p74
        %p487 = pneg %p103
        %p488 = pneg %p100
        %s489 = smul.u32 18, %s14
        %p490 = scmp.lt.s32.totalorder %s489, 35
        %s491 = scalar_select %p490, %s489, 35
        %s492 = smul.addr %s491, 4
        %s493 = scalar_lea.vmem %s3, %s492
        %s494 = smul.u32 18, %s14
        %s495 = smul.u32 18, %s14
        %p496 = scmp.lt.s32.totalorder %s495, 35
        %s497 = scalar_select %p496, %s495, 35
        %s498 = smul.addr %s497, 4
        %s499 = scalar_lea.vmem %s3, %s498
        %s500 = smul.u32 18, %s14
        %v502 = vld [vmem:[%s1] sm:$0xf]
        %v503 = vld [vmem:[%s1 + $0x4] sm:$0xf]
        %v504 = vld [vmem:[%s1 + $0x8] sm:$0xf]
        %v505 = vld [vmem:[%s1 + $0xc] sm:$0xf]
        %v506 = vld [vmem:[%s473] sm:$0xf]
        %v507 = vld [vmem:[%s473 + $0x4] sm:$0xf]
        %v508 = vld [vmem:[%s473 + $0x8] sm:$0xf]
        %v509 = vld [vmem:[%s473 + $0xc] sm:$0xf]
        %v510 = vld [vmem:[%s473 + $0x10] sm:$0xf]
        %v511 = vld [vmem:[%s473 + $0x14] sm:$0xf]
        %v512 = vld [vmem:[%s473 + $0x18] sm:$0xf]
        %v513 = vld [vmem:[%s473 + $0x1c] sm:$0xf]
        %v514 = vld [vmem:[%s473 + $0x20] sm:$0xf]
        %v515 = vld [vmem:[%s473 + $0x24] sm:$0xf]
        %v516 = vld [vmem:[%s473 + $0x28] sm:$0xf]
        %v517 = vld [vmem:[%s473 + $0x2c] sm:$0xf]
        %v518 = vld [vmem:[%s473 + $0x30] sm:$0xf]
        %v519 = vld [vmem:[%s473 + $0x34] sm:$0xf]
        %v520 = vld [vmem:[%s473 + $0x38] sm:$0xf]
        %v521 = vld [vmem:[%s473 + $0x3c] sm:$0xf]
        %v522 = vld [vmem:[%s473 + $0x40] sm:$0xf]
        %v523 = vld [vmem:[%s473 + $0x44] sm:$0xf]
        %v542 = vunpack.c.l.b16 %v506
        %v543 = vunpack.c.l.b16 %v507
        %v544 = vunpack.c.l.b16 %v508
        %v545 = vunpack.c.l.b16 %v509
        %v546 = vunpack.c.l.b16 %v510
        %v547 = vunpack.c.l.b16 %v511
        %v548 = vunpack.c.l.b16 %v512
        %v549 = vunpack.c.l.b16 %v513
        %v550 = vunpack.c.l.b16 %v514
        %v551 = vunpack.c.l.b16 %v515
        %v552 = vunpack.c.l.b16 %v516
        %v553 = vunpack.c.l.b16 %v517
        %v554 = vunpack.c.l.b16 %v518
        %v555 = vunpack.c.l.b16 %v519
        %v556 = vunpack.c.l.b16 %v520
        %v557 = vunpack.c.l.b16 %v521
        %v558 = vunpack.c.l.b16 %v522
        %v559 = vunpack.c.l.b16 %v523
        %v560 = vpack.c.b16 %v543, %v542
        %v561 = vpack.c.b16 %v545, %v544
        %v562 = vpack.c.b16 %v547, %v546
        %v563 = vpack.c.b16 %v549, %v548
        %v564 = vpack.c.b16 %v551, %v550
        %v565 = vpack.c.b16 %v553, %v552
        %v566 = vpack.c.b16 %v555, %v554
        %v567 = vpack.c.b16 %v557, %v556
        %v568 = vpack.c.b16 %v559, %v558
        %v573 = vunpack.c.l.b16 %v502
        %v574 = vunpack.c.l.b16 %v503
        %v575 = vunpack.c.l.b16 %v504
        %v576 = vunpack.c.l.b16 %v505
        %v577 = vpack.c.b16 %v574, %v573
        %v578 = vpack.c.b16 %v576, %v575
        %vm581 = vcmask 261120
        %v583 = vsel %vm581, %v560, 0
        %v586 = vsel %vm581, %v561, 0
        %v589 = vsel %vm581, %v562, 0
        %v592 = vsel %vm581, %v563, 0
        %v595 = vsel %vm581, %v564, 0
        %v598 = vsel %vm581, %v565, 0
        %v601 = vsel %vm581, %v566, 0
        %v604 = vsel %vm581, %v567, 0
        %v607 = vsel %vm581, %v568, 0
        %609 = vmatpush.bf16.msra.mxu0 0
        %610 = vmatpush.bf16.msra.mxu0 0
        %611 = vmatpush.bf16.msra.mxu0 0
        %612 = vmatpush.bf16.msra.mxu0 0
        %613 = vmatpush.bf16.msra.mxu0 0
        %614 = vmatpush.bf16.msra.mxu0 0
        %615 = vmatpush.bf16.msra.mxu0 %v578
        %616 = vmatpush.bf16.msra.mxu0 %v577
        %617 = vmatmul.bf16.gmra.mxu0 %v583
        %v618 = vpop.f32.mrf.mxu0
        %v619 = vadd.f32 0.0, %v618
        %v620 = vpop.f32.mrf.mxu0
        %v621 = vadd.f32 0.0, %v620
        %622 = vmatmul.bf16.gmra.mxu0 %v586
        %v623 = vpop.f32.mrf.mxu0
        %v624 = vadd.f32 0.0, %v623
        %v625 = vpop.f32.mrf.mxu0
        %v626 = vadd.f32 0.0, %v625
        %627 = vmatmul.bf16.gmra.mxu0 %v589
        %v628 = vpop.f32.mrf.mxu0
        %v629 = vadd.f32 0.0, %v628
        %v630 = vpop.f32.mrf.mxu0
        %v631 = vadd.f32 0.0, %v630
        %632 = vmatmul.bf16.gmra.mxu0 %v592
        %v633 = vpop.f32.mrf.mxu0
        %v634 = vadd.f32 0.0, %v633
        %v635 = vpop.f32.mrf.mxu0
        %v636 = vadd.f32 0.0, %v635
        %637 = vmatmul.bf16.gmra.mxu0 %v595
        %v638 = vpop.f32.mrf.mxu0
        %v639 = vadd.f32 0.0, %v638
        %v640 = vpop.f32.mrf.mxu0
        %v641 = vadd.f32 0.0, %v640
        %642 = vmatmul.bf16.gmra.mxu0 %v598
        %v643 = vpop.f32.mrf.mxu0
        %v644 = vadd.f32 0.0, %v643
        %v645 = vpop.f32.mrf.mxu0
        %v646 = vadd.f32 0.0, %v645
        %647 = vmatmul.bf16.gmra.mxu0 %v601
        %v648 = vpop.f32.mrf.mxu0
        %v649 = vadd.f32 0.0, %v648
        %v650 = vpop.f32.mrf.mxu0
        %v651 = vadd.f32 0.0, %v650
        %652 = vmatmul.bf16.gmra.mxu0 %v604
        %v653 = vpop.f32.mrf.mxu0
        %v654 = vadd.f32 0.0, %v653
        %v655 = vpop.f32.mrf.mxu0
        %v656 = vadd.f32 0.0, %v655
        %657 = vmatmul.bf16.gmra.mxu0 %v607
        %v658 = vpop.f32.mrf.mxu0
        %v659 = vadd.f32 0.0, %v658
        %v660 = vpop.f32.mrf.mxu0
        %v661 = vadd.f32 0.0, %v660
        %662 = vdwg.mxu0
        %s663 = scalar_lea.vmem %s473, 72 [#allocation2]
        %v664 = vld [vmem:[%s663] sm:$0xf]
        %v665 = vld [vmem:[%s663 + $0x4] sm:$0xf]
        %v666 = vld [vmem:[%s663 + $0x8] sm:$0xf]
        %v667 = vld [vmem:[%s663 + $0xc] sm:$0xf]
        %v668 = vld [vmem:[%s663 + $0x10] sm:$0xf]
        %v669 = vld [vmem:[%s663 + $0x14] sm:$0xf]
        %v670 = vld [vmem:[%s663 + $0x18] sm:$0xf]
        %v671 = vld [vmem:[%s663 + $0x1c] sm:$0xf]
        %v672 = vld [vmem:[%s663 + $0x20] sm:$0xf]
        %v673 = vld [vmem:[%s663 + $0x24] sm:$0xf]
        %v674 = vld [vmem:[%s663 + $0x28] sm:$0xf]
        %v675 = vld [vmem:[%s663 + $0x2c] sm:$0xf]
        %v676 = vld [vmem:[%s663 + $0x30] sm:$0xf]
        %v677 = vld [vmem:[%s663 + $0x34] sm:$0xf]
        %v678 = vld [vmem:[%s663 + $0x38] sm:$0xf]
        %v679 = vld [vmem:[%s663 + $0x3c] sm:$0xf]
        %v680 = vld [vmem:[%s663 + $0x40] sm:$0xf]
        %v681 = vld [vmem:[%s663 + $0x44] sm:$0xf]
        %v700 = vunpack.c.l.b16 %v664
        %v701 = vunpack.c.l.b16 %v665
        %v702 = vunpack.c.l.b16 %v666
        %v703 = vunpack.c.l.b16 %v667
        %v704 = vunpack.c.l.b16 %v668
        %v705 = vunpack.c.l.b16 %v669
        %v706 = vunpack.c.l.b16 %v670
        %v707 = vunpack.c.l.b16 %v671
        %v708 = vunpack.c.l.b16 %v672
        %v709 = vunpack.c.l.b16 %v673
        %v710 = vunpack.c.l.b16 %v674
        %v711 = vunpack.c.l.b16 %v675
        %v712 = vunpack.c.l.b16 %v676
        %v713 = vunpack.c.l.b16 %v677
        %v714 = vunpack.c.l.b16 %v678
        %v715 = vunpack.c.l.b16 %v679
        %v716 = vunpack.c.l.b16 %v680
        %v717 = vunpack.c.l.b16 %v681
        %v718 = vpack.c.b16 %v701, %v700
        %v719 = vpack.c.b16 %v703, %v702
        %v720 = vpack.c.b16 %v705, %v704
        %v721 = vpack.c.b16 %v707, %v706
        %v722 = vpack.c.b16 %v709, %v708
        %v723 = vpack.c.b16 %v711, %v710
        %v724 = vpack.c.b16 %v713, %v712
        %v725 = vpack.c.b16 %v715, %v714
        %v726 = vpack.c.b16 %v717, %v716
        %v728 = vsel %vm581, %v718, 0
        %v731 = vsel %vm581, %v719, 0
        %v734 = vsel %vm581, %v720, 0
        %v737 = vsel %vm581, %v721, 0
        %v740 = vsel %vm581, %v722, 0
        %v743 = vsel %vm581, %v723, 0
        %v746 = vsel %vm581, %v724, 0
        %v749 = vsel %vm581, %v725, 0
        %v752 = vsel %vm581, %v726, 0
        %754 = vmatpush.bf16.msra.mxu0 0
        %755 = vmatpush.bf16.msra.mxu0 0
        %756 = vmatpush.bf16.msra.mxu0 0
        %757 = vmatpush.bf16.msra.mxu0 0
        %758 = vmatpush.bf16.msra.mxu0 0
        %759 = vmatpush.bf16.msra.mxu0 0
        %760 = vmatpush.bf16.msra.mxu0 %v578
        %761 = vmatpush.bf16.msra.mxu0 %v577
        %762 = vmatmul.bf16.gmra.mxu0 %v728
        %v763 = vpop.f32.mrf.mxu0
        %v764 = vadd.f32 0.0, %v763
        %v765 = vpop.f32.mrf.mxu0
        %v766 = vadd.f32 0.0, %v765
        %767 = vmatmul.bf16.gmra.mxu0 %v731
        %v768 = vpop.f32.mrf.mxu0
        %v769 = vadd.f32 0.0, %v768
        %v770 = vpop.f32.mrf.mxu0
        %v771 = vadd.f32 0.0, %v770
        %772 = vmatmul.bf16.gmra.mxu0 %v734
        %v773 = vpop.f32.mrf.mxu0
        %v774 = vadd.f32 0.0, %v773
        %v775 = vpop.f32.mrf.mxu0
        %v776 = vadd.f32 0.0, %v775
        %777 = vmatmul.bf16.gmra.mxu0 %v737
        %v778 = vpop.f32.mrf.mxu0
        %v779 = vadd.f32 0.0, %v778
        %v780 = vpop.f32.mrf.mxu0
        %v781 = vadd.f32 0.0, %v780
        %782 = vmatmul.bf16.gmra.mxu0 %v740
        %v783 = vpop.f32.mrf.mxu0
        %v784 = vadd.f32 0.0, %v783
        %v785 = vpop.f32.mrf.mxu0
        %v786 = vadd.f32 0.0, %v785
        %787 = vmatmul.bf16.gmra.mxu0 %v743
        %v788 = vpop.f32.mrf.mxu0
        %v789 = vadd.f32 0.0, %v788
        %v790 = vpop.f32.mrf.mxu0
        %v791 = vadd.f32 0.0, %v790
        %792 = vmatmul.bf16.gmra.mxu0 %v746
        %v793 = vpop.f32.mrf.mxu0
        %v794 = vadd.f32 0.0, %v793
        %v795 = vpop.f32.mrf.mxu0
        %v796 = vadd.f32 0.0, %v795
        %797 = vmatmul.bf16.gmra.mxu0 %v749
        %v798 = vpop.f32.mrf.mxu0
        %v799 = vadd.f32 0.0, %v798
        %v800 = vpop.f32.mrf.mxu0
        %v801 = vadd.f32 0.0, %v800
        %802 = vmatmul.bf16.gmra.mxu0 %v752
        %v803 = vpop.f32.mrf.mxu0
        %v804 = vadd.f32 0.0, %v803
        %v805 = vpop.f32.mrf.mxu0
        %v806 = vadd.f32 0.0, %v805
        %807 = vdwg.mxu0
        %v808 = vmax.f32 %v619, %v764
        %v809 = vmax.f32 %v621, %v766
        %v810 = vmax.f32 %v624, %v769
        %v811 = vmax.f32 %v626, %v771
        %v812 = vmax.f32 %v629, %v774
        %v813 = vmax.f32 %v631, %v776
        %v814 = vmax.f32 %v634, %v779
        %v815 = vmax.f32 %v636, %v781
        %v816 = vmax.f32 %v639, %v784
        %v817 = vmax.f32 %v641, %v786
        %v818 = vmax.f32 %v644, %v789
        %v819 = vmax.f32 %v646, %v791
        %v820 = vmax.f32 %v649, %v794
        %v821 = vmax.f32 %v651, %v796
        %v822 = vmax.f32 %v654, %v799
        %v823 = vmax.f32 %v656, %v801
        %v824 = vmax.f32 %v659, %v804
        %v825 = vmax.f32 %v661, %v806
        %s826 = scalar_lea.vmem %s473, 144 [#allocation2]
        %v827 = vld [vmem:[%s826] sm:$0xf]
        %v828 = vld [vmem:[%s826 + $0x4] sm:$0xf]
        %v829 = vld [vmem:[%s826 + $0x8] sm:$0xf]
        %v830 = vld [vmem:[%s826 + $0xc] sm:$0xf]
        %v831 = vld [vmem:[%s826 + $0x10] sm:$0xf]
        %v832 = vld [vmem:[%s826 + $0x14] sm:$0xf]
        %v833 = vld [vmem:[%s826 + $0x18] sm:$0xf]
        %v834 = vld [vmem:[%s826 + $0x1c] sm:$0xf]
        %v835 = vld [vmem:[%s826 + $0x20] sm:$0xf]
        %v836 = vld [vmem:[%s826 + $0x24] sm:$0xf]
        %v837 = vld [vmem:[%s826 + $0x28] sm:$0xf]
        %v838 = vld [vmem:[%s826 + $0x2c] sm:$0xf]
        %v839 = vld [vmem:[%s826 + $0x30] sm:$0xf]
        %v840 = vld [vmem:[%s826 + $0x34] sm:$0xf]
        %v841 = vld [vmem:[%s826 + $0x38] sm:$0xf]
        %v842 = vld [vmem:[%s826 + $0x3c] sm:$0xf]
        %v843 = vld [vmem:[%s826 + $0x40] sm:$0xf]
        %v844 = vld [vmem:[%s826 + $0x44] sm:$0xf]
        %v863 = vunpack.c.l.b16 %v827
        %v864 = vunpack.c.l.b16 %v828
        %v865 = vunpack.c.l.b16 %v829
        %v866 = vunpack.c.l.b16 %v830
        %v867 = vunpack.c.l.b16 %v831
        %v868 = vunpack.c.l.b16 %v832
        %v869 = vunpack.c.l.b16 %v833
        %v870 = vunpack.c.l.b16 %v834
        %v871 = vunpack.c.l.b16 %v835
        %v872 = vunpack.c.l.b16 %v836
        %v873 = vunpack.c.l.b16 %v837
        %v874 = vunpack.c.l.b16 %v838
        %v875 = vunpack.c.l.b16 %v839
        %v876 = vunpack.c.l.b16 %v840
        %v877 = vunpack.c.l.b16 %v841
        %v878 = vunpack.c.l.b16 %v842
        %v879 = vunpack.c.l.b16 %v843
        %v880 = vunpack.c.l.b16 %v844
        %v881 = vpack.c.b16 %v864, %v863
        %v882 = vpack.c.b16 %v866, %v865
        %v883 = vpack.c.b16 %v868, %v867
        %v884 = vpack.c.b16 %v870, %v869
        %v885 = vpack.c.b16 %v872, %v871
        %v886 = vpack.c.b16 %v874, %v873
        %v887 = vpack.c.b16 %v876, %v875
        %v888 = vpack.c.b16 %v878, %v877
        %v889 = vpack.c.b16 %v880, %v879
        %v891 = vsel %vm581, %v881, 0
        %v894 = vsel %vm581, %v882, 0
        %v897 = vsel %vm581, %v883, 0
        %v900 = vsel %vm581, %v884, 0
        %v903 = vsel %vm581, %v885, 0
        %v906 = vsel %vm581, %v886, 0
        %v909 = vsel %vm581, %v887, 0
        %v912 = vsel %vm581, %v888, 0
        %v915 = vsel %vm581, %v889, 0
        %917 = vmatpush.bf16.msra.mxu0 0
        %918 = vmatpush.bf16.msra.mxu0 0
        %919 = vmatpush.bf16.msra.mxu0 0
        %920 = vmatpush.bf16.msra.mxu0 0
        %921 = vmatpush.bf16.msra.mxu0 0
        %922 = vmatpush.bf16.msra.mxu0 0
        %923 = vmatpush.bf16.msra.mxu0 %v578
        %924 = vmatpush.bf16.msra.mxu0 %v577
        %925 = vmatmul.bf16.gmra.mxu0 %v891
        %v926 = vpop.f32.mrf.mxu0
        %v927 = vadd.f32 0.0, %v926
        %v928 = vpop.f32.mrf.mxu0
        %v929 = vadd.f32 0.0, %v928
        %930 = vmatmul.bf16.gmra.mxu0 %v894
        %v931 = vpop.f32.mrf.mxu0
        %v932 = vadd.f32 0.0, %v931
        %v933 = vpop.f32.mrf.mxu0
        %v934 = vadd.f32 0.0, %v933
        %935 = vmatmul.bf16.gmra.mxu0 %v897
        %v936 = vpop.f32.mrf.mxu0
        %v937 = vadd.f32 0.0, %v936
        %v938 = vpop.f32.mrf.mxu0
        %v939 = vadd.f32 0.0, %v938
        %940 = vmatmul.bf16.gmra.mxu0 %v900
        %v941 = vpop.f32.mrf.mxu0
        %v942 = vadd.f32 0.0, %v941
        %v943 = vpop.f32.mrf.mxu0
        %v944 = vadd.f32 0.0, %v943
        %945 = vmatmul.bf16.gmra.mxu0 %v903
        %v946 = vpop.f32.mrf.mxu0
        %v947 = vadd.f32 0.0, %v946
        %v948 = vpop.f32.mrf.mxu0
        %v949 = vadd.f32 0.0, %v948
        %950 = vmatmul.bf16.gmra.mxu0 %v906
        %v951 = vpop.f32.mrf.mxu0
        %v952 = vadd.f32 0.0, %v951
        %v953 = vpop.f32.mrf.mxu0
        %v954 = vadd.f32 0.0, %v953
        %955 = vmatmul.bf16.gmra.mxu0 %v909
        %v956 = vpop.f32.mrf.mxu0
        %v957 = vadd.f32 0.0, %v956
        %v958 = vpop.f32.mrf.mxu0
        %v959 = vadd.f32 0.0, %v958
        %960 = vmatmul.bf16.gmra.mxu0 %v912
        %v961 = vpop.f32.mrf.mxu0
        %v962 = vadd.f32 0.0, %v961
        %v963 = vpop.f32.mrf.mxu0
        %v964 = vadd.f32 0.0, %v963
        %965 = vmatmul.bf16.gmra.mxu0 %v915
        %v966 = vpop.f32.mrf.mxu0
        %v967 = vadd.f32 0.0, %v966
        %v968 = vpop.f32.mrf.mxu0
        %v969 = vadd.f32 0.0, %v968
        %970 = vdwg.mxu0
        %v971 = vmax.f32 %v808, %v927
        %v972 = vmax.f32 %v809, %v929
        %v973 = vmax.f32 %v810, %v932
        %v974 = vmax.f32 %v811, %v934
        %v975 = vmax.f32 %v812, %v937
        %v976 = vmax.f32 %v813, %v939
        %v977 = vmax.f32 %v814, %v942
        %v978 = vmax.f32 %v815, %v944
        %v979 = vmax.f32 %v816, %v947
        %v980 = vmax.f32 %v817, %v949
        %v981 = vmax.f32 %v818, %v952
        %v982 = vmax.f32 %v819, %v954
        %v983 = vmax.f32 %v820, %v957
        %v984 = vmax.f32 %v821, %v959
        %v985 = vmax.f32 %v822, %v962
        %v986 = vmax.f32 %v823, %v964
        %v987 = vmax.f32 %v824, %v967
        %v988 = vmax.f32 %v825, %v969
        %s989 = scalar_lea.vmem %s473, 216 [#allocation2]
        %v990 = vld [vmem:[%s989] sm:$0xf]
        %v991 = vld [vmem:[%s989 + $0x4] sm:$0xf]
        %v992 = vld [vmem:[%s989 + $0x8] sm:$0xf]
        %v993 = vld [vmem:[%s989 + $0xc] sm:$0xf]
        %v994 = vld [vmem:[%s989 + $0x10] sm:$0xf]
        %v995 = vld [vmem:[%s989 + $0x14] sm:$0xf]
        %v996 = vld [vmem:[%s989 + $0x18] sm:$0xf]
        %v997 = vld [vmem:[%s989 + $0x1c] sm:$0xf]
        %v998 = vld [vmem:[%s989 + $0x20] sm:$0xf]
        %v999 = vld [vmem:[%s989 + $0x24] sm:$0xf]
        %v1000 = vld [vmem:[%s989 + $0x28] sm:$0xf]
        %v1001 = vld [vmem:[%s989 + $0x2c] sm:$0xf]
        %v1002 = vld [vmem:[%s989 + $0x30] sm:$0xf]
        %v1003 = vld [vmem:[%s989 + $0x34] sm:$0xf]
        %v1004 = vld [vmem:[%s989 + $0x38] sm:$0xf]
        %v1005 = vld [vmem:[%s989 + $0x3c] sm:$0xf]
        %v1006 = vld [vmem:[%s989 + $0x40] sm:$0xf]
        %v1007 = vld [vmem:[%s989 + $0x44] sm:$0xf]
        %v1026 = vunpack.c.l.b16 %v990
        %v1027 = vunpack.c.l.b16 %v991
        %v1028 = vunpack.c.l.b16 %v992
        %v1029 = vunpack.c.l.b16 %v993
        %v1030 = vunpack.c.l.b16 %v994
        %v1031 = vunpack.c.l.b16 %v995
        %v1032 = vunpack.c.l.b16 %v996
        %v1033 = vunpack.c.l.b16 %v997
        %v1034 = vunpack.c.l.b16 %v998
        %v1035 = vunpack.c.l.b16 %v999
        %v1036 = vunpack.c.l.b16 %v1000
        %v1037 = vunpack.c.l.b16 %v1001
        %v1038 = vunpack.c.l.b16 %v1002
        %v1039 = vunpack.c.l.b16 %v1003
        %v1040 = vunpack.c.l.b16 %v1004
        %v1041 = vunpack.c.l.b16 %v1005
        %v1042 = vunpack.c.l.b16 %v1006
        %v1043 = vunpack.c.l.b16 %v1007
        %v1044 = vpack.c.b16 %v1027, %v1026
        %v1045 = vpack.c.b16 %v1029, %v1028
        %v1046 = vpack.c.b16 %v1031, %v1030
        %v1047 = vpack.c.b16 %v1033, %v1032
        %v1048 = vpack.c.b16 %v1035, %v1034
        %v1049 = vpack.c.b16 %v1037, %v1036
        %v1050 = vpack.c.b16 %v1039, %v1038
        %v1051 = vpack.c.b16 %v1041, %v1040
        %v1052 = vpack.c.b16 %v1043, %v1042
        %v1054 = vsel %vm581, %v1044, 0
        %v1057 = vsel %vm581, %v1045, 0
        %v1060 = vsel %vm581, %v1046, 0
        %v1063 = vsel %vm581, %v1047, 0
        %v1066 = vsel %vm581, %v1048, 0
        %v1069 = vsel %vm581, %v1049, 0
        %v1072 = vsel %vm581, %v1050, 0
        %v1075 = vsel %vm581, %v1051, 0
        %v1078 = vsel %vm581, %v1052, 0
        %1080 = vmatpush.bf16.msra.mxu0 0
        %1081 = vmatpush.bf16.msra.mxu0 0
        %1082 = vmatpush.bf16.msra.mxu0 0
        %1083 = vmatpush.bf16.msra.mxu0 0
        %1084 = vmatpush.bf16.msra.mxu0 0
        %1085 = vmatpush.bf16.msra.mxu0 0
        %1086 = vmatpush.bf16.msra.mxu0 %v578
        %1087 = vmatpush.bf16.msra.mxu0 %v577
        %1088 = vmatmul.bf16.gmra.mxu0 %v1054
        %v1089 = vpop.f32.mrf.mxu0
        %v1090 = vadd.f32 0.0, %v1089
        %v1091 = vpop.f32.mrf.mxu0
        %v1092 = vadd.f32 0.0, %v1091
        %1093 = vmatmul.bf16.gmra.mxu0 %v1057
        %v1094 = vpop.f32.mrf.mxu0
        %v1095 = vadd.f32 0.0, %v1094
        %v1096 = vpop.f32.mrf.mxu0
        %v1097 = vadd.f32 0.0, %v1096
        %1098 = vmatmul.bf16.gmra.mxu0 %v1060
        %v1099 = vpop.f32.mrf.mxu0
        %v1100 = vadd.f32 0.0, %v1099
        %v1101 = vpop.f32.mrf.mxu0
        %v1102 = vadd.f32 0.0, %v1101
        %1103 = vmatmul.bf16.gmra.mxu0 %v1063
        %v1104 = vpop.f32.mrf.mxu0
        %v1105 = vadd.f32 0.0, %v1104
        %v1106 = vpop.f32.mrf.mxu0
        %v1107 = vadd.f32 0.0, %v1106
        %1108 = vmatmul.bf16.gmra.mxu0 %v1066
        %v1109 = vpop.f32.mrf.mxu0
        %v1110 = vadd.f32 0.0, %v1109
        %v1111 = vpop.f32.mrf.mxu0
        %v1112 = vadd.f32 0.0, %v1111
        %1113 = vmatmul.bf16.gmra.mxu0 %v1069
        %v1114 = vpop.f32.mrf.mxu0
        %v1115 = vadd.f32 0.0, %v1114
        %v1116 = vpop.f32.mrf.mxu0
        %v1117 = vadd.f32 0.0, %v1116
        %1118 = vmatmul.bf16.gmra.mxu0 %v1072
        %v1119 = vpop.f32.mrf.mxu0
        %v1120 = vadd.f32 0.0, %v1119
        %v1121 = vpop.f32.mrf.mxu0
        %v1122 = vadd.f32 0.0, %v1121
        %1123 = vmatmul.bf16.gmra.mxu0 %v1075
        %v1124 = vpop.f32.mrf.mxu0
        %v1125 = vadd.f32 0.0, %v1124
        %v1126 = vpop.f32.mrf.mxu0
        %v1127 = vadd.f32 0.0, %v1126
        %1128 = vmatmul.bf16.gmra.mxu0 %v1078
        %v1129 = vpop.f32.mrf.mxu0
        %v1130 = vadd.f32 0.0, %v1129
        %v1131 = vpop.f32.mrf.mxu0
        %v1132 = vadd.f32 0.0, %v1131
        %1133 = vdwg.mxu0
        %v1134 = vmax.f32 %v971, %v1090
        %v1135 = vmax.f32 %v972, %v1092
        %v1136 = vmax.f32 %v973, %v1095
        %v1137 = vmax.f32 %v974, %v1097
        %v1138 = vmax.f32 %v975, %v1100
        %v1139 = vmax.f32 %v976, %v1102
        %v1140 = vmax.f32 %v977, %v1105
        %v1141 = vmax.f32 %v978, %v1107
        %v1142 = vmax.f32 %v979, %v1110
        %v1143 = vmax.f32 %v980, %v1112
        %v1144 = vmax.f32 %v981, %v1115
        %v1145 = vmax.f32 %v982, %v1117
        %v1146 = vmax.f32 %v983, %v1120
        %v1147 = vmax.f32 %v984, %v1122
        %v1148 = vmax.f32 %v985, %v1125
        %v1149 = vmax.f32 %v986, %v1127
        %v1150 = vmax.f32 %v987, %v1130
        %v1151 = vmax.f32 %v988, %v1132
        %v1152 = vld [vmem:[%s2] sm:$0x1]
        %v1154 = vperm.slane %v1152, 0
        %v1156 = vadd.f32 %v1134, %v1154
        %v1157 = vadd.f32 %v1135, %v1154
        %v1158 = vadd.f32 %v1136, %v1154
        %v1159 = vadd.f32 %v1137, %v1154
        %v1160 = vadd.f32 %v1138, %v1154
        %v1161 = vadd.f32 %v1139, %v1154
        %v1162 = vadd.f32 %v1140, %v1154
        %v1163 = vadd.f32 %v1141, %v1154
        %v1164 = vadd.f32 %v1142, %v1154
        %v1165 = vadd.f32 %v1143, %v1154
        %v1166 = vadd.f32 %v1144, %v1154
        %v1167 = vadd.f32 %v1145, %v1154
        %v1168 = vadd.f32 %v1146, %v1154
        %v1169 = vadd.f32 %v1147, %v1154
        %v1170 = vadd.f32 %v1148, %v1154
        %v1171 = vadd.f32 %v1149, %v1154
        %v1172 = vadd.f32 %v1150, %v1154
        %v1173 = vadd.f32 %v1151, %v1154
        %v1174 = vmax.f32 %v1156, 0.0
        %v1175 = vmax.f32 %v1157, 0.0
        %v1176 = vmax.f32 %v1158, 0.0
        %v1177 = vmax.f32 %v1159, 0.0
        %v1178 = vmax.f32 %v1160, 0.0
        %v1179 = vmax.f32 %v1161, 0.0
        %v1180 = vmax.f32 %v1162, 0.0
        %v1181 = vmax.f32 %v1163, 0.0
        %v1182 = vmax.f32 %v1164, 0.0
        %v1183 = vmax.f32 %v1165, 0.0
        %v1184 = vmax.f32 %v1166, 0.0
        %v1185 = vmax.f32 %v1167, 0.0
        %v1186 = vmax.f32 %v1168, 0.0
        %v1187 = vmax.f32 %v1169, 0.0
        %v1188 = vmax.f32 %v1170, 0.0
        %v1189 = vmax.f32 %v1171, 0.0
        %v1190 = vmax.f32 %v1172, 0.0
        %v1191 = vmax.f32 %v1173, 0.0
        %v1192 = vpack.c.bf16 %v1174, %v1174
        %v1193 = vpack.c.bf16 %v1175, %v1175
        %v1194 = vpack.c.bf16 %v1176, %v1176
        %v1195 = vpack.c.bf16 %v1177, %v1177
        %v1196 = vpack.c.bf16 %v1178, %v1178
        %v1197 = vpack.c.bf16 %v1179, %v1179
        %v1198 = vpack.c.bf16 %v1180, %v1180
        %v1199 = vpack.c.bf16 %v1181, %v1181
        %v1200 = vpack.c.bf16 %v1182, %v1182
        %v1201 = vpack.c.bf16 %v1183, %v1183
        %v1202 = vpack.c.bf16 %v1184, %v1184
        %v1203 = vpack.c.bf16 %v1185, %v1185
        %v1204 = vpack.c.bf16 %v1186, %v1186
        %v1205 = vpack.c.bf16 %v1187, %v1187
        %v1206 = vpack.c.bf16 %v1188, %v1188
        %v1207 = vpack.c.bf16 %v1189, %v1189
        %v1208 = vpack.c.bf16 %v1190, %v1190
        %v1209 = vpack.c.bf16 %v1191, %v1191
        %1210 = vst [vmem:[%s499] sm:$0xf] %v1192
        %1211 = vst [vmem:[%s499 + $0x4] sm:$0xf] %v1193
        %1212 = vst [vmem:[%s499 + $0x8] sm:$0xf] %v1194
        %1213 = vst [vmem:[%s499 + $0xc] sm:$0xf] %v1195
        %1214 = vst [vmem:[%s499 + $0x10] sm:$0xf] %v1196
        %1215 = vst [vmem:[%s499 + $0x14] sm:$0xf] %v1197
        %1216 = vst [vmem:[%s499 + $0x18] sm:$0xf] %v1198
        %1217 = vst [vmem:[%s499 + $0x1c] sm:$0xf] %v1199
        %1218 = vst [vmem:[%s499 + $0x20] sm:$0xf] %v1200
        %1219 = vst [vmem:[%s499 + $0x24] sm:$0xf] %v1201
        %1220 = vst [vmem:[%s499 + $0x28] sm:$0xf] %v1202
        %1221 = vst [vmem:[%s499 + $0x2c] sm:$0xf] %v1203
        %1222 = vst [vmem:[%s499 + $0x30] sm:$0xf] %v1204
        %1223 = vst [vmem:[%s499 + $0x34] sm:$0xf] %v1205
        %1224 = vst [vmem:[%s499 + $0x38] sm:$0xf] %v1206
        %1225 = vst [vmem:[%s499 + $0x3c] sm:$0xf] %v1207
        %1226 = vst [vmem:[%s499 + $0x40] sm:$0xf] %v1208
        %1227 = vst [vmem:[%s499 + $0x44] sm:$0xf] %v1209
        %s1228 = smul.u32 18, %s14
        %p1229 = scmp.lt.s32.totalorder %s1228, 35
        %s1230 = scalar_select %p1229, %s1228, 35
        %s1231 = smul.addr %s1230, 4
        %s1232 = scalar_lea.vmem %s3, %s1231
        // Predicated region
        $region74: #{my_network_forward.2} parent=68 // pred_check
          %p1233 = pneg %p100
        $region75: #{my_network_forward.2} parent=68 // pred_check_branch
          %1235 = sbr.rel (%p1233) target = $region77
        $region76: #{my_network_forward.2} parent=68 // pred_region
          %s1236 = smul.u32 18, %s14
        $region77: #{my_network_forward.2} parent=68 // pred_fallthru
          _
      $region69: #{my_network_forward.2} parent=5 // pred_fallthru
        _
      %p1237 = scmp.le.s32.totalorder 2, %s9
      // Predicated region
      $region78: #{my_network_forward.2} parent=5 // pred_check
        %p1238 = pneg %p1237
      $region79: #{my_network_forward.2} parent=5 // pred_check_branch
        %1240 = sbr.rel (%p1238) target = $region81
      $region80: #{my_network_forward.2} parent=5 // pred_region
        %s1241 = ssub.s32 %s9, 2
        // Predicated region
        $region82: #{my_network_forward.2} parent=80 // pred_check
          %p1242 = pneg %p106
        $region83: #{my_network_forward.2} parent=80 // pred_check_branch
          %1244 = sbr.rel (%p1242) target = $region85
        $region84: #{my_network_forward.2} parent=80 // pred_region
          %s1245 = smul.u32 18, %s15
          %p1246 = scmp.lt.s32.totalorder %s1245, 35
          %s1247 = scalar_select %p1246, %s1245, 35
          %s1248 = smul.addr %s1247, 4
          %s1249 = scalar_lea.vmem %s3, %s1248
        $region85: #{my_network_forward.2} parent=80 // pred_fallthru
          _
      $region81: #{my_network_forward.2} parent=5 // pred_fallthru
        _
    $region6: #{my_network_forward.2} parent=1 // loop_footer
      %s13 = sadd.s32 1, %s9
    $region7: #{my_network_forward.2} parent=1 // loop_footer_branch
      %8 = sbr.rel target = $region3
    $region8: #{my_network_forward.2} parent=1 // loop_exit
      _

// kernel: my_network_forward.3
$region0: #{my_network_forward.3}
  #allocation0 [shape = 'u32[]', space=smem, size = 0x4, offset = 0x4, fixed_abs, tag = 'smem constant byte address 0x4 - core index']
  #allocation1 [shape = 'u32[72,128]{1,0:T(1,128)}', space=vmem, size = 0x9000, scoped, tag = 'internal scratch']
  %s0 = inlined_call_operand.vmem [shape: bf16[16,4,8,256], index: 0, kind: input, shape index: {}]
  %s1 = inlined_call_operand.vmem [shape: bf16[256,128], index: 1, kind: input, shape index: {}]
  %s2 = inlined_call_operand.vmem [shape: f32[1,128], index: 2, kind: input, shape index: {}]
  %s3 = inlined_call_operand.vmem [shape: bf16[16,128,128], index: 3, kind: input, shape index: {}]
  %s4 = inlined_call_operand.vmem [shape: f32[1,128], index: 4, kind: input, shape index: {}]
  %s5 = inlined_call_operand.vmem [shape: bf16[128,128], index: 5, kind: input, shape index: {}]
  %s6 = inlined_call_operand.vmem [shape: f32[1,128], index: 6, kind: input, shape index: {}]
  %s7 = inlined_call_operand.vmem [shape: f32[8,128], index: 7, kind: output, shape index: {}]
  %s8 = sld [smem:[#allocation0]]
  $region38: #{my_network_forward.3} parent=0
    _
  %s10 = ssub.s32 1, %s8
  %s11 = scalar_select 0, %s10, %s8
  // Predicated region
  $region2: #{my_network_forward.3} parent=0 // pred_check
    _
  $region3: #{my_network_forward.3} parent=0 // pred_check_branch
    %13 = sbr.rel (0) target = $region5
  $region4: #{my_network_forward.3} parent=0 // pred_region
    _
  $region5: #{my_network_forward.3} parent=0 // pred_fallthru
    _
  // Predicated region
  $region6: #{my_network_forward.3} parent=0 // pred_check
    _
  $region7: #{my_network_forward.3} parent=0 // pred_check_branch
    %15 = sbr.rel (0) target = $region9
  $region8: #{my_network_forward.3} parent=0 // pred_region
    _
  $region9: #{my_network_forward.3} parent=0 // pred_fallthru
    _
  // Predicated region
  $region10: #{my_network_forward.3} parent=0 // pred_check
    _
  $region11: #{my_network_forward.3} parent=0 // pred_check_branch
    %17 = sbr.rel (0) target = $region13
  $region12: #{my_network_forward.3} parent=0 // pred_region
    _
  $region13: #{my_network_forward.3} parent=0 // pred_fallthru
    _
  // Predicated region
  $region14: #{my_network_forward.3} parent=0 // pred_check
    _
  $region15: #{my_network_forward.3} parent=0 // pred_check_branch
    %19 = sbr.rel (0) target = $region17
  $region16: #{my_network_forward.3} parent=0 // pred_region
    _
  $region17: #{my_network_forward.3} parent=0 // pred_fallthru
    _
  // Predicated region
  $region18: #{my_network_forward.3} parent=0 // pred_check
    _
  $region19: #{my_network_forward.3} parent=0 // pred_check_branch
    %21 = sbr.rel (0) target = $region21
  $region20: #{my_network_forward.3} parent=0 // pred_region
    _
  $region21: #{my_network_forward.3} parent=0 // pred_fallthru
    _
  // Predicated region
  $region22: #{my_network_forward.3} parent=0 // pred_check
    _
  $region23: #{my_network_forward.3} parent=0 // pred_check_branch
    %23 = sbr.rel (0) target = $region25
  $region24: #{my_network_forward.3} parent=0 // pred_region
    _
  $region25: #{my_network_forward.3} parent=0 // pred_fallthru
    _
  // Predicated region
  $region26: #{my_network_forward.3} parent=0 // pred_check
    _
  $region27: #{my_network_forward.3} parent=0 // pred_check_branch
    %25 = sbr.rel (0) target = $region29
  $region28: #{my_network_forward.3} parent=0 // pred_region
    _
  $region29: #{my_network_forward.3} parent=0 // pred_fallthru
    _
  %v26 = vld [vmem:[%s1] sm:$0xf]
  %v27 = vld [vmem:[%s1 + $0x4] sm:$0xf]
  %v28 = vld [vmem:[%s1 + $0x8] sm:$0xf]
  %v29 = vld [vmem:[%s1 + $0xc] sm:$0xf]
  %v30 = vld [vmem:[%s1 + $0x10] sm:$0xf]
  %v31 = vld [vmem:[%s1 + $0x14] sm:$0xf]
  %v32 = vld [vmem:[%s1 + $0x18] sm:$0xf]
  %v33 = vld [vmem:[%s1 + $0x1c] sm:$0xf]
  %v34 = vld [vmem:[%s1 + $0x20] sm:$0xf]
  %v35 = vld [vmem:[%s1 + $0x24] sm:$0xf]
  %v36 = vld [vmem:[%s1 + $0x28] sm:$0xf]
  %v37 = vld [vmem:[%s1 + $0x2c] sm:$0xf]
  %v38 = vld [vmem:[%s1 + $0x30] sm:$0xf]
  %v39 = vld [vmem:[%s1 + $0x34] sm:$0xf]
  %v40 = vld [vmem:[%s1 + $0x38] sm:$0xf]
  %v41 = vld [vmem:[%s1 + $0x3c] sm:$0xf]
  %v42 = vld [vmem:[%s1 + $0x40] sm:$0xf]
  %v43 = vld [vmem:[%s1 + $0x44] sm:$0xf]
  %v44 = vld [vmem:[%s1 + $0x48] sm:$0xf]
  %v45 = vld [vmem:[%s1 + $0x4c] sm:$0xf]
  %v46 = vld [vmem:[%s1 + $0x50] sm:$0xf]
  %v47 = vld [vmem:[%s1 + $0x54] sm:$0xf]
  %v48 = vld [vmem:[%s1 + $0x58] sm:$0xf]
  %v49 = vld [vmem:[%s1 + $0x5c] sm:$0xf]
  %v50 = vld [vmem:[%s1 + $0x60] sm:$0xf]
  %v51 = vld [vmem:[%s1 + $0x64] sm:$0xf]
  %v52 = vld [vmem:[%s1 + $0x68] sm:$0xf]
  %v53 = vld [vmem:[%s1 + $0x6c] sm:$0xf]
  %v54 = vld [vmem:[%s1 + $0x70] sm:$0xf]
  %v55 = vld [vmem:[%s1 + $0x74] sm:$0xf]
  %v56 = vld [vmem:[%s1 + $0x78] sm:$0xf]
  %v57 = vld [vmem:[%s1 + $0x7c] sm:$0xf]
  %v58 = vld [vmem:[%s0] sm:$0xff]
  %v60 = vunpack.c.l.b16 %v58
  %v61 = vunpack.c.h.b16 %v58
  %v62 = vpack.c.b16 %v60, %v60
  %v63 = vpack.c.b16 %v61, %v61
  %v98 = vunpack.c.l.b16 %v26
  %v99 = vunpack.c.l.b16 %v27
  %v100 = vunpack.c.l.b16 %v28
  %v101 = vunpack.c.l.b16 %v29
  %v102 = vunpack.c.l.b16 %v30
  %v103 = vunpack.c.l.b16 %v31
  %v104 = vunpack.c.l.b16 %v32
  %v105 = vunpack.c.l.b16 %v33
  %v106 = vunpack.c.l.b16 %v34
  %v107 = vunpack.c.l.b16 %v35
  %v108 = vunpack.c.l.b16 %v36
  %v109 = vunpack.c.l.b16 %v37
  %v110 = vunpack.c.l.b16 %v38
  %v111 = vunpack.c.l.b16 %v39
  %v112 = vunpack.c.l.b16 %v40
  %v113 = vunpack.c.l.b16 %v41
  %v114 = vunpack.c.l.b16 %v42
  %v115 = vunpack.c.l.b16 %v43
  %v116 = vunpack.c.l.b16 %v44
  %v117 = vunpack.c.l.b16 %v45
  %v118 = vunpack.c.l.b16 %v46
  %v119 = vunpack.c.l.b16 %v47
  %v120 = vunpack.c.l.b16 %v48
  %v121 = vunpack.c.l.b16 %v49
  %v122 = vunpack.c.l.b16 %v50
  %v123 = vunpack.c.l.b16 %v51
  %v124 = vunpack.c.l.b16 %v52
  %v125 = vunpack.c.l.b16 %v53
  %v126 = vunpack.c.l.b16 %v54
  %v127 = vunpack.c.l.b16 %v55
  %v128 = vunpack.c.l.b16 %v56
  %v129 = vunpack.c.l.b16 %v57
  %v130 = vpack.c.b16 %v99, %v98
  %v131 = vpack.c.b16 %v101, %v100
  %v132 = vpack.c.b16 %v103, %v102
  %v133 = vpack.c.b16 %v105, %v104
  %v134 = vpack.c.b16 %v107, %v106
  %v135 = vpack.c.b16 %v109, %v108
  %v136 = vpack.c.b16 %v111, %v110
  %v137 = vpack.c.b16 %v113, %v112
  %v138 = vpack.c.b16 %v115, %v114
  %v139 = vpack.c.b16 %v117, %v116
  %v140 = vpack.c.b16 %v119, %v118
  %v141 = vpack.c.b16 %v121, %v120
  %v142 = vpack.c.b16 %v123, %v122
  %v143 = vpack.c.b16 %v125, %v124
  %v144 = vpack.c.b16 %v127, %v126
  %v145 = vpack.c.b16 %v129, %v128
  %162 = vmatpush.bf16.msra.mxu0 %v137
  %163 = vmatpush.bf16.msra.mxu0 %v136
  %164 = vmatpush.bf16.msra.mxu0 %v135
  %165 = vmatpush.bf16.msra.mxu0 %v134
  %166 = vmatpush.bf16.msra.mxu0 %v133
  %167 = vmatpush.bf16.msra.mxu0 %v132
  %168 = vmatpush.bf16.msra.mxu0 %v131
  %169 = vmatpush.bf16.msra.mxu0 %v130
  %170 = vmatmul.bf16.gmra.mxu0 %v62
  %v171 = vpop.f32.mrf.mxu0
  %v172 = vadd.f32 0.0, %v171
  %v173 = vpop.f32.mrf.mxu0
  %174 = vdwg.mxu0
  %175 = vmatpush.bf16.msra.mxu0 %v145
  %176 = vmatpush.bf16.msra.mxu0 %v144
  %177 = vmatpush.bf16.msra.mxu0 %v143
  %178 = vmatpush.bf16.msra.mxu0 %v142
  %179 = vmatpush.bf16.msra.mxu0 %v141
  %180 = vmatpush.bf16.msra.mxu0 %v140
  %181 = vmatpush.bf16.msra.mxu0 %v139
  %182 = vmatpush.bf16.msra.mxu0 %v138
  %183 = vmatmul.bf16.gmra.mxu0 %v63
  %v184 = vpop.f32.mrf.mxu0
  %v185 = vadd.f32 %v172, %v184
  %v186 = vpop.f32.mrf.mxu0
  %187 = vdwg.mxu0
  %s188 = scalar_lea.vmem %s0, 8
  %v189 = vld [vmem:[%s188] sm:$0xff]
  %v191 = vunpack.c.l.b16 %v189
  %v192 = vunpack.c.h.b16 %v189
  %v193 = vpack.c.b16 %v191, %v191
  %v194 = vpack.c.b16 %v192, %v192
  %197 = vmatpush.bf16.msra.mxu0 %v137
  %198 = vmatpush.bf16.msra.mxu0 %v136
  %199 = vmatpush.bf16.msra.mxu0 %v135
  %200 = vmatpush.bf16.msra.mxu0 %v134
  %201 = vmatpush.bf16.msra.mxu0 %v133
  %202 = vmatpush.bf16.msra.mxu0 %v132
  %203 = vmatpush.bf16.msra.mxu0 %v131
  %204 = vmatpush.bf16.msra.mxu0 %v130
  %205 = vmatmul.bf16.gmra.mxu0 %v193
  %v206 = vpop.f32.mrf.mxu0
  %v207 = vadd.f32 0.0, %v206
  %v208 = vpop.f32.mrf.mxu0
  %209 = vdwg.mxu0
  %210 = vmatpush.bf16.msra.mxu0 %v145
  %211 = vmatpush.bf16.msra.mxu0 %v144
  %212 = vmatpush.bf16.msra.mxu0 %v143
  %213 = vmatpush.bf16.msra.mxu0 %v142
  %214 = vmatpush.bf16.msra.mxu0 %v141
  %215 = vmatpush.bf16.msra.mxu0 %v140
  %216 = vmatpush.bf16.msra.mxu0 %v139
  %217 = vmatpush.bf16.msra.mxu0 %v138
  %218 = vmatmul.bf16.gmra.mxu0 %v194
  %v219 = vpop.f32.mrf.mxu0
  %v220 = vadd.f32 %v207, %v219
  %v221 = vpop.f32.mrf.mxu0
  %222 = vdwg.mxu0
  %v223 = vmax.f32 %v185, %v220
  %s224 = scalar_lea.vmem %s0, 16
  %v225 = vld [vmem:[%s224] sm:$0xff]
  %v227 = vunpack.c.l.b16 %v225
  %v228 = vunpack.c.h.b16 %v225
  %v229 = vpack.c.b16 %v227, %v227
  %v230 = vpack.c.b16 %v228, %v228
  %233 = vmatpush.bf16.msra.mxu0 %v137
  %234 = vmatpush.bf16.msra.mxu0 %v136
  %235 = vmatpush.bf16.msra.mxu0 %v135
  %236 = vmatpush.bf16.msra.mxu0 %v134
  %237 = vmatpush.bf16.msra.mxu0 %v133
  %238 = vmatpush.bf16.msra.mxu0 %v132
  %239 = vmatpush.bf16.msra.mxu0 %v131
  %240 = vmatpush.bf16.msra.mxu0 %v130
  %241 = vmatmul.bf16.gmra.mxu0 %v229
  %v242 = vpop.f32.mrf.mxu0
  %v243 = vadd.f32 0.0, %v242
  %v244 = vpop.f32.mrf.mxu0
  %245 = vdwg.mxu0
  %246 = vmatpush.bf16.msra.mxu0 %v145
  %247 = vmatpush.bf16.msra.mxu0 %v144
  %248 = vmatpush.bf16.msra.mxu0 %v143
  %249 = vmatpush.bf16.msra.mxu0 %v142
  %250 = vmatpush.bf16.msra.mxu0 %v141
  %251 = vmatpush.bf16.msra.mxu0 %v140
  %252 = vmatpush.bf16.msra.mxu0 %v139
  %253 = vmatpush.bf16.msra.mxu0 %v138
  %254 = vmatmul.bf16.gmra.mxu0 %v230
  %v255 = vpop.f32.mrf.mxu0
  %v256 = vadd.f32 %v243, %v255
  %v257 = vpop.f32.mrf.mxu0
  %258 = vdwg.mxu0
  %v259 = vmax.f32 %v223, %v256
  %s260 = scalar_lea.vmem %s0, 24
  %v261 = vld [vmem:[%s260] sm:$0xff]
  %v263 = vunpack.c.l.b16 %v261
  %v264 = vunpack.c.h.b16 %v261
  %v265 = vpack.c.b16 %v263, %v263
  %v266 = vpack.c.b16 %v264, %v264
  %269 = vmatpush.bf16.msra.mxu0 %v137
  %270 = vmatpush.bf16.msra.mxu0 %v136
  %271 = vmatpush.bf16.msra.mxu0 %v135
  %272 = vmatpush.bf16.msra.mxu0 %v134
  %273 = vmatpush.bf16.msra.mxu0 %v133
  %274 = vmatpush.bf16.msra.mxu0 %v132
  %275 = vmatpush.bf16.msra.mxu0 %v131
  %276 = vmatpush.bf16.msra.mxu0 %v130
  %277 = vmatmul.bf16.gmra.mxu0 %v265
  %v278 = vpop.f32.mrf.mxu0
  %v279 = vadd.f32 0.0, %v278
  %v280 = vpop.f32.mrf.mxu0
  %281 = vdwg.mxu0
  %282 = vmatpush.bf16.msra.mxu0 %v145
  %283 = vmatpush.bf16.msra.mxu0 %v144
  %284 = vmatpush.bf16.msra.mxu0 %v143
  %285 = vmatpush.bf16.msra.mxu0 %v142
  %286 = vmatpush.bf16.msra.mxu0 %v141
  %287 = vmatpush.bf16.msra.mxu0 %v140
  %288 = vmatpush.bf16.msra.mxu0 %v139
  %289 = vmatpush.bf16.msra.mxu0 %v138
  %290 = vmatmul.bf16.gmra.mxu0 %v266
  %v291 = vpop.f32.mrf.mxu0
  %v292 = vadd.f32 %v279, %v291
  %v293 = vpop.f32.mrf.mxu0
  %294 = vdwg.mxu0
  %v295 = vmax.f32 %v259, %v292
  %v296 = vld [vmem:[%s2] sm:$0x1]
  %v298 = vperm.slane %v296, 0
  %v300 = vadd.f32 %v295, %v298
  %v301 = vmax.f32 %v300, 0.0
  %v302 = vpack.c.bf16 %v301, %v301
  %v303 = vld [vmem:[%s3] sm:$0xf]
  %v304 = vld [vmem:[%s3 + $0x4] sm:$0xf]
  %v305 = vld [vmem:[%s3 + $0x8] sm:$0xf]
  %v306 = vld [vmem:[%s3 + $0xc] sm:$0xf]
  %v307 = vld [vmem:[%s3 + $0x10] sm:$0xf]
  %v308 = vld [vmem:[%s3 + $0x14] sm:$0xf]
  %v309 = vld [vmem:[%s3 + $0x18] sm:$0xf]
  %v310 = vld [vmem:[%s3 + $0x1c] sm:$0xf]
  %v311 = vld [vmem:[%s3 + $0x20] sm:$0xf]
  %v312 = vld [vmem:[%s3 + $0x24] sm:$0xf]
  %v313 = vld [vmem:[%s3 + $0x28] sm:$0xf]
  %v314 = vld [vmem:[%s3 + $0x2c] sm:$0xf]
  %v315 = vld [vmem:[%s3 + $0x30] sm:$0xf]
  %v316 = vld [vmem:[%s3 + $0x34] sm:$0xf]
  %v317 = vld [vmem:[%s3 + $0x38] sm:$0xf]
  %v318 = vld [vmem:[%s3 + $0x3c] sm:$0xf]
  %s319 = scalar_lea.vmem %s0, 32
  %v320 = vld [vmem:[%s319] sm:$0xff]
  %v322 = vunpack.c.l.b16 %v320
  %v323 = vunpack.c.h.b16 %v320
  %v324 = vpack.c.b16 %v322, %v322
  %v325 = vpack.c.b16 %v323, %v323
  %328 = vmatpush.bf16.msra.mxu0 %v137
  %329 = vmatpush.bf16.msra.mxu0 %v136
  %330 = vmatpush.bf16.msra.mxu0 %v135
  %331 = vmatpush.bf16.msra.mxu0 %v134
  %332 = vmatpush.bf16.msra.mxu0 %v133
  %333 = vmatpush.bf16.msra.mxu0 %v132
  %334 = vmatpush.bf16.msra.mxu0 %v131
  %335 = vmatpush.bf16.msra.mxu0 %v130
  %336 = vmatmul.bf16.gmra.mxu0 %v324
  %v337 = vpop.f32.mrf.mxu0
  %v338 = vadd.f32 0.0, %v337
  %v339 = vpop.f32.mrf.mxu0
  %340 = vdwg.mxu0
  %341 = vmatpush.bf16.msra.mxu0 %v145
  %342 = vmatpush.bf16.msra.mxu0 %v144
  %343 = vmatpush.bf16.msra.mxu0 %v143
  %344 = vmatpush.bf16.msra.mxu0 %v142
  %345 = vmatpush.bf16.msra.mxu0 %v141
  %346 = vmatpush.bf16.msra.mxu0 %v140
  %347 = vmatpush.bf16.msra.mxu0 %v139
  %348 = vmatpush.bf16.msra.mxu0 %v138
  %349 = vmatmul.bf16.gmra.mxu0 %v325
  %v350 = vpop.f32.mrf.mxu0
  %v351 = vadd.f32 %v338, %v350
  %v352 = vpop.f32.mrf.mxu0
  %353 = vdwg.mxu0
  %s354 = scalar_lea.vmem %s0, 40
  %v355 = vld [vmem:[%s354] sm:$0xff]
  %v357 = vunpack.c.l.b16 %v355
  %v358 = vunpack.c.h.b16 %v355
  %v359 = vpack.c.b16 %v357, %v357
  %v360 = vpack.c.b16 %v358, %v358
  %363 = vmatpush.bf16.msra.mxu0 %v137
  %364 = vmatpush.bf16.msra.mxu0 %v136
  %365 = vmatpush.bf16.msra.mxu0 %v135
  %366 = vmatpush.bf16.msra.mxu0 %v134
  %367 = vmatpush.bf16.msra.mxu0 %v133
  %368 = vmatpush.bf16.msra.mxu0 %v132
  %369 = vmatpush.bf16.msra.mxu0 %v131
  %370 = vmatpush.bf16.msra.mxu0 %v130
  %371 = vmatmul.bf16.gmra.mxu0 %v359
  %v372 = vpop.f32.mrf.mxu0
  %v373 = vadd.f32 0.0, %v372
  %v374 = vpop.f32.mrf.mxu0
  %375 = vdwg.mxu0
  %376 = vmatpush.bf16.msra.mxu0 %v145
  %377 = vmatpush.bf16.msra.mxu0 %v144
  %378 = vmatpush.bf16.msra.mxu0 %v143
  %379 = vmatpush.bf16.msra.mxu0 %v142
  %380 = vmatpush.bf16.msra.mxu0 %v141
  %381 = vmatpush.bf16.msra.mxu0 %v140
  %382 = vmatpush.bf16.msra.mxu0 %v139
  %383 = vmatpush.bf16.msra.mxu0 %v138
  %384 = vmatmul.bf16.gmra.mxu0 %v360
  %v385 = vpop.f32.mrf.mxu0
  %v386 = vadd.f32 %v373, %v385
  %v387 = vpop.f32.mrf.mxu0
  %388 = vdwg.mxu0
  %v389 = vmax.f32 %v351, %v386
  %s390 = scalar_lea.vmem %s0, 48
  %v391 = vld [vmem:[%s390] sm:$0xff]
  %v393 = vunpack.c.l.b16 %v391
  %v394 = vunpack.c.h.b16 %v391
  %v395 = vpack.c.b16 %v393, %v393
  %v396 = vpack.c.b16 %v394, %v394
  %399 = vmatpush.bf16.msra.mxu0 %v137
  %400 = vmatpush.bf16.msra.mxu0 %v136
  %401 = vmatpush.bf16.msra.mxu0 %v135
  %402 = vmatpush.bf16.msra.mxu0 %v134
  %403 = vmatpush.bf16.msra.mxu0 %v133
  %404 = vmatpush.bf16.msra.mxu0 %v132
  %405 = vmatpush.bf16.msra.mxu0 %v131
  %406 = vmatpush.bf16.msra.mxu0 %v130
  %407 = vmatmul.bf16.gmra.mxu0 %v395
  %v408 = vpop.f32.mrf.mxu0
  %v409 = vadd.f32 0.0, %v408
  %v410 = vpop.f32.mrf.mxu0
  %411 = vdwg.mxu0
  %412 = vmatpush.bf16.msra.mxu0 %v145
  %413 = vmatpush.bf16.msra.mxu0 %v144
  %414 = vmatpush.bf16.msra.mxu0 %v143
  %415 = vmatpush.bf16.msra.mxu0 %v142
  %416 = vmatpush.bf16.msra.mxu0 %v141
  %417 = vmatpush.bf16.msra.mxu0 %v140
  %418 = vmatpush.bf16.msra.mxu0 %v139
  %419 = vmatpush.bf16.msra.mxu0 %v138
  %420 = vmatmul.bf16.gmra.mxu0 %v396
  %v421 = vpop.f32.mrf.mxu0
  %v422 = vadd.f32 %v409, %v421
  %v423 = vpop.f32.mrf.mxu0
  %424 = vdwg.mxu0
  %v425 = vmax.f32 %v389, %v422
  %s426 = scalar_lea.vmem %s0, 56
  %v427 = vld [vmem:[%s426] sm:$0xff]
  %v429 = vunpack.c.l.b16 %v427
  %v430 = vunpack.c.h.b16 %v427
  %v431 = vpack.c.b16 %v429, %v429
  %v432 = vpack.c.b16 %v430, %v430
  %435 = vmatpush.bf16.msra.mxu0 %v137
  %436 = vmatpush.bf16.msra.mxu0 %v136
  %437 = vmatpush.bf16.msra.mxu0 %v135
  %438 = vmatpush.bf16.msra.mxu0 %v134
  %439 = vmatpush.bf16.msra.mxu0 %v133
  %440 = vmatpush.bf16.msra.mxu0 %v132
  %441 = vmatpush.bf16.msra.mxu0 %v131
  %442 = vmatpush.bf16.msra.mxu0 %v130
  %443 = vmatmul.bf16.gmra.mxu0 %v431
  %v444 = vpop.f32.mrf.mxu0
  %v445 = vadd.f32 0.0, %v444
  %v446 = vpop.f32.mrf.mxu0
  %447 = vdwg.mxu0
  %448 = vmatpush.bf16.msra.mxu0 %v145
  %449 = vmatpush.bf16.msra.mxu0 %v144
  %450 = vmatpush.bf16.msra.mxu0 %v143
  %451 = vmatpush.bf16.msra.mxu0 %v142
  %452 = vmatpush.bf16.msra.mxu0 %v141
  %453 = vmatpush.bf16.msra.mxu0 %v140
  %454 = vmatpush.bf16.msra.mxu0 %v139
  %455 = vmatpush.bf16.msra.mxu0 %v138
  %456 = vmatmul.bf16.gmra.mxu0 %v432
  %v457 = vpop.f32.mrf.mxu0
  %v458 = vadd.f32 %v445, %v457
  %v459 = vpop.f32.mrf.mxu0
  %460 = vdwg.mxu0
  %v461 = vmax.f32 %v425, %v458
  %v462 = vadd.f32 %v461, %v298
  %v463 = vmax.f32 %v462, 0.0
  %v464 = vpack.c.bf16 %v463, %v463
  %s465 = scalar_lea.vmem %s3, 64
  %v466 = vld [vmem:[%s465] sm:$0xf]
  %v467 = vld [vmem:[%s465 + $0x4] sm:$0xf]
  %v468 = vld [vmem:[%s465 + $0x8] sm:$0xf]
  %v469 = vld [vmem:[%s465 + $0xc] sm:$0xf]
  %v470 = vld [vmem:[%s465 + $0x10] sm:$0xf]
  %v471 = vld [vmem:[%s465 + $0x14] sm:$0xf]
  %v472 = vld [vmem:[%s465 + $0x18] sm:$0xf]
  %v473 = vld [vmem:[%s465 + $0x1c] sm:$0xf]
  %v474 = vld [vmem:[%s465 + $0x20] sm:$0xf]
  %v475 = vld [vmem:[%s465 + $0x24] sm:$0xf]
  %v476 = vld [vmem:[%s465 + $0x28] sm:$0xf]
  %v477 = vld [vmem:[%s465 + $0x2c] sm:$0xf]
  %v478 = vld [vmem:[%s465 + $0x30] sm:$0xf]
  %v479 = vld [vmem:[%s465 + $0x34] sm:$0xf]
  %v480 = vld [vmem:[%s465 + $0x38] sm:$0xf]
  %v481 = vld [vmem:[%s465 + $0x3c] sm:$0xf]
  %v498 = vunpack.c.l.b16 %v466
  %v499 = vunpack.c.l.b16 %v467
  %v500 = vunpack.c.l.b16 %v468
  %v501 = vunpack.c.l.b16 %v469
  %v502 = vunpack.c.l.b16 %v470
  %v503 = vunpack.c.l.b16 %v471
  %v504 = vunpack.c.l.b16 %v472
  %v505 = vunpack.c.l.b16 %v473
  %v506 = vunpack.c.l.b16 %v474
  %v507 = vunpack.c.l.b16 %v475
  %v508 = vunpack.c.l.b16 %v476
  %v509 = vunpack.c.l.b16 %v477
  %v510 = vunpack.c.l.b16 %v478
  %v511 = vunpack.c.l.b16 %v479
  %v512 = vunpack.c.l.b16 %v480
  %v513 = vunpack.c.l.b16 %v481
  %v514 = vpack.c.b16 %v499, %v498
  %v515 = vpack.c.b16 %v501, %v500
  %v516 = vpack.c.b16 %v503, %v502
  %v517 = vpack.c.b16 %v505, %v504
  %v518 = vpack.c.b16 %v507, %v506
  %v519 = vpack.c.b16 %v509, %v508
  %v520 = vpack.c.b16 %v511, %v510
  %v521 = vpack.c.b16 %v513, %v512
  %530 = vmatpush.bf16.msra.mxu0 %v521
  %531 = vmatpush.bf16.msra.mxu0 %v520
  %532 = vmatpush.bf16.msra.mxu0 %v519
  %533 = vmatpush.bf16.msra.mxu0 %v518
  %534 = vmatpush.bf16.msra.mxu0 %v517
  %535 = vmatpush.bf16.msra.mxu0 %v516
  %536 = vmatpush.bf16.msra.mxu0 %v515
  %537 = vmatpush.bf16.msra.mxu0 %v514
  %538 = vmatmul.bf16.gmra.mxu0 %v464
  %v539 = vpop.f32.mrf.mxu0
  %v540 = vadd.f32 0.0, %v539
  %v541 = vpop.f32.mrf.mxu0
  %542 = vdwg.mxu0
  %v559 = vunpack.c.l.b16 %v303
  %v560 = vunpack.c.l.b16 %v304
  %v561 = vunpack.c.l.b16 %v305
  %v562 = vunpack.c.l.b16 %v306
  %v563 = vunpack.c.l.b16 %v307
  %v564 = vunpack.c.l.b16 %v308
  %v565 = vunpack.c.l.b16 %v309
  %v566 = vunpack.c.l.b16 %v310
  %v567 = vunpack.c.l.b16 %v311
  %v568 = vunpack.c.l.b16 %v312
  %v569 = vunpack.c.l.b16 %v313
  %v570 = vunpack.c.l.b16 %v314
  %v571 = vunpack.c.l.b16 %v315
  %v572 = vunpack.c.l.b16 %v316
  %v573 = vunpack.c.l.b16 %v317
  %v574 = vunpack.c.l.b16 %v318
  %v575 = vpack.c.b16 %v560, %v559
  %v576 = vpack.c.b16 %v562, %v561
  %v577 = vpack.c.b16 %v564, %v563
  %v578 = vpack.c.b16 %v566, %v565
  %v579 = vpack.c.b16 %v568, %v567
  %v580 = vpack.c.b16 %v570, %v569
  %v581 = vpack.c.b16 %v572, %v571
  %v582 = vpack.c.b16 %v574, %v573
  %591 = vmatpush.bf16.msra.mxu0 %v582
  %592 = vmatpush.bf16.msra.mxu0 %v581
  %593 = vmatpush.bf16.msra.mxu0 %v580
  %594 = vmatpush.bf16.msra.mxu0 %v579
  %595 = vmatpush.bf16.msra.mxu0 %v578
  %596 = vmatpush.bf16.msra.mxu0 %v577
  %597 = vmatpush.bf16.msra.mxu0 %v576
  %598 = vmatpush.bf16.msra.mxu0 %v575
  %599 = vmatmul.bf16.gmra.mxu0 %v302
  %v600 = vpop.f32.mrf.mxu0
  %v601 = vadd.f32 %v540, %v600
  %v602 = vpop.f32.mrf.mxu0
  %603 = vdwg.mxu0
  %s604 = scalar_lea.vmem %s0, 64
  %v605 = vld [vmem:[%s604] sm:$0xff]
  %v607 = vunpack.c.l.b16 %v605
  %v608 = vunpack.c.h.b16 %v605
  %v609 = vpack.c.b16 %v607, %v607
  %v610 = vpack.c.b16 %v608, %v608
  %613 = vmatpush.bf16.msra.mxu0 %v137
  %614 = vmatpush.bf16.msra.mxu0 %v136
  %615 = vmatpush.bf16.msra.mxu0 %v135
  %616 = vmatpush.bf16.msra.mxu0 %v134
  %617 = vmatpush.bf16.msra.mxu0 %v133
  %618 = vmatpush.bf16.msra.mxu0 %v132
  %619 = vmatpush.bf16.msra.mxu0 %v131
  %620 = vmatpush.bf16.msra.mxu0 %v130
  %621 = vmatmul.bf16.gmra.mxu0 %v609
  %v622 = vpop.f32.mrf.mxu0
  %v623 = vadd.f32 0.0, %v622
  %v624 = vpop.f32.mrf.mxu0
  %625 = vdwg.mxu0
  %626 = vmatpush.bf16.msra.mxu0 %v145
  %627 = vmatpush.bf16.msra.mxu0 %v144
  %628 = vmatpush.bf16.msra.mxu0 %v143
  %629 = vmatpush.bf16.msra.mxu0 %v142
  %630 = vmatpush.bf16.msra.mxu0 %v141
  %631 = vmatpush.bf16.msra.mxu0 %v140
  %632 = vmatpush.bf16.msra.mxu0 %v139
  %633 = vmatpush.bf16.msra.mxu0 %v138
  %634 = vmatmul.bf16.gmra.mxu0 %v610
  %v635 = vpop.f32.mrf.mxu0
  %v636 = vadd.f32 %v623, %v635
  %v637 = vpop.f32.mrf.mxu0
  %638 = vdwg.mxu0
  %s639 = scalar_lea.vmem %s0, 72
  %v640 = vld [vmem:[%s639] sm:$0xff]
  %v642 = vunpack.c.l.b16 %v640
  %v643 = vunpack.c.h.b16 %v640
  %v644 = vpack.c.b16 %v642, %v642
  %v645 = vpack.c.b16 %v643, %v643
  %648 = vmatpush.bf16.msra.mxu0 %v137
  %649 = vmatpush.bf16.msra.mxu0 %v136
  %650 = vmatpush.bf16.msra.mxu0 %v135
  %651 = vmatpush.bf16.msra.mxu0 %v134
  %652 = vmatpush.bf16.msra.mxu0 %v133
  %653 = vmatpush.bf16.msra.mxu0 %v132
  %654 = vmatpush.bf16.msra.mxu0 %v131
  %655 = vmatpush.bf16.msra.mxu0 %v130
  %656 = vmatmul.bf16.gmra.mxu0 %v644
  %v657 = vpop.f32.mrf.mxu0
  %v658 = vadd.f32 0.0, %v657
  %v659 = vpop.f32.mrf.mxu0
  %660 = vdwg.mxu0
  %661 = vmatpush.bf16.msra.mxu0 %v145
  %662 = vmatpush.bf16.msra.mxu0 %v144
  %663 = vmatpush.bf16.msra.mxu0 %v143
  %664 = vmatpush.bf16.msra.mxu0 %v142
  %665 = vmatpush.bf16.msra.mxu0 %v141
  %666 = vmatpush.bf16.msra.mxu0 %v140
  %667 = vmatpush.bf16.msra.mxu0 %v139
  %668 = vmatpush.bf16.msra.mxu0 %v138
  %669 = vmatmul.bf16.gmra.mxu0 %v645
  %v670 = vpop.f32.mrf.mxu0
  %v671 = vadd.f32 %v658, %v670
  %v672 = vpop.f32.mrf.mxu0
  %673 = vdwg.mxu0
  %v674 = vmax.f32 %v636, %v671
  %s675 = scalar_lea.vmem %s0, 80
  %v676 = vld [vmem:[%s675] sm:$0xff]
  %v678 = vunpack.c.l.b16 %v676
  %v679 = vunpack.c.h.b16 %v676
  %v680 = vpack.c.b16 %v678, %v678
  %v681 = vpack.c.b16 %v679, %v679
  %684 = vmatpush.bf16.msra.mxu0 %v137
  %685 = vmatpush.bf16.msra.mxu0 %v136
  %686 = vmatpush.bf16.msra.mxu0 %v135
  %687 = vmatpush.bf16.msra.mxu0 %v134
  %688 = vmatpush.bf16.msra.mxu0 %v133
  %689 = vmatpush.bf16.msra.mxu0 %v132
  %690 = vmatpush.bf16.msra.mxu0 %v131
  %691 = vmatpush.bf16.msra.mxu0 %v130
  %692 = vmatmul.bf16.gmra.mxu0 %v680
  %v693 = vpop.f32.mrf.mxu0
  %v694 = vadd.f32 0.0, %v693
  %v695 = vpop.f32.mrf.mxu0
  %696 = vdwg.mxu0
  %697 = vmatpush.bf16.msra.mxu0 %v145
  %698 = vmatpush.bf16.msra.mxu0 %v144
  %699 = vmatpush.bf16.msra.mxu0 %v143
  %700 = vmatpush.bf16.msra.mxu0 %v142
  %701 = vmatpush.bf16.msra.mxu0 %v141
  %702 = vmatpush.bf16.msra.mxu0 %v140
  %703 = vmatpush.bf16.msra.mxu0 %v139
  %704 = vmatpush.bf16.msra.mxu0 %v138
  %705 = vmatmul.bf16.gmra.mxu0 %v681
  %v706 = vpop.f32.mrf.mxu0
  %v707 = vadd.f32 %v694, %v706
  %v708 = vpop.f32.mrf.mxu0
  %709 = vdwg.mxu0
  %v710 = vmax.f32 %v674, %v707
  %s711 = scalar_lea.vmem %s0, 88
  %v712 = vld [vmem:[%s711] sm:$0xff]
  %v714 = vunpack.c.l.b16 %v712
  %v715 = vunpack.c.h.b16 %v712
  %v716 = vpack.c.b16 %v714, %v714
  %v717 = vpack.c.b16 %v715, %v715
  %720 = vmatpush.bf16.msra.mxu0 %v137
  %721 = vmatpush.bf16.msra.mxu0 %v136
  %722 = vmatpush.bf16.msra.mxu0 %v135
  %723 = vmatpush.bf16.msra.mxu0 %v134
  %724 = vmatpush.bf16.msra.mxu0 %v133
  %725 = vmatpush.bf16.msra.mxu0 %v132
  %726 = vmatpush.bf16.msra.mxu0 %v131
  %727 = vmatpush.bf16.msra.mxu0 %v130
  %728 = vmatmul.bf16.gmra.mxu0 %v716
  %v729 = vpop.f32.mrf.mxu0
  %v730 = vadd.f32 0.0, %v729
  %v731 = vpop.f32.mrf.mxu0
  %732 = vdwg.mxu0
  %733 = vmatpush.bf16.msra.mxu0 %v145
  %734 = vmatpush.bf16.msra.mxu0 %v144
  %735 = vmatpush.bf16.msra.mxu0 %v143
  %736 = vmatpush.bf16.msra.mxu0 %v142
  %737 = vmatpush.bf16.msra.mxu0 %v141
  %738 = vmatpush.bf16.msra.mxu0 %v140
  %739 = vmatpush.bf16.msra.mxu0 %v139
  %740 = vmatpush.bf16.msra.mxu0 %v138
  %741 = vmatmul.bf16.gmra.mxu0 %v717
  %v742 = vpop.f32.mrf.mxu0
  %v743 = vadd.f32 %v730, %v742
  %v744 = vpop.f32.mrf.mxu0
  %745 = vdwg.mxu0
  %v746 = vmax.f32 %v710, %v743
  %v747 = vadd.f32 %v746, %v298
  %v748 = vmax.f32 %v747, 0.0
  %v749 = vpack.c.bf16 %v748, %v748
  %s750 = scalar_lea.vmem %s3, 128
  %v751 = vld [vmem:[%s750] sm:$0xf]
  %v752 = vld [vmem:[%s750 + $0x4] sm:$0xf]
  %v753 = vld [vmem:[%s750 + $0x8] sm:$0xf]
  %v754 = vld [vmem:[%s750 + $0xc] sm:$0xf]
  %v755 = vld [vmem:[%s750 + $0x10] sm:$0xf]
  %v756 = vld [vmem:[%s750 + $0x14] sm:$0xf]
  %v757 = vld [vmem:[%s750 + $0x18] sm:$0xf]
  %v758 = vld [vmem:[%s750 + $0x1c] sm:$0xf]
  %v759 = vld [vmem:[%s750 + $0x20] sm:$0xf]
  %v760 = vld [vmem:[%s750 + $0x24] sm:$0xf]
  %v761 = vld [vmem:[%s750 + $0x28] sm:$0xf]
  %v762 = vld [vmem:[%s750 + $0x2c] sm:$0xf]
  %v763 = vld [vmem:[%s750 + $0x30] sm:$0xf]
  %v764 = vld [vmem:[%s750 + $0x34] sm:$0xf]
  %v765 = vld [vmem:[%s750 + $0x38] sm:$0xf]
  %v766 = vld [vmem:[%s750 + $0x3c] sm:$0xf]
  %v783 = vunpack.c.l.b16 %v751
  %v784 = vunpack.c.l.b16 %v752
  %v785 = vunpack.c.l.b16 %v753
  %v786 = vunpack.c.l.b16 %v754
  %v787 = vunpack.c.l.b16 %v755
  %v788 = vunpack.c.l.b16 %v756
  %v789 = vunpack.c.l.b16 %v757
  %v790 = vunpack.c.l.b16 %v758
  %v791 = vunpack.c.l.b16 %v759
  %v792 = vunpack.c.l.b16 %v760
  %v793 = vunpack.c.l.b16 %v761
  %v794 = vunpack.c.l.b16 %v762
  %v795 = vunpack.c.l.b16 %v763
  %v796 = vunpack.c.l.b16 %v764
  %v797 = vunpack.c.l.b16 %v765
  %v798 = vunpack.c.l.b16 %v766
  %v799 = vpack.c.b16 %v784, %v783
  %v800 = vpack.c.b16 %v786, %v785
  %v801 = vpack.c.b16 %v788, %v787
  %v802 = vpack.c.b16 %v790, %v789
  %v803 = vpack.c.b16 %v792, %v791
  %v804 = vpack.c.b16 %v794, %v793
  %v805 = vpack.c.b16 %v796, %v795
  %v806 = vpack.c.b16 %v798, %v797
  %815 = vmatpush.bf16.msra.mxu0 %v806
  %816 = vmatpush.bf16.msra.mxu0 %v805
  %817 = vmatpush.bf16.msra.mxu0 %v804
  %818 = vmatpush.bf16.msra.mxu0 %v803
  %819 = vmatpush.bf16.msra.mxu0 %v802
  %820 = vmatpush.bf16.msra.mxu0 %v801
  %821 = vmatpush.bf16.msra.mxu0 %v800
  %822 = vmatpush.bf16.msra.mxu0 %v799
  %823 = vmatmul.bf16.gmra.mxu0 %v749
  %v824 = vpop.f32.mrf.mxu0
  %v825 = vadd.f32 0.0, %v824
  %v826 = vpop.f32.mrf.mxu0
  %827 = vdwg.mxu0
  %v828 = vadd.f32 %v601, %v825
  %s829 = scalar_lea.vmem %s0, 96
  %v830 = vld [vmem:[%s829] sm:$0xff]
  %v832 = vunpack.c.l.b16 %v830
  %v833 = vunpack.c.h.b16 %v830
  %v834 = vpack.c.b16 %v832, %v832
  %v835 = vpack.c.b16 %v833, %v833
  %838 = vmatpush.bf16.msra.mxu0 %v137
  %839 = vmatpush.bf16.msra.mxu0 %v136
  %840 = vmatpush.bf16.msra.mxu0 %v135
  %841 = vmatpush.bf16.msra.mxu0 %v134
  %842 = vmatpush.bf16.msra.mxu0 %v133
  %843 = vmatpush.bf16.msra.mxu0 %v132
  %844 = vmatpush.bf16.msra.mxu0 %v131
  %845 = vmatpush.bf16.msra.mxu0 %v130
  %846 = vmatmul.bf16.gmra.mxu0 %v834
  %v847 = vpop.f32.mrf.mxu0
  %v848 = vadd.f32 0.0, %v847
  %v849 = vpop.f32.mrf.mxu0
  %850 = vdwg.mxu0
  %851 = vmatpush.bf16.msra.mxu0 %v145
  %852 = vmatpush.bf16.msra.mxu0 %v144
  %853 = vmatpush.bf16.msra.mxu0 %v143
  %854 = vmatpush.bf16.msra.mxu0 %v142
  %855 = vmatpush.bf16.msra.mxu0 %v141
  %856 = vmatpush.bf16.msra.mxu0 %v140
  %857 = vmatpush.bf16.msra.mxu0 %v139
  %858 = vmatpush.bf16.msra.mxu0 %v138
  %859 = vmatmul.bf16.gmra.mxu0 %v835
  %v860 = vpop.f32.mrf.mxu0
  %v861 = vadd.f32 %v848, %v860
  %v862 = vpop.f32.mrf.mxu0
  %863 = vdwg.mxu0
  %s864 = scalar_lea.vmem %s0, 104
  %v865 = vld [vmem:[%s864] sm:$0xff]
  %v867 = vunpack.c.l.b16 %v865
  %v868 = vunpack.c.h.b16 %v865
  %v869 = vpack.c.b16 %v867, %v867
  %v870 = vpack.c.b16 %v868, %v868
  %873 = vmatpush.bf16.msra.mxu0 %v137
  %874 = vmatpush.bf16.msra.mxu0 %v136
  %875 = vmatpush.bf16.msra.mxu0 %v135
  %876 = vmatpush.bf16.msra.mxu0 %v134
  %877 = vmatpush.bf16.msra.mxu0 %v133
  %878 = vmatpush.bf16.msra.mxu0 %v132
  %879 = vmatpush.bf16.msra.mxu0 %v131
  %880 = vmatpush.bf16.msra.mxu0 %v130
  %881 = vmatmul.bf16.gmra.mxu0 %v869
  %v882 = vpop.f32.mrf.mxu0
  %v883 = vadd.f32 0.0, %v882
  %v884 = vpop.f32.mrf.mxu0
  %885 = vdwg.mxu0
  %886 = vmatpush.bf16.msra.mxu0 %v145
  %887 = vmatpush.bf16.msra.mxu0 %v144
  %888 = vmatpush.bf16.msra.mxu0 %v143
  %889 = vmatpush.bf16.msra.mxu0 %v142
  %890 = vmatpush.bf16.msra.mxu0 %v141
  %891 = vmatpush.bf16.msra.mxu0 %v140
  %892 = vmatpush.bf16.msra.mxu0 %v139
  %893 = vmatpush.bf16.msra.mxu0 %v138
  %894 = vmatmul.bf16.gmra.mxu0 %v870
  %v895 = vpop.f32.mrf.mxu0
  %v896 = vadd.f32 %v883, %v895
  %v897 = vpop.f32.mrf.mxu0
  %898 = vdwg.mxu0
  %v899 = vmax.f32 %v861, %v896
  %s900 = scalar_lea.vmem %s0, 112
  %v901 = vld [vmem:[%s900] sm:$0xff]
  %v903 = vunpack.c.l.b16 %v901
  %v904 = vunpack.c.h.b16 %v901
  %v905 = vpack.c.b16 %v903, %v903
  %v906 = vpack.c.b16 %v904, %v904
  %909 = vmatpush.bf16.msra.mxu0 %v137
  %910 = vmatpush.bf16.msra.mxu0 %v136
  %911 = vmatpush.bf16.msra.mxu0 %v135
  %912 = vmatpush.bf16.msra.mxu0 %v134
  %913 = vmatpush.bf16.msra.mxu0 %v133
  %914 = vmatpush.bf16.msra.mxu0 %v132
  %915 = vmatpush.bf16.msra.mxu0 %v131
  %916 = vmatpush.bf16.msra.mxu0 %v130
  %917 = vmatmul.bf16.gmra.mxu0 %v905
  %v918 = vpop.f32.mrf.mxu0
  %v919 = vadd.f32 0.0, %v918
  %v920 = vpop.f32.mrf.mxu0
  %921 = vdwg.mxu0
  %922 = vmatpush.bf16.msra.mxu0 %v145
  %923 = vmatpush.bf16.msra.mxu0 %v144
  %924 = vmatpush.bf16.msra.mxu0 %v143
  %925 = vmatpush.bf16.msra.mxu0 %v142
  %926 = vmatpush.bf16.msra.mxu0 %v141
  %927 = vmatpush.bf16.msra.mxu0 %v140
  %928 = vmatpush.bf16.msra.mxu0 %v139
  %929 = vmatpush.bf16.msra.mxu0 %v138
  %930 = vmatmul.bf16.gmra.mxu0 %v906
  %v931 = vpop.f32.mrf.mxu0
  %v932 = vadd.f32 %v919, %v931
  %v933 = vpop.f32.mrf.mxu0
  %934 = vdwg.mxu0
  %v935 = vmax.f32 %v899, %v932
  %s936 = scalar_lea.vmem %s0, 120
  %v937 = vld [vmem:[%s936] sm:$0xff]
  %v939 = vunpack.c.l.b16 %v937
  %v940 = vunpack.c.h.b16 %v937
  %v941 = vpack.c.b16 %v939, %v939
  %v942 = vpack.c.b16 %v940, %v940
  %945 = vmatpush.bf16.msra.mxu0 %v137
  %946 = vmatpush.bf16.msra.mxu0 %v136
  %947 = vmatpush.bf16.msra.mxu0 %v135
  %948 = vmatpush.bf16.msra.mxu0 %v134
  %949 = vmatpush.bf16.msra.mxu0 %v133
  %950 = vmatpush.bf16.msra.mxu0 %v132
  %951 = vmatpush.bf16.msra.mxu0 %v131
  %952 = vmatpush.bf16.msra.mxu0 %v130
  %953 = vmatmul.bf16.gmra.mxu0 %v941
  %v954 = vpop.f32.mrf.mxu0
  %v955 = vadd.f32 0.0, %v954
  %v956 = vpop.f32.mrf.mxu0
  %957 = vdwg.mxu0
  %958 = vmatpush.bf16.msra.mxu0 %v145
  %959 = vmatpush.bf16.msra.mxu0 %v144
  %960 = vmatpush.bf16.msra.mxu0 %v143
  %961 = vmatpush.bf16.msra.mxu0 %v142
  %962 = vmatpush.bf16.msra.mxu0 %v141
  %963 = vmatpush.bf16.msra.mxu0 %v140
  %964 = vmatpush.bf16.msra.mxu0 %v139
  %965 = vmatpush.bf16.msra.mxu0 %v138
  %966 = vmatmul.bf16.gmra.mxu0 %v942
  %v967 = vpop.f32.mrf.mxu0
  %v968 = vadd.f32 %v955, %v967
  %v969 = vpop.f32.mrf.mxu0
  %970 = vdwg.mxu0
  %v971 = vmax.f32 %v935, %v968
  %v972 = vadd.f32 %v971, %v298
  %v973 = vmax.f32 %v972, 0.0
  %v974 = vpack.c.bf16 %v973, %v973
  %s975 = scalar_lea.vmem %s3, 192
  %v976 = vld [vmem:[%s975] sm:$0xf]
  %v977 = vld [vmem:[%s975 + $0x4] sm:$0xf]
  %v978 = vld [vmem:[%s975 + $0x8] sm:$0xf]
  %v979 = vld [vmem:[%s975 + $0xc] sm:$0xf]
  %v980 = vld [vmem:[%s975 + $0x10] sm:$0xf]
  %v981 = vld [vmem:[%s975 + $0x14] sm:$0xf]
  %v982 = vld [vmem:[%s975 + $0x18] sm:$0xf]
  %v983 = vld [vmem:[%s975 + $0x1c] sm:$0xf]
  %v984 = vld [vmem:[%s975 + $0x20] sm:$0xf]
  %v985 = vld [vmem:[%s975 + $0x24] sm:$0xf]
  %v986 = vld [vmem:[%s975 + $0x28] sm:$0xf]
  %v987 = vld [vmem:[%s975 + $0x2c] sm:$0xf]
  %v988 = vld [vmem:[%s975 + $0x30] sm:$0xf]
  %v989 = vld [vmem:[%s975 + $0x34] sm:$0xf]
  %v990 = vld [vmem:[%s975 + $0x38] sm:$0xf]
  %v991 = vld [vmem:[%s975 + $0x3c] sm:$0xf]
  %v1008 = vunpack.c.l.b16 %v976
  %v1009 = vunpack.c.l.b16 %v977
  %v1010 = vunpack.c.l.b16 %v978
  %v1011 = vunpack.c.l.b16 %v979
  %v1012 = vunpack.c.l.b16 %v980
  %v1013 = vunpack.c.l.b16 %v981
  %v1014 = vunpack.c.l.b16 %v982
  %v1015 = vunpack.c.l.b16 %v983
  %v1016 = vunpack.c.l.b16 %v984
  %v1017 = vunpack.c.l.b16 %v985
  %v1018 = vunpack.c.l.b16 %v986
  %v1019 = vunpack.c.l.b16 %v987
  %v1020 = vunpack.c.l.b16 %v988
  %v1021 = vunpack.c.l.b16 %v989
  %v1022 = vunpack.c.l.b16 %v990
  %v1023 = vunpack.c.l.b16 %v991
  %v1024 = vpack.c.b16 %v1009, %v1008
  %v1025 = vpack.c.b16 %v1011, %v1010
  %v1026 = vpack.c.b16 %v1013, %v1012
  %v1027 = vpack.c.b16 %v1015, %v1014
  %v1028 = vpack.c.b16 %v1017, %v1016
  %v1029 = vpack.c.b16 %v1019, %v1018
  %v1030 = vpack.c.b16 %v1021, %v1020
  %v1031 = vpack.c.b16 %v1023, %v1022
  %1040 = vmatpush.bf16.msra.mxu0 %v1031
  %1041 = vmatpush.bf16.msra.mxu0 %v1030
  %1042 = vmatpush.bf16.msra.mxu0 %v1029
  %1043 = vmatpush.bf16.msra.mxu0 %v1028
  %1044 = vmatpush.bf16.msra.mxu0 %v1027
  %1045 = vmatpush.bf16.msra.mxu0 %v1026
  %1046 = vmatpush.bf16.msra.mxu0 %v1025
  %1047 = vmatpush.bf16.msra.mxu0 %v1024
  %1048 = vmatmul.bf16.gmra.mxu0 %v974
  %v1049 = vpop.f32.mrf.mxu0
  %v1050 = vadd.f32 0.0, %v1049
  %v1051 = vpop.f32.mrf.mxu0
  %1052 = vdwg.mxu0
  %v1053 = vadd.f32 %v828, %v1050
  %s1054 = scalar_lea.vmem %s0, 128
  %v1055 = vld [vmem:[%s1054] sm:$0xff]
  %v1057 = vunpack.c.l.b16 %v1055
  %v1058 = vunpack.c.h.b16 %v1055
  %v1059 = vpack.c.b16 %v1057, %v1057
  %v1060 = vpack.c.b16 %v1058, %v1058
  %1063 = vmatpush.bf16.msra.mxu0 %v137
  %1064 = vmatpush.bf16.msra.mxu0 %v136
  %1065 = vmatpush.bf16.msra.mxu0 %v135
  %1066 = vmatpush.bf16.msra.mxu0 %v134
  %1067 = vmatpush.bf16.msra.mxu0 %v133
  %1068 = vmatpush.bf16.msra.mxu0 %v132
  %1069 = vmatpush.bf16.msra.mxu0 %v131
  %1070 = vmatpush.bf16.msra.mxu0 %v130
  %1071 = vmatmul.bf16.gmra.mxu0 %v1059
  %v1072 = vpop.f32.mrf.mxu0
  %v1073 = vadd.f32 0.0, %v1072
  %v1074 = vpop.f32.mrf.mxu0
  %1075 = vdwg.mxu0
  %1076 = vmatpush.bf16.msra.mxu0 %v145
  %1077 = vmatpush.bf16.msra.mxu0 %v144
  %1078 = vmatpush.bf16.msra.mxu0 %v143
  %1079 = vmatpush.bf16.msra.mxu0 %v142
  %1080 = vmatpush.bf16.msra.mxu0 %v141
  %1081 = vmatpush.bf16.msra.mxu0 %v140
  %1082 = vmatpush.bf16.msra.mxu0 %v139
  %1083 = vmatpush.bf16.msra.mxu0 %v138
  %1084 = vmatmul.bf16.gmra.mxu0 %v1060
  %v1085 = vpop.f32.mrf.mxu0
  %v1086 = vadd.f32 %v1073, %v1085
  %v1087 = vpop.f32.mrf.mxu0
  %1088 = vdwg.mxu0
  %s1089 = scalar_lea.vmem %s0, 136
  %v1090 = vld [vmem:[%s1089] sm:$0xff]
  %v1092 = vunpack.c.l.b16 %v1090
  %v1093 = vunpack.c.h.b16 %v1090
  %v1094 = vpack.c.b16 %v1092, %v1092
  %v1095 = vpack.c.b16 %v1093, %v1093
  %1098 = vmatpush.bf16.msra.mxu0 %v137
  %1099 = vmatpush.bf16.msra.mxu0 %v136
  %1100 = vmatpush.bf16.msra.mxu0 %v135
  %1101 = vmatpush.bf16.msra.mxu0 %v134
  %1102 = vmatpush.bf16.msra.mxu0 %v133
  %1103 = vmatpush.bf16.msra.mxu0 %v132
  %1104 = vmatpush.bf16.msra.mxu0 %v131
  %1105 = vmatpush.bf16.msra.mxu0 %v130
  %1106 = vmatmul.bf16.gmra.mxu0 %v1094
  %v1107 = vpop.f32.mrf.mxu0
  %v1108 = vadd.f32 0.0, %v1107
  %v1109 = vpop.f32.mrf.mxu0
  %1110 = vdwg.mxu0
  %1111 = vmatpush.bf16.msra.mxu0 %v145
  %1112 = vmatpush.bf16.msra.mxu0 %v144
  %1113 = vmatpush.bf16.msra.mxu0 %v143
  %1114 = vmatpush.bf16.msra.mxu0 %v142
  %1115 = vmatpush.bf16.msra.mxu0 %v141
  %1116 = vmatpush.bf16.msra.mxu0 %v140
  %1117 = vmatpush.bf16.msra.mxu0 %v139
  %1118 = vmatpush.bf16.msra.mxu0 %v138
  %1119 = vmatmul.bf16.gmra.mxu0 %v1095
  %v1120 = vpop.f32.mrf.mxu0
  %v1121 = vadd.f32 %v1108, %v1120
  %v1122 = vpop.f32.mrf.mxu0
  %1123 = vdwg.mxu0
  %v1124 = vmax.f32 %v1086, %v1121
  %s1125 = scalar_lea.vmem %s0, 144
  %v1126 = vld [vmem:[%s1125] sm:$0xff]
  %v1128 = vunpack.c.l.b16 %v1126
  %v1129 = vunpack.c.h.b16 %v1126
  %v1130 = vpack.c.b16 %v1128, %v1128
  %v1131 = vpack.c.b16 %v1129, %v1129
  %1134 = vmatpush.bf16.msra.mxu0 %v137
  %1135 = vmatpush.bf16.msra.mxu0 %v136
  %1136 = vmatpush.bf16.msra.mxu0 %v135
  %1137 = vmatpush.bf16.msra.mxu0 %v134
  %1138 = vmatpush.bf16.msra.mxu0 %v133
  %1139 = vmatpush.bf16.msra.mxu0 %v132
  %1140 = vmatpush.bf16.msra.mxu0 %v131
  %1141 = vmatpush.bf16.msra.mxu0 %v130
  %1142 = vmatmul.bf16.gmra.mxu0 %v1130
  %v1143 = vpop.f32.mrf.mxu0
  %v1144 = vadd.f32 0.0, %v1143
  %v1145 = vpop.f32.mrf.mxu0
  %1146 = vdwg.mxu0
  %1147 = vmatpush.bf16.msra.mxu0 %v145
  %1148 = vmatpush.bf16.msra.mxu0 %v144
  %1149 = vmatpush.bf16.msra.mxu0 %v143
  %1150 = vmatpush.bf16.msra.mxu0 %v142
  %1151 = vmatpush.bf16.msra.mxu0 %v141
  %1152 = vmatpush.bf16.msra.mxu0 %v140
  %1153 = vmatpush.bf16.msra.mxu0 %v139
  %1154 = vmatpush.bf16.msra.mxu0 %v138
  %1155 = vmatmul.bf16.gmra.mxu0 %v1131
  %v1156 = vpop.f32.mrf.mxu0
  %v1157 = vadd.f32 %v1144, %v1156
  %v1158 = vpop.f32.mrf.mxu0
  %1159 = vdwg.mxu0
  %v1160 = vmax.f32 %v1124, %v1157
  %s1161 = scalar_lea.vmem %s0, 152
  %v1162 = vld [vmem:[%s1161] sm:$0xff]
  %v1164 = vunpack.c.l.b16 %v1162
  %v1165 = vunpack.c.h.b16 %v1162
  %v1166 = vpack.c.b16 %v1164, %v1164
  %v1167 = vpack.c.b16 %v1165, %v1165
  %1170 = vmatpush.bf16.msra.mxu0 %v137
  %1171 = vmatpush.bf16.msra.mxu0 %v136
  %1172 = vmatpush.bf16.msra.mxu0 %v135
  %1173 = vmatpush.bf16.msra.mxu0 %v134
  %1174 = vmatpush.bf16.msra.mxu0 %v133
  %1175 = vmatpush.bf16.msra.mxu0 %v132
  %1176 = vmatpush.bf16.msra.mxu0 %v131
  %1177 = vmatpush.bf16.msra.mxu0 %v130
  %1178 = vmatmul.bf16.gmra.mxu0 %v1166
  %v1179 = vpop.f32.mrf.mxu0
  %v1180 = vadd.f32 0.0, %v1179
  %v1181 = vpop.f32.mrf.mxu0
  %1182 = vdwg.mxu0
  %1183 = vmatpush.bf16.msra.mxu0 %v145
  %1184 = vmatpush.bf16.msra.mxu0 %v144
  %1185 = vmatpush.bf16.msra.mxu0 %v143
  %1186 = vmatpush.bf16.msra.mxu0 %v142
  %1187 = vmatpush.bf16.msra.mxu0 %v141
  %1188 = vmatpush.bf16.msra.mxu0 %v140
  %1189 = vmatpush.bf16.msra.mxu0 %v139
  %1190 = vmatpush.bf16.msra.mxu0 %v138
  %1191 = vmatmul.bf16.gmra.mxu0 %v1167
  %v1192 = vpop.f32.mrf.mxu0
  %v1193 = vadd.f32 %v1180, %v1192
  %v1194 = vpop.f32.mrf.mxu0
  %1195 = vdwg.mxu0
  %v1196 = vmax.f32 %v1160, %v1193
  %v1197 = vadd.f32 %v1196, %v298
  %v1198 = vmax.f32 %v1197, 0.0
  %v1199 = vpack.c.bf16 %v1198, %v1198
  %s1200 = scalar_lea.vmem %s3, 256
  %v1201 = vld [vmem:[%s1200] sm:$0xf]
  %v1202 = vld [vmem:[%s1200 + $0x4] sm:$0xf]
  %v1203 = vld [vmem:[%s1200 + $0x8] sm:$0xf]
  %v1204 = vld [vmem:[%s1200 + $0xc] sm:$0xf]
  %v1205 = vld [vmem:[%s1200 + $0x10] sm:$0xf]
  %v1206 = vld [vmem:[%s1200 + $0x14] sm:$0xf]
  %v1207 = vld [vmem:[%s1200 + $0x18] sm:$0xf]
  %v1208 = vld [vmem:[%s1200 + $0x1c] sm:$0xf]
  %v1209 = vld [vmem:[%s1200 + $0x20] sm:$0xf]
  %v1210 = vld [vmem:[%s1200 + $0x24] sm:$0xf]
  %v1211 = vld [vmem:[%s1200 + $0x28] sm:$0xf]
  %v1212 = vld [vmem:[%s1200 + $0x2c] sm:$0xf]
  %v1213 = vld [vmem:[%s1200 + $0x30] sm:$0xf]
  %v1214 = vld [vmem:[%s1200 + $0x34] sm:$0xf]
  %v1215 = vld [vmem:[%s1200 + $0x38] sm:$0xf]
  %v1216 = vld [vmem:[%s1200 + $0x3c] sm:$0xf]
  %v1233 = vunpack.c.l.b16 %v1201
  %v1234 = vunpack.c.l.b16 %v1202
  %v1235 = vunpack.c.l.b16 %v1203
  %v1236 = vunpack.c.l.b16 %v1204
  %v1237 = vunpack.c.l.b16 %v1205
  %v1238 = vunpack.c.l.b16 %v1206
  %v1239 = vunpack.c.l.b16 %v1207
  %v1240 = vunpack.c.l.b16 %v1208
  %v1241 = vunpack.c.l.b16 %v1209
  %v1242 = vunpack.c.l.b16 %v1210
  %v1243 = vunpack.c.l.b16 %v1211
  %v1244 = vunpack.c.l.b16 %v1212
  %v1245 = vunpack.c.l.b16 %v1213
  %v1246 = vunpack.c.l.b16 %v1214
  %v1247 = vunpack.c.l.b16 %v1215
  %v1248 = vunpack.c.l.b16 %v1216
  %v1249 = vpack.c.b16 %v1234, %v1233
  %v1250 = vpack.c.b16 %v1236, %v1235
  %v1251 = vpack.c.b16 %v1238, %v1237
  %v1252 = vpack.c.b16 %v1240, %v1239
  %v1253 = vpack.c.b16 %v1242, %v1241
  %v1254 = vpack.c.b16 %v1244, %v1243
  %v1255 = vpack.c.b16 %v1246, %v1245
  %v1256 = vpack.c.b16 %v1248, %v1247
  %1265 = vmatpush.bf16.msra.mxu0 %v1256
  %1266 = vmatpush.bf16.msra.mxu0 %v1255
  %1267 = vmatpush.bf16.msra.mxu0 %v1254
  %1268 = vmatpush.bf16.msra.mxu0 %v1253
  %1269 = vmatpush.bf16.msra.mxu0 %v1252
  %1270 = vmatpush.bf16.msra.mxu0 %v1251
  %1271 = vmatpush.bf16.msra.mxu0 %v1250
  %1272 = vmatpush.bf16.msra.mxu0 %v1249
  %1273 = vmatmul.bf16.gmra.mxu0 %v1199
  %v1274 = vpop.f32.mrf.mxu0
  %v1275 = vadd.f32 0.0, %v1274
  %v1276 = vpop.f32.mrf.mxu0
  %1277 = vdwg.mxu0
  %v1278 = vadd.f32 %v1053, %v1275
  %s1279 = scalar_lea.vmem %s0, 160
  %v1280 = vld [vmem:[%s1279] sm:$0xff]
  %v1282 = vunpack.c.l.b16 %v1280
  %v1283 = vunpack.c.h.b16 %v1280
  %v1284 = vpack.c.b16 %v1282, %v1282
  %v1285 = vpack.c.b16 %v1283, %v1283
  %1288 = vmatpush.bf16.msra.mxu0 %v137
  %1289 = vmatpush.bf16.msra.mxu0 %v136
  %1290 = vmatpush.bf16.msra.mxu0 %v135
  %1291 = vmatpush.bf16.msra.mxu0 %v134
  %1292 = vmatpush.bf16.msra.mxu0 %v133
  %1293 = vmatpush.bf16.msra.mxu0 %v132
  %1294 = vmatpush.bf16.msra.mxu0 %v131
  %1295 = vmatpush.bf16.msra.mxu0 %v130
  %1296 = vmatmul.bf16.gmra.mxu0 %v1284
  %v1297 = vpop.f32.mrf.mxu0
  %v1298 = vadd.f32 0.0, %v1297
  %v1299 = vpop.f32.mrf.mxu0
  %1300 = vdwg.mxu0
  %1301 = vmatpush.bf16.msra.mxu0 %v145
  %1302 = vmatpush.bf16.msra.mxu0 %v144
  %1303 = vmatpush.bf16.msra.mxu0 %v143
  %1304 = vmatpush.bf16.msra.mxu0 %v142
  %1305 = vmatpush.bf16.msra.mxu0 %v141
  %1306 = vmatpush.bf16.msra.mxu0 %v140
  %1307 = vmatpush.bf16.msra.mxu0 %v139
  %1308 = vmatpush.bf16.msra.mxu0 %v138
  %1309 = vmatmul.bf16.gmra.mxu0 %v1285
  %v1310 = vpop.f32.mrf.mxu0
  %v1311 = vadd.f32 %v1298, %v1310
  %v1312 = vpop.f32.mrf.mxu0
  %1313 = vdwg.mxu0
  %s1314 = scalar_lea.vmem %s0, 168
  %v1315 = vld [vmem:[%s1314] sm:$0xff]
  %v1317 = vunpack.c.l.b16 %v1315
  %v1318 = vunpack.c.h.b16 %v1315
  %v1319 = vpack.c.b16 %v1317, %v1317
  %v1320 = vpack.c.b16 %v1318, %v1318
  %1323 = vmatpush.bf16.msra.mxu0 %v137
  %1324 = vmatpush.bf16.msra.mxu0 %v136
  %1325 = vmatpush.bf16.msra.mxu0 %v135
  %1326 = vmatpush.bf16.msra.mxu0 %v134
  %1327 = vmatpush.bf16.msra.mxu0 %v133
  %1328 = vmatpush.bf16.msra.mxu0 %v132
  %1329 = vmatpush.bf16.msra.mxu0 %v131
  %1330 = vmatpush.bf16.msra.mxu0 %v130
  %1331 = vmatmul.bf16.gmra.mxu0 %v1319
  %v1332 = vpop.f32.mrf.mxu0
  %v1333 = vadd.f32 0.0, %v1332
  %v1334 = vpop.f32.mrf.mxu0
  %1335 = vdwg.mxu0
  %1336 = vmatpush.bf16.msra.mxu0 %v145
  %1337 = vmatpush.bf16.msra.mxu0 %v144
  %1338 = vmatpush.bf16.msra.mxu0 %v143
  %1339 = vmatpush.bf16.msra.mxu0 %v142
  %1340 = vmatpush.bf16.msra.mxu0 %v141
  %1341 = vmatpush.bf16.msra.mxu0 %v140
  %1342 = vmatpush.bf16.msra.mxu0 %v139
  %1343 = vmatpush.bf16.msra.mxu0 %v138
  %1344 = vmatmul.bf16.gmra.mxu0 %v1320
  %v1345 = vpop.f32.mrf.mxu0
  %v1346 = vadd.f32 %v1333, %v1345
  %v1347 = vpop.f32.mrf.mxu0
  %1348 = vdwg.mxu0
  %v1349 = vmax.f32 %v1311, %v1346
  %s1350 = scalar_lea.vmem %s0, 176
  %v1351 = vld [vmem:[%s1350] sm:$0xff]
  %v1353 = vunpack.c.l.b16 %v1351
  %v1354 = vunpack.c.h.b16 %v1351
  %v1355 = vpack.c.b16 %v1353, %v1353
  %v1356 = vpack.c.b16 %v1354, %v1354
  %1359 = vmatpush.bf16.msra.mxu0 %v137
  %1360 = vmatpush.bf16.msra.mxu0 %v136
  %1361 = vmatpush.bf16.msra.mxu0 %v135
  %1362 = vmatpush.bf16.msra.mxu0 %v134
  %1363 = vmatpush.bf16.msra.mxu0 %v133
  %1364 = vmatpush.bf16.msra.mxu0 %v132
  %1365 = vmatpush.bf16.msra.mxu0 %v131
  %1366 = vmatpush.bf16.msra.mxu0 %v130
  %1367 = vmatmul.bf16.gmra.mxu0 %v1355
  %v1368 = vpop.f32.mrf.mxu0
  %v1369 = vadd.f32 0.0, %v1368
  %v1370 = vpop.f32.mrf.mxu0
  %1371 = vdwg.mxu0
  %1372 = vmatpush.bf16.msra.mxu0 %v145
  %1373 = vmatpush.bf16.msra.mxu0 %v144
  %1374 = vmatpush.bf16.msra.mxu0 %v143
  %1375 = vmatpush.bf16.msra.mxu0 %v142
  %1376 = vmatpush.bf16.msra.mxu0 %v141
  %1377 = vmatpush.bf16.msra.mxu0 %v140
  %1378 = vmatpush.bf16.msra.mxu0 %v139
  %1379 = vmatpush.bf16.msra.mxu0 %v138
  %1380 = vmatmul.bf16.gmra.mxu0 %v1356
  %v1381 = vpop.f32.mrf.mxu0
  %v1382 = vadd.f32 %v1369, %v1381
  %v1383 = vpop.f32.mrf.mxu0
  %1384 = vdwg.mxu0
  %v1385 = vmax.f32 %v1349, %v1382
  %s1386 = scalar_lea.vmem %s0, 184
  %v1387 = vld [vmem:[%s1386] sm:$0xff]
  %v1389 = vunpack.c.l.b16 %v1387
  %v1390 = vunpack.c.h.b16 %v1387
  %v1391 = vpack.c.b16 %v1389, %v1389
  %v1392 = vpack.c.b16 %v1390, %v1390
  %1395 = vmatpush.bf16.msra.mxu0 %v137
  %1396 = vmatpush.bf16.msra.mxu0 %v136
  %1397 = vmatpush.bf16.msra.mxu0 %v135
  %1398 = vmatpush.bf16.msra.mxu0 %v134
  %1399 = vmatpush.bf16.msra.mxu0 %v133
  %1400 = vmatpush.bf16.msra.mxu0 %v132
  %1401 = vmatpush.bf16.msra.mxu0 %v131
  %1402 = vmatpush.bf16.msra.mxu0 %v130
  %1403 = vmatmul.bf16.gmra.mxu0 %v1391
  %v1404 = vpop.f32.mrf.mxu0
  %v1405 = vadd.f32 0.0, %v1404
  %v1406 = vpop.f32.mrf.mxu0
  %1407 = vdwg.mxu0
  %1408 = vmatpush.bf16.msra.mxu0 %v145
  %1409 = vmatpush.bf16.msra.mxu0 %v144
  %1410 = vmatpush.bf16.msra.mxu0 %v143
  %1411 = vmatpush.bf16.msra.mxu0 %v142
  %1412 = vmatpush.bf16.msra.mxu0 %v141
  %1413 = vmatpush.bf16.msra.mxu0 %v140
  %1414 = vmatpush.bf16.msra.mxu0 %v139
  %1415 = vmatpush.bf16.msra.mxu0 %v138
  %1416 = vmatmul.bf16.gmra.mxu0 %v1392
  %v1417 = vpop.f32.mrf.mxu0
  %v1418 = vadd.f32 %v1405, %v1417
  %v1419 = vpop.f32.mrf.mxu0
  %1420 = vdwg.mxu0
  %v1421 = vmax.f32 %v1385, %v1418
  %v1422 = vadd.f32 %v1421, %v298
  %v1423 = vmax.f32 %v1422, 0.0
  %v1424 = vpack.c.bf16 %v1423, %v1423
  %s1425 = scalar_lea.vmem %s3, 320
  %v1426 = vld [vmem:[%s1425] sm:$0xf]
  %v1427 = vld [vmem:[%s1425 + $0x4] sm:$0xf]
  %v1428 = vld [vmem:[%s1425 + $0x8] sm:$0xf]
  %v1429 = vld [vmem:[%s1425 + $0xc] sm:$0xf]
  %v1430 = vld [vmem:[%s1425 + $0x10] sm:$0xf]
  %v1431 = vld [vmem:[%s1425 + $0x14] sm:$0xf]
  %v1432 = vld [vmem:[%s1425 + $0x18] sm:$0xf]
  %v1433 = vld [vmem:[%s1425 + $0x1c] sm:$0xf]
  %v1434 = vld [vmem:[%s1425 + $0x20] sm:$0xf]
  %v1435 = vld [vmem:[%s1425 + $0x24] sm:$0xf]
  %v1436 = vld [vmem:[%s1425 + $0x28] sm:$0xf]
  %v1437 = vld [vmem:[%s1425 + $0x2c] sm:$0xf]
  %v1438 = vld [vmem:[%s1425 + $0x30] sm:$0xf]
  %v1439 = vld [vmem:[%s1425 + $0x34] sm:$0xf]
  %v1440 = vld [vmem:[%s1425 + $0x38] sm:$0xf]
  %v1441 = vld [vmem:[%s1425 + $0x3c] sm:$0xf]
  %v1458 = vunpack.c.l.b16 %v1426
  %v1459 = vunpack.c.l.b16 %v1427
  %v1460 = vunpack.c.l.b16 %v1428
  %v1461 = vunpack.c.l.b16 %v1429
  %v1462 = vunpack.c.l.b16 %v1430
  %v1463 = vunpack.c.l.b16 %v1431
  %v1464 = vunpack.c.l.b16 %v1432
  %v1465 = vunpack.c.l.b16 %v1433
  %v1466 = vunpack.c.l.b16 %v1434
  %v1467 = vunpack.c.l.b16 %v1435
  %v1468 = vunpack.c.l.b16 %v1436
  %v1469 = vunpack.c.l.b16 %v1437
  %v1470 = vunpack.c.l.b16 %v1438
  %v1471 = vunpack.c.l.b16 %v1439
  %v1472 = vunpack.c.l.b16 %v1440
  %v1473 = vunpack.c.l.b16 %v1441
  %v1474 = vpack.c.b16 %v1459, %v1458
  %v1475 = vpack.c.b16 %v1461, %v1460
  %v1476 = vpack.c.b16 %v1463, %v1462
  %v1477 = vpack.c.b16 %v1465, %v1464
  %v1478 = vpack.c.b16 %v1467, %v1466
  %v1479 = vpack.c.b16 %v1469, %v1468
  %v1480 = vpack.c.b16 %v1471, %v1470
  %v1481 = vpack.c.b16 %v1473, %v1472
  %1490 = vmatpush.bf16.msra.mxu0 %v1481
  %1491 = vmatpush.bf16.msra.mxu0 %v1480
  %1492 = vmatpush.bf16.msra.mxu0 %v1479
  %1493 = vmatpush.bf16.msra.mxu0 %v1478
  %1494 = vmatpush.bf16.msra.mxu0 %v1477
  %1495 = vmatpush.bf16.msra.mxu0 %v1476
  %1496 = vmatpush.bf16.msra.mxu0 %v1475
  %1497 = vmatpush.bf16.msra.mxu0 %v1474
  %1498 = vmatmul.bf16.gmra.mxu0 %v1424
  %v1499 = vpop.f32.mrf.mxu0
  %v1500 = vadd.f32 0.0, %v1499
  %v1501 = vpop.f32.mrf.mxu0
  %1502 = vdwg.mxu0
  %v1503 = vadd.f32 %v1278, %v1500
  %s1504 = scalar_lea.vmem %s0, 192
  %v1505 = vld [vmem:[%s1504] sm:$0xff]
  %v1507 = vunpack.c.l.b16 %v1505
  %v1508 = vunpack.c.h.b16 %v1505
  %v1509 = vpack.c.b16 %v1507, %v1507
  %v1510 = vpack.c.b16 %v1508, %v1508
  %1513 = vmatpush.bf16.msra.mxu0 %v137
  %1514 = vmatpush.bf16.msra.mxu0 %v136
  %1515 = vmatpush.bf16.msra.mxu0 %v135
  %1516 = vmatpush.bf16.msra.mxu0 %v134
  %1517 = vmatpush.bf16.msra.mxu0 %v133
  %1518 = vmatpush.bf16.msra.mxu0 %v132
  %1519 = vmatpush.bf16.msra.mxu0 %v131
  %1520 = vmatpush.bf16.msra.mxu0 %v130
  %1521 = vmatmul.bf16.gmra.mxu0 %v1509
  %v1522 = vpop.f32.mrf.mxu0
  %v1523 = vadd.f32 0.0, %v1522
  %v1524 = vpop.f32.mrf.mxu0
  %1525 = vdwg.mxu0
  %1526 = vmatpush.bf16.msra.mxu0 %v145
  %1527 = vmatpush.bf16.msra.mxu0 %v144
  %1528 = vmatpush.bf16.msra.mxu0 %v143
  %1529 = vmatpush.bf16.msra.mxu0 %v142
  %1530 = vmatpush.bf16.msra.mxu0 %v141
  %1531 = vmatpush.bf16.msra.mxu0 %v140
  %1532 = vmatpush.bf16.msra.mxu0 %v139
  %1533 = vmatpush.bf16.msra.mxu0 %v138
  %1534 = vmatmul.bf16.gmra.mxu0 %v1510
  %v1535 = vpop.f32.mrf.mxu0
  %v1536 = vadd.f32 %v1523, %v1535
  %v1537 = vpop.f32.mrf.mxu0
  %1538 = vdwg.mxu0
  %s1539 = scalar_lea.vmem %s0, 200
  %v1540 = vld [vmem:[%s1539] sm:$0xff]
  %v1542 = vunpack.c.l.b16 %v1540
  %v1543 = vunpack.c.h.b16 %v1540
  %v1544 = vpack.c.b16 %v1542, %v1542
  %v1545 = vpack.c.b16 %v1543, %v1543
  %1548 = vmatpush.bf16.msra.mxu0 %v137
  %1549 = vmatpush.bf16.msra.mxu0 %v136
  %1550 = vmatpush.bf16.msra.mxu0 %v135
  %1551 = vmatpush.bf16.msra.mxu0 %v134
  %1552 = vmatpush.bf16.msra.mxu0 %v133
  %1553 = vmatpush.bf16.msra.mxu0 %v132
  %1554 = vmatpush.bf16.msra.mxu0 %v131
  %1555 = vmatpush.bf16.msra.mxu0 %v130
  %1556 = vmatmul.bf16.gmra.mxu0 %v1544
  %v1557 = vpop.f32.mrf.mxu0
  %v1558 = vadd.f32 0.0, %v1557
  %v1559 = vpop.f32.mrf.mxu0
  %1560 = vdwg.mxu0
  %1561 = vmatpush.bf16.msra.mxu0 %v145
  %1562 = vmatpush.bf16.msra.mxu0 %v144
  %1563 = vmatpush.bf16.msra.mxu0 %v143
  %1564 = vmatpush.bf16.msra.mxu0 %v142
  %1565 = vmatpush.bf16.msra.mxu0 %v141
  %1566 = vmatpush.bf16.msra.mxu0 %v140
  %1567 = vmatpush.bf16.msra.mxu0 %v139
  %1568 = vmatpush.bf16.msra.mxu0 %v138
  %1569 = vmatmul.bf16.gmra.mxu0 %v1545
  %v1570 = vpop.f32.mrf.mxu0
  %v1571 = vadd.f32 %v1558, %v1570
  %v1572 = vpop.f32.mrf.mxu0
  %1573 = vdwg.mxu0
  %v1574 = vmax.f32 %v1536, %v1571
  %s1575 = scalar_lea.vmem %s0, 208
  %v1576 = vld [vmem:[%s1575] sm:$0xff]
  %v1578 = vunpack.c.l.b16 %v1576
  %v1579 = vunpack.c.h.b16 %v1576
  %v1580 = vpack.c.b16 %v1578, %v1578
  %v1581 = vpack.c.b16 %v1579, %v1579
  %1584 = vmatpush.bf16.msra.mxu0 %v137
  %1585 = vmatpush.bf16.msra.mxu0 %v136
  %1586 = vmatpush.bf16.msra.mxu0 %v135
  %1587 = vmatpush.bf16.msra.mxu0 %v134
  %1588 = vmatpush.bf16.msra.mxu0 %v133
  %1589 = vmatpush.bf16.msra.mxu0 %v132
  %1590 = vmatpush.bf16.msra.mxu0 %v131
  %1591 = vmatpush.bf16.msra.mxu0 %v130
  %1592 = vmatmul.bf16.gmra.mxu0 %v1580
  %v1593 = vpop.f32.mrf.mxu0
  %v1594 = vadd.f32 0.0, %v1593
  %v1595 = vpop.f32.mrf.mxu0
  %1596 = vdwg.mxu0
  %1597 = vmatpush.bf16.msra.mxu0 %v145
  %1598 = vmatpush.bf16.msra.mxu0 %v144
  %1599 = vmatpush.bf16.msra.mxu0 %v143
  %1600 = vmatpush.bf16.msra.mxu0 %v142
  %1601 = vmatpush.bf16.msra.mxu0 %v141
  %1602 = vmatpush.bf16.msra.mxu0 %v140
  %1603 = vmatpush.bf16.msra.mxu0 %v139
  %1604 = vmatpush.bf16.msra.mxu0 %v138
  %1605 = vmatmul.bf16.gmra.mxu0 %v1581
  %v1606 = vpop.f32.mrf.mxu0
  %v1607 = vadd.f32 %v1594, %v1606
  %v1608 = vpop.f32.mrf.mxu0
  %1609 = vdwg.mxu0
  %v1610 = vmax.f32 %v1574, %v1607
  %s1611 = scalar_lea.vmem %s0, 216
  %v1612 = vld [vmem:[%s1611] sm:$0xff]
  %v1614 = vunpack.c.l.b16 %v1612
  %v1615 = vunpack.c.h.b16 %v1612
  %v1616 = vpack.c.b16 %v1614, %v1614
  %v1617 = vpack.c.b16 %v1615, %v1615
  %1620 = vmatpush.bf16.msra.mxu0 %v137
  %1621 = vmatpush.bf16.msra.mxu0 %v136
  %1622 = vmatpush.bf16.msra.mxu0 %v135
  %1623 = vmatpush.bf16.msra.mxu0 %v134
  %1624 = vmatpush.bf16.msra.mxu0 %v133
  %1625 = vmatpush.bf16.msra.mxu0 %v132
  %1626 = vmatpush.bf16.msra.mxu0 %v131
  %1627 = vmatpush.bf16.msra.mxu0 %v130
  %1628 = vmatmul.bf16.gmra.mxu0 %v1616
  %v1629 = vpop.f32.mrf.mxu0
  %v1630 = vadd.f32 0.0, %v1629
  %v1631 = vpop.f32.mrf.mxu0
  %1632 = vdwg.mxu0
  %1633 = vmatpush.bf16.msra.mxu0 %v145
  %1634 = vmatpush.bf16.msra.mxu0 %v144
  %1635 = vmatpush.bf16.msra.mxu0 %v143
  %1636 = vmatpush.bf16.msra.mxu0 %v142
  %1637 = vmatpush.bf16.msra.mxu0 %v141
  %1638 = vmatpush.bf16.msra.mxu0 %v140
  %1639 = vmatpush.bf16.msra.mxu0 %v139
  %1640 = vmatpush.bf16.msra.mxu0 %v138
  %1641 = vmatmul.bf16.gmra.mxu0 %v1617
  %v1642 = vpop.f32.mrf.mxu0
  %v1643 = vadd.f32 %v1630, %v1642
  %v1644 = vpop.f32.mrf.mxu0
  %1645 = vdwg.mxu0
  %v1646 = vmax.f32 %v1610, %v1643
  %v1647 = vadd.f32 %v1646, %v298
  %v1648 = vmax.f32 %v1647, 0.0
  %v1649 = vpack.c.bf16 %v1648, %v1648
  %s1650 = scalar_lea.vmem %s3, 384
  %v1651 = vld [vmem:[%s1650] sm:$0xf]
  %v1652 = vld [vmem:[%s1650 + $0x4] sm:$0xf]
  %v1653 = vld [vmem:[%s1650 + $0x8] sm:$0xf]
  %v1654 = vld [vmem:[%s1650 + $0xc] sm:$0xf]
  %v1655 = vld [vmem:[%s1650 + $0x10] sm:$0xf]
  %v1656 = vld [vmem:[%s1650 + $0x14] sm:$0xf]
  %v1657 = vld [vmem:[%s1650 + $0x18] sm:$0xf]
  %v1658 = vld [vmem:[%s1650 + $0x1c] sm:$0xf]
  %v1659 = vld [vmem:[%s1650 + $0x20] sm:$0xf]
  %v1660 = vld [vmem:[%s1650 + $0x24] sm:$0xf]
  %v1661 = vld [vmem:[%s1650 + $0x28] sm:$0xf]
  %v1662 = vld [vmem:[%s1650 + $0x2c] sm:$0xf]
  %v1663 = vld [vmem:[%s1650 + $0x30] sm:$0xf]
  %v1664 = vld [vmem:[%s1650 + $0x34] sm:$0xf]
  %v1665 = vld [vmem:[%s1650 + $0x38] sm:$0xf]
  %v1666 = vld [vmem:[%s1650 + $0x3c] sm:$0xf]
  %v1683 = vunpack.c.l.b16 %v1651
  %v1684 = vunpack.c.l.b16 %v1652
  %v1685 = vunpack.c.l.b16 %v1653
  %v1686 = vunpack.c.l.b16 %v1654
  %v1687 = vunpack.c.l.b16 %v1655
  %v1688 = vunpack.c.l.b16 %v1656
  %v1689 = vunpack.c.l.b16 %v1657
  %v1690 = vunpack.c.l.b16 %v1658
  %v1691 = vunpack.c.l.b16 %v1659
  %v1692 = vunpack.c.l.b16 %v1660
  %v1693 = vunpack.c.l.b16 %v1661
  %v1694 = vunpack.c.l.b16 %v1662
  %v1695 = vunpack.c.l.b16 %v1663
  %v1696 = vunpack.c.l.b16 %v1664
  %v1697 = vunpack.c.l.b16 %v1665
  %v1698 = vunpack.c.l.b16 %v1666
  %v1699 = vpack.c.b16 %v1684, %v1683
  %v1700 = vpack.c.b16 %v1686, %v1685
  %v1701 = vpack.c.b16 %v1688, %v1687
  %v1702 = vpack.c.b16 %v1690, %v1689
  %v1703 = vpack.c.b16 %v1692, %v1691
  %v1704 = vpack.c.b16 %v1694, %v1693
  %v1705 = vpack.c.b16 %v1696, %v1695
  %v1706 = vpack.c.b16 %v1698, %v1697
  %1715 = vmatpush.bf16.msra.mxu0 %v1706
  %1716 = vmatpush.bf16.msra.mxu0 %v1705
  %1717 = vmatpush.bf16.msra.mxu0 %v1704
  %1718 = vmatpush.bf16.msra.mxu0 %v1703
  %1719 = vmatpush.bf16.msra.mxu0 %v1702
  %1720 = vmatpush.bf16.msra.mxu0 %v1701
  %1721 = vmatpush.bf16.msra.mxu0 %v1700
  %1722 = vmatpush.bf16.msra.mxu0 %v1699
  %1723 = vmatmul.bf16.gmra.mxu0 %v1649
  %v1724 = vpop.f32.mrf.mxu0
  %v1725 = vadd.f32 0.0, %v1724
  %v1726 = vpop.f32.mrf.mxu0
  %1727 = vdwg.mxu0
  %v1728 = vadd.f32 %v1503, %v1725
  %s1729 = scalar_lea.vmem %s0, 224
  %v1730 = vld [vmem:[%s1729] sm:$0xff]
  %v1732 = vunpack.c.l.b16 %v1730
  %v1733 = vunpack.c.h.b16 %v1730
  %v1734 = vpack.c.b16 %v1732, %v1732
  %v1735 = vpack.c.b16 %v1733, %v1733
  %1738 = vmatpush.bf16.msra.mxu0 %v137
  %1739 = vmatpush.bf16.msra.mxu0 %v136
  %1740 = vmatpush.bf16.msra.mxu0 %v135
  %1741 = vmatpush.bf16.msra.mxu0 %v134
  %1742 = vmatpush.bf16.msra.mxu0 %v133
  %1743 = vmatpush.bf16.msra.mxu0 %v132
  %1744 = vmatpush.bf16.msra.mxu0 %v131
  %1745 = vmatpush.bf16.msra.mxu0 %v130
  %1746 = vmatmul.bf16.gmra.mxu0 %v1734
  %v1747 = vpop.f32.mrf.mxu0
  %v1748 = vadd.f32 0.0, %v1747
  %v1749 = vpop.f32.mrf.mxu0
  %1750 = vdwg.mxu0
  %1751 = vmatpush.bf16.msra.mxu0 %v145
  %1752 = vmatpush.bf16.msra.mxu0 %v144
  %1753 = vmatpush.bf16.msra.mxu0 %v143
  %1754 = vmatpush.bf16.msra.mxu0 %v142
  %1755 = vmatpush.bf16.msra.mxu0 %v141
  %1756 = vmatpush.bf16.msra.mxu0 %v140
  %1757 = vmatpush.bf16.msra.mxu0 %v139
  %1758 = vmatpush.bf16.msra.mxu0 %v138
  %1759 = vmatmul.bf16.gmra.mxu0 %v1735
  %v1760 = vpop.f32.mrf.mxu0
  %v1761 = vadd.f32 %v1748, %v1760
  %v1762 = vpop.f32.mrf.mxu0
  %1763 = vdwg.mxu0
  %s1764 = scalar_lea.vmem %s0, 232
  %v1765 = vld [vmem:[%s1764] sm:$0xff]
  %v1767 = vunpack.c.l.b16 %v1765
  %v1768 = vunpack.c.h.b16 %v1765
  %v1769 = vpack.c.b16 %v1767, %v1767
  %v1770 = vpack.c.b16 %v1768, %v1768
  %1773 = vmatpush.bf16.msra.mxu0 %v137
  %1774 = vmatpush.bf16.msra.mxu0 %v136
  %1775 = vmatpush.bf16.msra.mxu0 %v135
  %1776 = vmatpush.bf16.msra.mxu0 %v134
  %1777 = vmatpush.bf16.msra.mxu0 %v133
  %1778 = vmatpush.bf16.msra.mxu0 %v132
  %1779 = vmatpush.bf16.msra.mxu0 %v131
  %1780 = vmatpush.bf16.msra.mxu0 %v130
  %1781 = vmatmul.bf16.gmra.mxu0 %v1769
  %v1782 = vpop.f32.mrf.mxu0
  %v1783 = vadd.f32 0.0, %v1782
  %v1784 = vpop.f32.mrf.mxu0
  %1785 = vdwg.mxu0
  %1786 = vmatpush.bf16.msra.mxu0 %v145
  %1787 = vmatpush.bf16.msra.mxu0 %v144
  %1788 = vmatpush.bf16.msra.mxu0 %v143
  %1789 = vmatpush.bf16.msra.mxu0 %v142
  %1790 = vmatpush.bf16.msra.mxu0 %v141
  %1791 = vmatpush.bf16.msra.mxu0 %v140
  %1792 = vmatpush.bf16.msra.mxu0 %v139
  %1793 = vmatpush.bf16.msra.mxu0 %v138
  %1794 = vmatmul.bf16.gmra.mxu0 %v1770
  %v1795 = vpop.f32.mrf.mxu0
  %v1796 = vadd.f32 %v1783, %v1795
  %v1797 = vpop.f32.mrf.mxu0
  %1798 = vdwg.mxu0
  %v1799 = vmax.f32 %v1761, %v1796
  %s1800 = scalar_lea.vmem %s0, 240
  %v1801 = vld [vmem:[%s1800] sm:$0xff]
  %v1803 = vunpack.c.l.b16 %v1801
  %v1804 = vunpack.c.h.b16 %v1801
  %v1805 = vpack.c.b16 %v1803, %v1803
  %v1806 = vpack.c.b16 %v1804, %v1804
  %1809 = vmatpush.bf16.msra.mxu0 %v137
  %1810 = vmatpush.bf16.msra.mxu0 %v136
  %1811 = vmatpush.bf16.msra.mxu0 %v135
  %1812 = vmatpush.bf16.msra.mxu0 %v134
  %1813 = vmatpush.bf16.msra.mxu0 %v133
  %1814 = vmatpush.bf16.msra.mxu0 %v132
  %1815 = vmatpush.bf16.msra.mxu0 %v131
  %1816 = vmatpush.bf16.msra.mxu0 %v130
  %1817 = vmatmul.bf16.gmra.mxu0 %v1805
  %v1818 = vpop.f32.mrf.mxu0
  %v1819 = vadd.f32 0.0, %v1818
  %v1820 = vpop.f32.mrf.mxu0
  %1821 = vdwg.mxu0
  %1822 = vmatpush.bf16.msra.mxu0 %v145
  %1823 = vmatpush.bf16.msra.mxu0 %v144
  %1824 = vmatpush.bf16.msra.mxu0 %v143
  %1825 = vmatpush.bf16.msra.mxu0 %v142
  %1826 = vmatpush.bf16.msra.mxu0 %v141
  %1827 = vmatpush.bf16.msra.mxu0 %v140
  %1828 = vmatpush.bf16.msra.mxu0 %v139
  %1829 = vmatpush.bf16.msra.mxu0 %v138
  %1830 = vmatmul.bf16.gmra.mxu0 %v1806
  %v1831 = vpop.f32.mrf.mxu0
  %v1832 = vadd.f32 %v1819, %v1831
  %v1833 = vpop.f32.mrf.mxu0
  %1834 = vdwg.mxu0
  %v1835 = vmax.f32 %v1799, %v1832
  %s1836 = scalar_lea.vmem %s0, 248
  %v1837 = vld [vmem:[%s1836] sm:$0xff]
  %v1839 = vunpack.c.l.b16 %v1837
  %v1840 = vunpack.c.h.b16 %v1837
  %v1841 = vpack.c.b16 %v1839, %v1839
  %v1842 = vpack.c.b16 %v1840, %v1840
  %1845 = vmatpush.bf16.msra.mxu0 %v137
  %1846 = vmatpush.bf16.msra.mxu0 %v136
  %1847 = vmatpush.bf16.msra.mxu0 %v135
  %1848 = vmatpush.bf16.msra.mxu0 %v134
  %1849 = vmatpush.bf16.msra.mxu0 %v133
  %1850 = vmatpush.bf16.msra.mxu0 %v132
  %1851 = vmatpush.bf16.msra.mxu0 %v131
  %1852 = vmatpush.bf16.msra.mxu0 %v130
  %1853 = vmatmul.bf16.gmra.mxu0 %v1841
  %v1854 = vpop.f32.mrf.mxu0
  %v1855 = vadd.f32 0.0, %v1854
  %v1856 = vpop.f32.mrf.mxu0
  %1857 = vdwg.mxu0
  %1858 = vmatpush.bf16.msra.mxu0 %v145
  %1859 = vmatpush.bf16.msra.mxu0 %v144
  %1860 = vmatpush.bf16.msra.mxu0 %v143
  %1861 = vmatpush.bf16.msra.mxu0 %v142
  %1862 = vmatpush.bf16.msra.mxu0 %v141
  %1863 = vmatpush.bf16.msra.mxu0 %v140
  %1864 = vmatpush.bf16.msra.mxu0 %v139
  %1865 = vmatpush.bf16.msra.mxu0 %v138
  %1866 = vmatmul.bf16.gmra.mxu0 %v1842
  %v1867 = vpop.f32.mrf.mxu0
  %v1868 = vadd.f32 %v1855, %v1867
  %v1869 = vpop.f32.mrf.mxu0
  %1870 = vdwg.mxu0
  %v1871 = vmax.f32 %v1835, %v1868
  %v1872 = vadd.f32 %v1871, %v298
  %v1873 = vmax.f32 %v1872, 0.0
  %v1874 = vpack.c.bf16 %v1873, %v1873
  %s1875 = scalar_lea.vmem %s3, 448
  %v1876 = vld [vmem:[%s1875] sm:$0xf]
  %v1877 = vld [vmem:[%s1875 + $0x4] sm:$0xf]
  %v1878 = vld [vmem:[%s1875 + $0x8] sm:$0xf]
  %v1879 = vld [vmem:[%s1875 + $0xc] sm:$0xf]
  %v1880 = vld [vmem:[%s1875 + $0x10] sm:$0xf]
  %v1881 = vld [vmem:[%s1875 + $0x14] sm:$0xf]
  %v1882 = vld [vmem:[%s1875 + $0x18] sm:$0xf]
  %v1883 = vld [vmem:[%s1875 + $0x1c] sm:$0xf]
  %v1884 = vld [vmem:[%s1875 + $0x20] sm:$0xf]
  %v1885 = vld [vmem:[%s1875 + $0x24] sm:$0xf]
  %v1886 = vld [vmem:[%s1875 + $0x28] sm:$0xf]
  %v1887 = vld [vmem:[%s1875 + $0x2c] sm:$0xf]
  %v1888 = vld [vmem:[%s1875 + $0x30] sm:$0xf]
  %v1889 = vld [vmem:[%s1875 + $0x34] sm:$0xf]
  %v1890 = vld [vmem:[%s1875 + $0x38] sm:$0xf]
  %v1891 = vld [vmem:[%s1875 + $0x3c] sm:$0xf]
  %v1908 = vunpack.c.l.b16 %v1876
  %v1909 = vunpack.c.l.b16 %v1877
  %v1910 = vunpack.c.l.b16 %v1878
  %v1911 = vunpack.c.l.b16 %v1879
  %v1912 = vunpack.c.l.b16 %v1880
  %v1913 = vunpack.c.l.b16 %v1881
  %v1914 = vunpack.c.l.b16 %v1882
  %v1915 = vunpack.c.l.b16 %v1883
  %v1916 = vunpack.c.l.b16 %v1884
  %v1917 = vunpack.c.l.b16 %v1885
  %v1918 = vunpack.c.l.b16 %v1886
  %v1919 = vunpack.c.l.b16 %v1887
  %v1920 = vunpack.c.l.b16 %v1888
  %v1921 = vunpack.c.l.b16 %v1889
  %v1922 = vunpack.c.l.b16 %v1890
  %v1923 = vunpack.c.l.b16 %v1891
  %v1924 = vpack.c.b16 %v1909, %v1908
  %v1925 = vpack.c.b16 %v1911, %v1910
  %v1926 = vpack.c.b16 %v1913, %v1912
  %v1927 = vpack.c.b16 %v1915, %v1914
  %v1928 = vpack.c.b16 %v1917, %v1916
  %v1929 = vpack.c.b16 %v1919, %v1918
  %v1930 = vpack.c.b16 %v1921, %v1920
  %v1931 = vpack.c.b16 %v1923, %v1922
  %1940 = vmatpush.bf16.msra.mxu0 %v1931
  %1941 = vmatpush.bf16.msra.mxu0 %v1930
  %1942 = vmatpush.bf16.msra.mxu0 %v1929
  %1943 = vmatpush.bf16.msra.mxu0 %v1928
  %1944 = vmatpush.bf16.msra.mxu0 %v1927
  %1945 = vmatpush.bf16.msra.mxu0 %v1926
  %1946 = vmatpush.bf16.msra.mxu0 %v1925
  %1947 = vmatpush.bf16.msra.mxu0 %v1924
  %1948 = vmatmul.bf16.gmra.mxu0 %v1874
  %v1949 = vpop.f32.mrf.mxu0
  %v1950 = vadd.f32 0.0, %v1949
  %v1951 = vpop.f32.mrf.mxu0
  %1952 = vdwg.mxu0
  %v1953 = vadd.f32 %v1728, %v1950
  %s1954 = scalar_lea.vmem %s0, 256
  %v1955 = vld [vmem:[%s1954] sm:$0xff]
  %v1957 = vunpack.c.l.b16 %v1955
  %v1958 = vunpack.c.h.b16 %v1955
  %v1959 = vpack.c.b16 %v1957, %v1957
  %v1960 = vpack.c.b16 %v1958, %v1958
  %1963 = vmatpush.bf16.msra.mxu0 %v137
  %1964 = vmatpush.bf16.msra.mxu0 %v136
  %1965 = vmatpush.bf16.msra.mxu0 %v135
  %1966 = vmatpush.bf16.msra.mxu0 %v134
  %1967 = vmatpush.bf16.msra.mxu0 %v133
  %1968 = vmatpush.bf16.msra.mxu0 %v132
  %1969 = vmatpush.bf16.msra.mxu0 %v131
  %1970 = vmatpush.bf16.msra.mxu0 %v130
  %1971 = vmatmul.bf16.gmra.mxu0 %v1959
  %v1972 = vpop.f32.mrf.mxu0
  %v1973 = vadd.f32 0.0, %v1972
  %v1974 = vpop.f32.mrf.mxu0
  %1975 = vdwg.mxu0
  %1976 = vmatpush.bf16.msra.mxu0 %v145
  %1977 = vmatpush.bf16.msra.mxu0 %v144
  %1978 = vmatpush.bf16.msra.mxu0 %v143
  %1979 = vmatpush.bf16.msra.mxu0 %v142
  %1980 = vmatpush.bf16.msra.mxu0 %v141
  %1981 = vmatpush.bf16.msra.mxu0 %v140
  %1982 = vmatpush.bf16.msra.mxu0 %v139
  %1983 = vmatpush.bf16.msra.mxu0 %v138
  %1984 = vmatmul.bf16.gmra.mxu0 %v1960
  %v1985 = vpop.f32.mrf.mxu0
  %v1986 = vadd.f32 %v1973, %v1985
  %v1987 = vpop.f32.mrf.mxu0
  %1988 = vdwg.mxu0
  %s1989 = scalar_lea.vmem %s0, 264
  %v1990 = vld [vmem:[%s1989] sm:$0xff]
  %v1992 = vunpack.c.l.b16 %v1990
  %v1993 = vunpack.c.h.b16 %v1990
  %v1994 = vpack.c.b16 %v1992, %v1992
  %v1995 = vpack.c.b16 %v1993, %v1993
  %1998 = vmatpush.bf16.msra.mxu0 %v137
  %1999 = vmatpush.bf16.msra.mxu0 %v136
  %2000 = vmatpush.bf16.msra.mxu0 %v135
  %2001 = vmatpush.bf16.msra.mxu0 %v134
  %2002 = vmatpush.bf16.msra.mxu0 %v133
  %2003 = vmatpush.bf16.msra.mxu0 %v132
  %2004 = vmatpush.bf16.msra.mxu0 %v131
  %2005 = vmatpush.bf16.msra.mxu0 %v130
  %2006 = vmatmul.bf16.gmra.mxu0 %v1994
  %v2007 = vpop.f32.mrf.mxu0
  %v2008 = vadd.f32 0.0, %v2007
  %v2009 = vpop.f32.mrf.mxu0
  %2010 = vdwg.mxu0
  %2011 = vmatpush.bf16.msra.mxu0 %v145
  %2012 = vmatpush.bf16.msra.mxu0 %v144
  %2013 = vmatpush.bf16.msra.mxu0 %v143
  %2014 = vmatpush.bf16.msra.mxu0 %v142
  %2015 = vmatpush.bf16.msra.mxu0 %v141
  %2016 = vmatpush.bf16.msra.mxu0 %v140
  %2017 = vmatpush.bf16.msra.mxu0 %v139
  %2018 = vmatpush.bf16.msra.mxu0 %v138
  %2019 = vmatmul.bf16.gmra.mxu0 %v1995
  %v2020 = vpop.f32.mrf.mxu0
  %v2021 = vadd.f32 %v2008, %v2020
  %v2022 = vpop.f32.mrf.mxu0
  %2023 = vdwg.mxu0
  %v2024 = vmax.f32 %v1986, %v2021
  %s2025 = scalar_lea.vmem %s0, 272
  %v2026 = vld [vmem:[%s2025] sm:$0xff]
  %v2028 = vunpack.c.l.b16 %v2026
  %v2029 = vunpack.c.h.b16 %v2026
  %v2030 = vpack.c.b16 %v2028, %v2028
  %v2031 = vpack.c.b16 %v2029, %v2029
  %2034 = vmatpush.bf16.msra.mxu0 %v137
  %2035 = vmatpush.bf16.msra.mxu0 %v136
  %2036 = vmatpush.bf16.msra.mxu0 %v135
  %2037 = vmatpush.bf16.msra.mxu0 %v134
  %2038 = vmatpush.bf16.msra.mxu0 %v133
  %2039 = vmatpush.bf16.msra.mxu0 %v132
  %2040 = vmatpush.bf16.msra.mxu0 %v131
  %2041 = vmatpush.bf16.msra.mxu0 %v130
  %2042 = vmatmul.bf16.gmra.mxu0 %v2030
  %v2043 = vpop.f32.mrf.mxu0
  %v2044 = vadd.f32 0.0, %v2043
  %v2045 = vpop.f32.mrf.mxu0
  %2046 = vdwg.mxu0
  %2047 = vmatpush.bf16.msra.mxu0 %v145
  %2048 = vmatpush.bf16.msra.mxu0 %v144
  %2049 = vmatpush.bf16.msra.mxu0 %v143
  %2050 = vmatpush.bf16.msra.mxu0 %v142
  %2051 = vmatpush.bf16.msra.mxu0 %v141
  %2052 = vmatpush.bf16.msra.mxu0 %v140
  %2053 = vmatpush.bf16.msra.mxu0 %v139
  %2054 = vmatpush.bf16.msra.mxu0 %v138
  %2055 = vmatmul.bf16.gmra.mxu0 %v2031
  %v2056 = vpop.f32.mrf.mxu0
  %v2057 = vadd.f32 %v2044, %v2056
  %v2058 = vpop.f32.mrf.mxu0
  %2059 = vdwg.mxu0
  %v2060 = vmax.f32 %v2024, %v2057
  %s2061 = scalar_lea.vmem %s0, 280
  %v2062 = vld [vmem:[%s2061] sm:$0xff]
  %v2064 = vunpack.c.l.b16 %v2062
  %v2065 = vunpack.c.h.b16 %v2062
  %v2066 = vpack.c.b16 %v2064, %v2064
  %v2067 = vpack.c.b16 %v2065, %v2065
  %2070 = vmatpush.bf16.msra.mxu0 %v137
  %2071 = vmatpush.bf16.msra.mxu0 %v136
  %2072 = vmatpush.bf16.msra.mxu0 %v135
  %2073 = vmatpush.bf16.msra.mxu0 %v134
  %2074 = vmatpush.bf16.msra.mxu0 %v133
  %2075 = vmatpush.bf16.msra.mxu0 %v132
  %2076 = vmatpush.bf16.msra.mxu0 %v131
  %2077 = vmatpush.bf16.msra.mxu0 %v130
  %2078 = vmatmul.bf16.gmra.mxu0 %v2066
  %v2079 = vpop.f32.mrf.mxu0
  %v2080 = vadd.f32 0.0, %v2079
  %v2081 = vpop.f32.mrf.mxu0
  %2082 = vdwg.mxu0
  %2083 = vmatpush.bf16.msra.mxu0 %v145
  %2084 = vmatpush.bf16.msra.mxu0 %v144
  %2085 = vmatpush.bf16.msra.mxu0 %v143
  %2086 = vmatpush.bf16.msra.mxu0 %v142
  %2087 = vmatpush.bf16.msra.mxu0 %v141
  %2088 = vmatpush.bf16.msra.mxu0 %v140
  %2089 = vmatpush.bf16.msra.mxu0 %v139
  %2090 = vmatpush.bf16.msra.mxu0 %v138
  %2091 = vmatmul.bf16.gmra.mxu0 %v2067
  %v2092 = vpop.f32.mrf.mxu0
  %v2093 = vadd.f32 %v2080, %v2092
  %v2094 = vpop.f32.mrf.mxu0
  %2095 = vdwg.mxu0
  %v2096 = vmax.f32 %v2060, %v2093
  %v2097 = vadd.f32 %v2096, %v298
  %v2098 = vmax.f32 %v2097, 0.0
  %v2099 = vpack.c.bf16 %v2098, %v2098
  %s2100 = scalar_lea.vmem %s3, 512
  %v2101 = vld [vmem:[%s2100] sm:$0xf]
  %v2102 = vld [vmem:[%s2100 + $0x4] sm:$0xf]
  %v2103 = vld [vmem:[%s2100 + $0x8] sm:$0xf]
  %v2104 = vld [vmem:[%s2100 + $0xc] sm:$0xf]
  %v2105 = vld [vmem:[%s2100 + $0x10] sm:$0xf]
  %v2106 = vld [vmem:[%s2100 + $0x14] sm:$0xf]
  %v2107 = vld [vmem:[%s2100 + $0x18] sm:$0xf]
  %v2108 = vld [vmem:[%s2100 + $0x1c] sm:$0xf]
  %v2109 = vld [vmem:[%s2100 + $0x20] sm:$0xf]
  %v2110 = vld [vmem:[%s2100 + $0x24] sm:$0xf]
  %v2111 = vld [vmem:[%s2100 + $0x28] sm:$0xf]
  %v2112 = vld [vmem:[%s2100 + $0x2c] sm:$0xf]
  %v2113 = vld [vmem:[%s2100 + $0x30] sm:$0xf]
  %v2114 = vld [vmem:[%s2100 + $0x34] sm:$0xf]
  %v2115 = vld [vmem:[%s2100 + $0x38] sm:$0xf]
  %v2116 = vld [vmem:[%s2100 + $0x3c] sm:$0xf]
  %v2133 = vunpack.c.l.b16 %v2101
  %v2134 = vunpack.c.l.b16 %v2102
  %v2135 = vunpack.c.l.b16 %v2103
  %v2136 = vunpack.c.l.b16 %v2104
  %v2137 = vunpack.c.l.b16 %v2105
  %v2138 = vunpack.c.l.b16 %v2106
  %v2139 = vunpack.c.l.b16 %v2107
  %v2140 = vunpack.c.l.b16 %v2108
  %v2141 = vunpack.c.l.b16 %v2109
  %v2142 = vunpack.c.l.b16 %v2110
  %v2143 = vunpack.c.l.b16 %v2111
  %v2144 = vunpack.c.l.b16 %v2112
  %v2145 = vunpack.c.l.b16 %v2113
  %v2146 = vunpack.c.l.b16 %v2114
  %v2147 = vunpack.c.l.b16 %v2115
  %v2148 = vunpack.c.l.b16 %v2116
  %v2149 = vpack.c.b16 %v2134, %v2133
  %v2150 = vpack.c.b16 %v2136, %v2135
  %v2151 = vpack.c.b16 %v2138, %v2137
  %v2152 = vpack.c.b16 %v2140, %v2139
  %v2153 = vpack.c.b16 %v2142, %v2141
  %v2154 = vpack.c.b16 %v2144, %v2143
  %v2155 = vpack.c.b16 %v2146, %v2145
  %v2156 = vpack.c.b16 %v2148, %v2147
  %2165 = vmatpush.bf16.msra.mxu0 %v2156
  %2166 = vmatpush.bf16.msra.mxu0 %v2155
  %2167 = vmatpush.bf16.msra.mxu0 %v2154
  %2168 = vmatpush.bf16.msra.mxu0 %v2153
  %2169 = vmatpush.bf16.msra.mxu0 %v2152
  %2170 = vmatpush.bf16.msra.mxu0 %v2151
  %2171 = vmatpush.bf16.msra.mxu0 %v2150
  %2172 = vmatpush.bf16.msra.mxu0 %v2149
  %2173 = vmatmul.bf16.gmra.mxu0 %v2099
  %v2174 = vpop.f32.mrf.mxu0
  %v2175 = vadd.f32 0.0, %v2174
  %v2176 = vpop.f32.mrf.mxu0
  %2177 = vdwg.mxu0
  %v2178 = vadd.f32 %v1953, %v2175
  %s2179 = scalar_lea.vmem %s0, 288
  %v2180 = vld [vmem:[%s2179] sm:$0xff]
  %v2182 = vunpack.c.l.b16 %v2180
  %v2183 = vunpack.c.h.b16 %v2180
  %v2184 = vpack.c.b16 %v2182, %v2182
  %v2185 = vpack.c.b16 %v2183, %v2183
  %2188 = vmatpush.bf16.msra.mxu0 %v137
  %2189 = vmatpush.bf16.msra.mxu0 %v136
  %2190 = vmatpush.bf16.msra.mxu0 %v135
  %2191 = vmatpush.bf16.msra.mxu0 %v134
  %2192 = vmatpush.bf16.msra.mxu0 %v133
  %2193 = vmatpush.bf16.msra.mxu0 %v132
  %2194 = vmatpush.bf16.msra.mxu0 %v131
  %2195 = vmatpush.bf16.msra.mxu0 %v130
  %2196 = vmatmul.bf16.gmra.mxu0 %v2184
  %v2197 = vpop.f32.mrf.mxu0
  %v2198 = vadd.f32 0.0, %v2197
  %v2199 = vpop.f32.mrf.mxu0
  %2200 = vdwg.mxu0
  %2201 = vmatpush.bf16.msra.mxu0 %v145
  %2202 = vmatpush.bf16.msra.mxu0 %v144
  %2203 = vmatpush.bf16.msra.mxu0 %v143
  %2204 = vmatpush.bf16.msra.mxu0 %v142
  %2205 = vmatpush.bf16.msra.mxu0 %v141
  %2206 = vmatpush.bf16.msra.mxu0 %v140
  %2207 = vmatpush.bf16.msra.mxu0 %v139
  %2208 = vmatpush.bf16.msra.mxu0 %v138
  %2209 = vmatmul.bf16.gmra.mxu0 %v2185
  %v2210 = vpop.f32.mrf.mxu0
  %v2211 = vadd.f32 %v2198, %v2210
  %v2212 = vpop.f32.mrf.mxu0
  %2213 = vdwg.mxu0
  %s2214 = scalar_lea.vmem %s0, 296
  %v2215 = vld [vmem:[%s2214] sm:$0xff]
  %v2217 = vunpack.c.l.b16 %v2215
  %v2218 = vunpack.c.h.b16 %v2215
  %v2219 = vpack.c.b16 %v2217, %v2217
  %v2220 = vpack.c.b16 %v2218, %v2218
  %2223 = vmatpush.bf16.msra.mxu0 %v137
  %2224 = vmatpush.bf16.msra.mxu0 %v136
  %2225 = vmatpush.bf16.msra.mxu0 %v135
  %2226 = vmatpush.bf16.msra.mxu0 %v134
  %2227 = vmatpush.bf16.msra.mxu0 %v133
  %2228 = vmatpush.bf16.msra.mxu0 %v132
  %2229 = vmatpush.bf16.msra.mxu0 %v131
  %2230 = vmatpush.bf16.msra.mxu0 %v130
  %2231 = vmatmul.bf16.gmra.mxu0 %v2219
  %v2232 = vpop.f32.mrf.mxu0
  %v2233 = vadd.f32 0.0, %v2232
  %v2234 = vpop.f32.mrf.mxu0
  %2235 = vdwg.mxu0
  %2236 = vmatpush.bf16.msra.mxu0 %v145
  %2237 = vmatpush.bf16.msra.mxu0 %v144
  %2238 = vmatpush.bf16.msra.mxu0 %v143
  %2239 = vmatpush.bf16.msra.mxu0 %v142
  %2240 = vmatpush.bf16.msra.mxu0 %v141
  %2241 = vmatpush.bf16.msra.mxu0 %v140
  %2242 = vmatpush.bf16.msra.mxu0 %v139
  %2243 = vmatpush.bf16.msra.mxu0 %v138
  %2244 = vmatmul.bf16.gmra.mxu0 %v2220
  %v2245 = vpop.f32.mrf.mxu0
  %v2246 = vadd.f32 %v2233, %v2245
  %v2247 = vpop.f32.mrf.mxu0
  %2248 = vdwg.mxu0
  %v2249 = vmax.f32 %v2211, %v2246
  %s2250 = scalar_lea.vmem %s0, 304
  %v2251 = vld [vmem:[%s2250] sm:$0xff]
  %v2253 = vunpack.c.l.b16 %v2251
  %v2254 = vunpack.c.h.b16 %v2251
  %v2255 = vpack.c.b16 %v2253, %v2253
  %v2256 = vpack.c.b16 %v2254, %v2254
  %2259 = vmatpush.bf16.msra.mxu0 %v137
  %2260 = vmatpush.bf16.msra.mxu0 %v136
  %2261 = vmatpush.bf16.msra.mxu0 %v135
  %2262 = vmatpush.bf16.msra.mxu0 %v134
  %2263 = vmatpush.bf16.msra.mxu0 %v133
  %2264 = vmatpush.bf16.msra.mxu0 %v132
  %2265 = vmatpush.bf16.msra.mxu0 %v131
  %2266 = vmatpush.bf16.msra.mxu0 %v130
  %2267 = vmatmul.bf16.gmra.mxu0 %v2255
  %v2268 = vpop.f32.mrf.mxu0
  %v2269 = vadd.f32 0.0, %v2268
  %v2270 = vpop.f32.mrf.mxu0
  %2271 = vdwg.mxu0
  %2272 = vmatpush.bf16.msra.mxu0 %v145
  %2273 = vmatpush.bf16.msra.mxu0 %v144
  %2274 = vmatpush.bf16.msra.mxu0 %v143
  %2275 = vmatpush.bf16.msra.mxu0 %v142
  %2276 = vmatpush.bf16.msra.mxu0 %v141
  %2277 = vmatpush.bf16.msra.mxu0 %v140
  %2278 = vmatpush.bf16.msra.mxu0 %v139
  %2279 = vmatpush.bf16.msra.mxu0 %v138
  %2280 = vmatmul.bf16.gmra.mxu0 %v2256
  %v2281 = vpop.f32.mrf.mxu0
  %v2282 = vadd.f32 %v2269, %v2281
  %v2283 = vpop.f32.mrf.mxu0
  %2284 = vdwg.mxu0
  %v2285 = vmax.f32 %v2249, %v2282
  %s2286 = scalar_lea.vmem %s0, 312
  %v2287 = vld [vmem:[%s2286] sm:$0xff]
  %v2289 = vunpack.c.l.b16 %v2287
  %v2290 = vunpack.c.h.b16 %v2287
  %v2291 = vpack.c.b16 %v2289, %v2289
  %v2292 = vpack.c.b16 %v2290, %v2290
  %2295 = vmatpush.bf16.msra.mxu0 %v137
  %2296 = vmatpush.bf16.msra.mxu0 %v136
  %2297 = vmatpush.bf16.msra.mxu0 %v135
  %2298 = vmatpush.bf16.msra.mxu0 %v134
  %2299 = vmatpush.bf16.msra.mxu0 %v133
  %2300 = vmatpush.bf16.msra.mxu0 %v132
  %2301 = vmatpush.bf16.msra.mxu0 %v131
  %2302 = vmatpush.bf16.msra.mxu0 %v130
  %2303 = vmatmul.bf16.gmra.mxu0 %v2291
  %v2304 = vpop.f32.mrf.mxu0
  %v2305 = vadd.f32 0.0, %v2304
  %v2306 = vpop.f32.mrf.mxu0
  %2307 = vdwg.mxu0
  %2308 = vmatpush.bf16.msra.mxu0 %v145
  %2309 = vmatpush.bf16.msra.mxu0 %v144
  %2310 = vmatpush.bf16.msra.mxu0 %v143
  %2311 = vmatpush.bf16.msra.mxu0 %v142
  %2312 = vmatpush.bf16.msra.mxu0 %v141
  %2313 = vmatpush.bf16.msra.mxu0 %v140
  %2314 = vmatpush.bf16.msra.mxu0 %v139
  %2315 = vmatpush.bf16.msra.mxu0 %v138
  %2316 = vmatmul.bf16.gmra.mxu0 %v2292
  %v2317 = vpop.f32.mrf.mxu0
  %v2318 = vadd.f32 %v2305, %v2317
  %v2319 = vpop.f32.mrf.mxu0
  %2320 = vdwg.mxu0
  %v2321 = vmax.f32 %v2285, %v2318
  %v2322 = vadd.f32 %v2321, %v298
  %v2323 = vmax.f32 %v2322, 0.0
  %v2324 = vpack.c.bf16 %v2323, %v2323
  %s2325 = scalar_lea.vmem %s3, 576
  %v2326 = vld [vmem:[%s2325] sm:$0xf]
  %v2327 = vld [vmem:[%s2325 + $0x4] sm:$0xf]
  %v2328 = vld [vmem:[%s2325 + $0x8] sm:$0xf]
  %v2329 = vld [vmem:[%s2325 + $0xc] sm:$0xf]
  %v2330 = vld [vmem:[%s2325 + $0x10] sm:$0xf]
  %v2331 = vld [vmem:[%s2325 + $0x14] sm:$0xf]
  %v2332 = vld [vmem:[%s2325 + $0x18] sm:$0xf]
  %v2333 = vld [vmem:[%s2325 + $0x1c] sm:$0xf]
  %v2334 = vld [vmem:[%s2325 + $0x20] sm:$0xf]
  %v2335 = vld [vmem:[%s2325 + $0x24] sm:$0xf]
  %v2336 = vld [vmem:[%s2325 + $0x28] sm:$0xf]
  %v2337 = vld [vmem:[%s2325 + $0x2c] sm:$0xf]
  %v2338 = vld [vmem:[%s2325 + $0x30] sm:$0xf]
  %v2339 = vld [vmem:[%s2325 + $0x34] sm:$0xf]
  %v2340 = vld [vmem:[%s2325 + $0x38] sm:$0xf]
  %v2341 = vld [vmem:[%s2325 + $0x3c] sm:$0xf]
  %v2358 = vunpack.c.l.b16 %v2326
  %v2359 = vunpack.c.l.b16 %v2327
  %v2360 = vunpack.c.l.b16 %v2328
  %v2361 = vunpack.c.l.b16 %v2329
  %v2362 = vunpack.c.l.b16 %v2330
  %v2363 = vunpack.c.l.b16 %v2331
  %v2364 = vunpack.c.l.b16 %v2332
  %v2365 = vunpack.c.l.b16 %v2333
  %v2366 = vunpack.c.l.b16 %v2334
  %v2367 = vunpack.c.l.b16 %v2335
  %v2368 = vunpack.c.l.b16 %v2336
  %v2369 = vunpack.c.l.b16 %v2337
  %v2370 = vunpack.c.l.b16 %v2338
  %v2371 = vunpack.c.l.b16 %v2339
  %v2372 = vunpack.c.l.b16 %v2340
  %v2373 = vunpack.c.l.b16 %v2341
  %v2374 = vpack.c.b16 %v2359, %v2358
  %v2375 = vpack.c.b16 %v2361, %v2360
  %v2376 = vpack.c.b16 %v2363, %v2362
  %v2377 = vpack.c.b16 %v2365, %v2364
  %v2378 = vpack.c.b16 %v2367, %v2366
  %v2379 = vpack.c.b16 %v2369, %v2368
  %v2380 = vpack.c.b16 %v2371, %v2370
  %v2381 = vpack.c.b16 %v2373, %v2372
  %2390 = vmatpush.bf16.msra.mxu0 %v2381
  %2391 = vmatpush.bf16.msra.mxu0 %v2380
  %2392 = vmatpush.bf16.msra.mxu0 %v2379
  %2393 = vmatpush.bf16.msra.mxu0 %v2378
  %2394 = vmatpush.bf16.msra.mxu0 %v2377
  %2395 = vmatpush.bf16.msra.mxu0 %v2376
  %2396 = vmatpush.bf16.msra.mxu0 %v2375
  %2397 = vmatpush.bf16.msra.mxu0 %v2374
  %2398 = vmatmul.bf16.gmra.mxu0 %v2324
  %v2399 = vpop.f32.mrf.mxu0
  %v2400 = vadd.f32 0.0, %v2399
  %v2401 = vpop.f32.mrf.mxu0
  %2402 = vdwg.mxu0
  %v2403 = vadd.f32 %v2178, %v2400
  %s2404 = scalar_lea.vmem %s0, 320
  %v2405 = vld [vmem:[%s2404] sm:$0xff]
  %v2407 = vunpack.c.l.b16 %v2405
  %v2408 = vunpack.c.h.b16 %v2405
  %v2409 = vpack.c.b16 %v2407, %v2407
  %v2410 = vpack.c.b16 %v2408, %v2408
  %2413 = vmatpush.bf16.msra.mxu0 %v137
  %2414 = vmatpush.bf16.msra.mxu0 %v136
  %2415 = vmatpush.bf16.msra.mxu0 %v135
  %2416 = vmatpush.bf16.msra.mxu0 %v134
  %2417 = vmatpush.bf16.msra.mxu0 %v133
  %2418 = vmatpush.bf16.msra.mxu0 %v132
  %2419 = vmatpush.bf16.msra.mxu0 %v131
  %2420 = vmatpush.bf16.msra.mxu0 %v130
  %2421 = vmatmul.bf16.gmra.mxu0 %v2409
  %v2422 = vpop.f32.mrf.mxu0
  %v2423 = vadd.f32 0.0, %v2422
  %v2424 = vpop.f32.mrf.mxu0
  %2425 = vdwg.mxu0
  %2426 = vmatpush.bf16.msra.mxu0 %v145
  %2427 = vmatpush.bf16.msra.mxu0 %v144
  %2428 = vmatpush.bf16.msra.mxu0 %v143
  %2429 = vmatpush.bf16.msra.mxu0 %v142
  %2430 = vmatpush.bf16.msra.mxu0 %v141
  %2431 = vmatpush.bf16.msra.mxu0 %v140
  %2432 = vmatpush.bf16.msra.mxu0 %v139
  %2433 = vmatpush.bf16.msra.mxu0 %v138
  %2434 = vmatmul.bf16.gmra.mxu0 %v2410
  %v2435 = vpop.f32.mrf.mxu0
  %v2436 = vadd.f32 %v2423, %v2435
  %v2437 = vpop.f32.mrf.mxu0
  %2438 = vdwg.mxu0
  %s2439 = scalar_lea.vmem %s0, 328
  %v2440 = vld [vmem:[%s2439] sm:$0xff]
  %v2442 = vunpack.c.l.b16 %v2440
  %v2443 = vunpack.c.h.b16 %v2440
  %v2444 = vpack.c.b16 %v2442, %v2442
  %v2445 = vpack.c.b16 %v2443, %v2443
  %2448 = vmatpush.bf16.msra.mxu0 %v137
  %2449 = vmatpush.bf16.msra.mxu0 %v136
  %2450 = vmatpush.bf16.msra.mxu0 %v135
  %2451 = vmatpush.bf16.msra.mxu0 %v134
  %2452 = vmatpush.bf16.msra.mxu0 %v133
  %2453 = vmatpush.bf16.msra.mxu0 %v132
  %2454 = vmatpush.bf16.msra.mxu0 %v131
  %2455 = vmatpush.bf16.msra.mxu0 %v130
  %2456 = vmatmul.bf16.gmra.mxu0 %v2444
  %v2457 = vpop.f32.mrf.mxu0
  %v2458 = vadd.f32 0.0, %v2457
  %v2459 = vpop.f32.mrf.mxu0
  %2460 = vdwg.mxu0
  %2461 = vmatpush.bf16.msra.mxu0 %v145
  %2462 = vmatpush.bf16.msra.mxu0 %v144
  %2463 = vmatpush.bf16.msra.mxu0 %v143
  %2464 = vmatpush.bf16.msra.mxu0 %v142
  %2465 = vmatpush.bf16.msra.mxu0 %v141
  %2466 = vmatpush.bf16.msra.mxu0 %v140
  %2467 = vmatpush.bf16.msra.mxu0 %v139
  %2468 = vmatpush.bf16.msra.mxu0 %v138
  %2469 = vmatmul.bf16.gmra.mxu0 %v2445
  %v2470 = vpop.f32.mrf.mxu0
  %v2471 = vadd.f32 %v2458, %v2470
  %v2472 = vpop.f32.mrf.mxu0
  %2473 = vdwg.mxu0
  %v2474 = vmax.f32 %v2436, %v2471
  %s2475 = scalar_lea.vmem %s0, 336
  %v2476 = vld [vmem:[%s2475] sm:$0xff]
  %v2478 = vunpack.c.l.b16 %v2476
  %v2479 = vunpack.c.h.b16 %v2476
  %v2480 = vpack.c.b16 %v2478, %v2478
  %v2481 = vpack.c.b16 %v2479, %v2479
  %2484 = vmatpush.bf16.msra.mxu0 %v137
  %2485 = vmatpush.bf16.msra.mxu0 %v136
  %2486 = vmatpush.bf16.msra.mxu0 %v135
  %2487 = vmatpush.bf16.msra.mxu0 %v134
  %2488 = vmatpush.bf16.msra.mxu0 %v133
  %2489 = vmatpush.bf16.msra.mxu0 %v132
  %2490 = vmatpush.bf16.msra.mxu0 %v131
  %2491 = vmatpush.bf16.msra.mxu0 %v130
  %2492 = vmatmul.bf16.gmra.mxu0 %v2480
  %v2493 = vpop.f32.mrf.mxu0
  %v2494 = vadd.f32 0.0, %v2493
  %v2495 = vpop.f32.mrf.mxu0
  %2496 = vdwg.mxu0
  %2497 = vmatpush.bf16.msra.mxu0 %v145
  %2498 = vmatpush.bf16.msra.mxu0 %v144
  %2499 = vmatpush.bf16.msra.mxu0 %v143
  %2500 = vmatpush.bf16.msra.mxu0 %v142
  %2501 = vmatpush.bf16.msra.mxu0 %v141
  %2502 = vmatpush.bf16.msra.mxu0 %v140
  %2503 = vmatpush.bf16.msra.mxu0 %v139
  %2504 = vmatpush.bf16.msra.mxu0 %v138
  %2505 = vmatmul.bf16.gmra.mxu0 %v2481
  %v2506 = vpop.f32.mrf.mxu0
  %v2507 = vadd.f32 %v2494, %v2506
  %v2508 = vpop.f32.mrf.mxu0
  %2509 = vdwg.mxu0
  %v2510 = vmax.f32 %v2474, %v2507
  %s2511 = scalar_lea.vmem %s0, 344
  %v2512 = vld [vmem:[%s2511] sm:$0xff]
  %v2514 = vunpack.c.l.b16 %v2512
  %v2515 = vunpack.c.h.b16 %v2512
  %v2516 = vpack.c.b16 %v2514, %v2514
  %v2517 = vpack.c.b16 %v2515, %v2515
  %2520 = vmatpush.bf16.msra.mxu0 %v137
  %2521 = vmatpush.bf16.msra.mxu0 %v136
  %2522 = vmatpush.bf16.msra.mxu0 %v135
  %2523 = vmatpush.bf16.msra.mxu0 %v134
  %2524 = vmatpush.bf16.msra.mxu0 %v133
  %2525 = vmatpush.bf16.msra.mxu0 %v132
  %2526 = vmatpush.bf16.msra.mxu0 %v131
  %2527 = vmatpush.bf16.msra.mxu0 %v130
  %2528 = vmatmul.bf16.gmra.mxu0 %v2516
  %v2529 = vpop.f32.mrf.mxu0
  %v2530 = vadd.f32 0.0, %v2529
  %v2531 = vpop.f32.mrf.mxu0
  %2532 = vdwg.mxu0
  %2533 = vmatpush.bf16.msra.mxu0 %v145
  %2534 = vmatpush.bf16.msra.mxu0 %v144
  %2535 = vmatpush.bf16.msra.mxu0 %v143
  %2536 = vmatpush.bf16.msra.mxu0 %v142
  %2537 = vmatpush.bf16.msra.mxu0 %v141
  %2538 = vmatpush.bf16.msra.mxu0 %v140
  %2539 = vmatpush.bf16.msra.mxu0 %v139
  %2540 = vmatpush.bf16.msra.mxu0 %v138
  %2541 = vmatmul.bf16.gmra.mxu0 %v2517
  %v2542 = vpop.f32.mrf.mxu0
  %v2543 = vadd.f32 %v2530, %v2542
  %v2544 = vpop.f32.mrf.mxu0
  %2545 = vdwg.mxu0
  %v2546 = vmax.f32 %v2510, %v2543
  %v2547 = vadd.f32 %v2546, %v298
  %v2548 = vmax.f32 %v2547, 0.0
  %v2549 = vpack.c.bf16 %v2548, %v2548
  %s2550 = scalar_lea.vmem %s3, 640
  %v2551 = vld [vmem:[%s2550] sm:$0xf]
  %v2552 = vld [vmem:[%s2550 + $0x4] sm:$0xf]
  %v2553 = vld [vmem:[%s2550 + $0x8] sm:$0xf]
  %v2554 = vld [vmem:[%s2550 + $0xc] sm:$0xf]
  %v2555 = vld [vmem:[%s2550 + $0x10] sm:$0xf]
  %v2556 = vld [vmem:[%s2550 + $0x14] sm:$0xf]
  %v2557 = vld [vmem:[%s2550 + $0x18] sm:$0xf]
  %v2558 = vld [vmem:[%s2550 + $0x1c] sm:$0xf]
  %v2559 = vld [vmem:[%s2550 + $0x20] sm:$0xf]
  %v2560 = vld [vmem:[%s2550 + $0x24] sm:$0xf]
  %v2561 = vld [vmem:[%s2550 + $0x28] sm:$0xf]
  %v2562 = vld [vmem:[%s2550 + $0x2c] sm:$0xf]
  %v2563 = vld [vmem:[%s2550 + $0x30] sm:$0xf]
  %v2564 = vld [vmem:[%s2550 + $0x34] sm:$0xf]
  %v2565 = vld [vmem:[%s2550 + $0x38] sm:$0xf]
  %v2566 = vld [vmem:[%s2550 + $0x3c] sm:$0xf]
  %v2583 = vunpack.c.l.b16 %v2551
  %v2584 = vunpack.c.l.b16 %v2552
  %v2585 = vunpack.c.l.b16 %v2553
  %v2586 = vunpack.c.l.b16 %v2554
  %v2587 = vunpack.c.l.b16 %v2555
  %v2588 = vunpack.c.l.b16 %v2556
  %v2589 = vunpack.c.l.b16 %v2557
  %v2590 = vunpack.c.l.b16 %v2558
  %v2591 = vunpack.c.l.b16 %v2559
  %v2592 = vunpack.c.l.b16 %v2560
  %v2593 = vunpack.c.l.b16 %v2561
  %v2594 = vunpack.c.l.b16 %v2562
  %v2595 = vunpack.c.l.b16 %v2563
  %v2596 = vunpack.c.l.b16 %v2564
  %v2597 = vunpack.c.l.b16 %v2565
  %v2598 = vunpack.c.l.b16 %v2566
  %v2599 = vpack.c.b16 %v2584, %v2583
  %v2600 = vpack.c.b16 %v2586, %v2585
  %v2601 = vpack.c.b16 %v2588, %v2587
  %v2602 = vpack.c.b16 %v2590, %v2589
  %v2603 = vpack.c.b16 %v2592, %v2591
  %v2604 = vpack.c.b16 %v2594, %v2593
  %v2605 = vpack.c.b16 %v2596, %v2595
  %v2606 = vpack.c.b16 %v2598, %v2597
  %2615 = vmatpush.bf16.msra.mxu0 %v2606
  %2616 = vmatpush.bf16.msra.mxu0 %v2605
  %2617 = vmatpush.bf16.msra.mxu0 %v2604
  %2618 = vmatpush.bf16.msra.mxu0 %v2603
  %2619 = vmatpush.bf16.msra.mxu0 %v2602
  %2620 = vmatpush.bf16.msra.mxu0 %v2601
  %2621 = vmatpush.bf16.msra.mxu0 %v2600
  %2622 = vmatpush.bf16.msra.mxu0 %v2599
  %2623 = vmatmul.bf16.gmra.mxu0 %v2549
  %v2624 = vpop.f32.mrf.mxu0
  %v2625 = vadd.f32 0.0, %v2624
  %v2626 = vpop.f32.mrf.mxu0
  %2627 = vdwg.mxu0
  %v2628 = vadd.f32 %v2403, %v2625
  %s2629 = scalar_lea.vmem %s0, 352
  %v2630 = vld [vmem:[%s2629] sm:$0xff]
  %v2632 = vunpack.c.l.b16 %v2630
  %v2633 = vunpack.c.h.b16 %v2630
  %v2634 = vpack.c.b16 %v2632, %v2632
  %v2635 = vpack.c.b16 %v2633, %v2633
  %2638 = vmatpush.bf16.msra.mxu0 %v137
  %2639 = vmatpush.bf16.msra.mxu0 %v136
  %2640 = vmatpush.bf16.msra.mxu0 %v135
  %2641 = vmatpush.bf16.msra.mxu0 %v134
  %2642 = vmatpush.bf16.msra.mxu0 %v133
  %2643 = vmatpush.bf16.msra.mxu0 %v132
  %2644 = vmatpush.bf16.msra.mxu0 %v131
  %2645 = vmatpush.bf16.msra.mxu0 %v130
  %2646 = vmatmul.bf16.gmra.mxu0 %v2634
  %v2647 = vpop.f32.mrf.mxu0
  %v2648 = vadd.f32 0.0, %v2647
  %v2649 = vpop.f32.mrf.mxu0
  %2650 = vdwg.mxu0
  %2651 = vmatpush.bf16.msra.mxu0 %v145
  %2652 = vmatpush.bf16.msra.mxu0 %v144
  %2653 = vmatpush.bf16.msra.mxu0 %v143
  %2654 = vmatpush.bf16.msra.mxu0 %v142
  %2655 = vmatpush.bf16.msra.mxu0 %v141
  %2656 = vmatpush.bf16.msra.mxu0 %v140
  %2657 = vmatpush.bf16.msra.mxu0 %v139
  %2658 = vmatpush.bf16.msra.mxu0 %v138
  %2659 = vmatmul.bf16.gmra.mxu0 %v2635
  %v2660 = vpop.f32.mrf.mxu0
  %v2661 = vadd.f32 %v2648, %v2660
  %v2662 = vpop.f32.mrf.mxu0
  %2663 = vdwg.mxu0
  %s2664 = scalar_lea.vmem %s0, 360
  %v2665 = vld [vmem:[%s2664] sm:$0xff]
  %v2667 = vunpack.c.l.b16 %v2665
  %v2668 = vunpack.c.h.b16 %v2665
  %v2669 = vpack.c.b16 %v2667, %v2667
  %v2670 = vpack.c.b16 %v2668, %v2668
  %2673 = vmatpush.bf16.msra.mxu0 %v137
  %2674 = vmatpush.bf16.msra.mxu0 %v136
  %2675 = vmatpush.bf16.msra.mxu0 %v135
  %2676 = vmatpush.bf16.msra.mxu0 %v134
  %2677 = vmatpush.bf16.msra.mxu0 %v133
  %2678 = vmatpush.bf16.msra.mxu0 %v132
  %2679 = vmatpush.bf16.msra.mxu0 %v131
  %2680 = vmatpush.bf16.msra.mxu0 %v130
  %2681 = vmatmul.bf16.gmra.mxu0 %v2669
  %v2682 = vpop.f32.mrf.mxu0
  %v2683 = vadd.f32 0.0, %v2682
  %v2684 = vpop.f32.mrf.mxu0
  %2685 = vdwg.mxu0
  %2686 = vmatpush.bf16.msra.mxu0 %v145
  %2687 = vmatpush.bf16.msra.mxu0 %v144
  %2688 = vmatpush.bf16.msra.mxu0 %v143
  %2689 = vmatpush.bf16.msra.mxu0 %v142
  %2690 = vmatpush.bf16.msra.mxu0 %v141
  %2691 = vmatpush.bf16.msra.mxu0 %v140
  %2692 = vmatpush.bf16.msra.mxu0 %v139
  %2693 = vmatpush.bf16.msra.mxu0 %v138
  %2694 = vmatmul.bf16.gmra.mxu0 %v2670
  %v2695 = vpop.f32.mrf.mxu0
  %v2696 = vadd.f32 %v2683, %v2695
  %v2697 = vpop.f32.mrf.mxu0
  %2698 = vdwg.mxu0
  %v2699 = vmax.f32 %v2661, %v2696
  %s2700 = scalar_lea.vmem %s0, 368
  %v2701 = vld [vmem:[%s2700] sm:$0xff]
  %v2703 = vunpack.c.l.b16 %v2701
  %v2704 = vunpack.c.h.b16 %v2701
  %v2705 = vpack.c.b16 %v2703, %v2703
  %v2706 = vpack.c.b16 %v2704, %v2704
  %2709 = vmatpush.bf16.msra.mxu0 %v137
  %2710 = vmatpush.bf16.msra.mxu0 %v136
  %2711 = vmatpush.bf16.msra.mxu0 %v135
  %2712 = vmatpush.bf16.msra.mxu0 %v134
  %2713 = vmatpush.bf16.msra.mxu0 %v133
  %2714 = vmatpush.bf16.msra.mxu0 %v132
  %2715 = vmatpush.bf16.msra.mxu0 %v131
  %2716 = vmatpush.bf16.msra.mxu0 %v130
  %2717 = vmatmul.bf16.gmra.mxu0 %v2705
  %v2718 = vpop.f32.mrf.mxu0
  %v2719 = vadd.f32 0.0, %v2718
  %v2720 = vpop.f32.mrf.mxu0
  %2721 = vdwg.mxu0
  %2722 = vmatpush.bf16.msra.mxu0 %v145
  %2723 = vmatpush.bf16.msra.mxu0 %v144
  %2724 = vmatpush.bf16.msra.mxu0 %v143
  %2725 = vmatpush.bf16.msra.mxu0 %v142
  %2726 = vmatpush.bf16.msra.mxu0 %v141
  %2727 = vmatpush.bf16.msra.mxu0 %v140
  %2728 = vmatpush.bf16.msra.mxu0 %v139
  %2729 = vmatpush.bf16.msra.mxu0 %v138
  %2730 = vmatmul.bf16.gmra.mxu0 %v2706
  %v2731 = vpop.f32.mrf.mxu0
  %v2732 = vadd.f32 %v2719, %v2731
  %v2733 = vpop.f32.mrf.mxu0
  %2734 = vdwg.mxu0
  %v2735 = vmax.f32 %v2699, %v2732
  %s2736 = scalar_lea.vmem %s0, 376
  %v2737 = vld [vmem:[%s2736] sm:$0xff]
  %v2739 = vunpack.c.l.b16 %v2737
  %v2740 = vunpack.c.h.b16 %v2737
  %v2741 = vpack.c.b16 %v2739, %v2739
  %v2742 = vpack.c.b16 %v2740, %v2740
  %2745 = vmatpush.bf16.msra.mxu0 %v137
  %2746 = vmatpush.bf16.msra.mxu0 %v136
  %2747 = vmatpush.bf16.msra.mxu0 %v135
  %2748 = vmatpush.bf16.msra.mxu0 %v134
  %2749 = vmatpush.bf16.msra.mxu0 %v133
  %2750 = vmatpush.bf16.msra.mxu0 %v132
  %2751 = vmatpush.bf16.msra.mxu0 %v131
  %2752 = vmatpush.bf16.msra.mxu0 %v130
  %2753 = vmatmul.bf16.gmra.mxu0 %v2741
  %v2754 = vpop.f32.mrf.mxu0
  %v2755 = vadd.f32 0.0, %v2754
  %v2756 = vpop.f32.mrf.mxu0
  %2757 = vdwg.mxu0
  %2758 = vmatpush.bf16.msra.mxu0 %v145
  %2759 = vmatpush.bf16.msra.mxu0 %v144
  %2760 = vmatpush.bf16.msra.mxu0 %v143
  %2761 = vmatpush.bf16.msra.mxu0 %v142
  %2762 = vmatpush.bf16.msra.mxu0 %v141
  %2763 = vmatpush.bf16.msra.mxu0 %v140
  %2764 = vmatpush.bf16.msra.mxu0 %v139
  %2765 = vmatpush.bf16.msra.mxu0 %v138
  %2766 = vmatmul.bf16.gmra.mxu0 %v2742
  %v2767 = vpop.f32.mrf.mxu0
  %v2768 = vadd.f32 %v2755, %v2767
  %v2769 = vpop.f32.mrf.mxu0
  %2770 = vdwg.mxu0
  %v2771 = vmax.f32 %v2735, %v2768
  %v2772 = vadd.f32 %v2771, %v298
  %v2773 = vmax.f32 %v2772, 0.0
  %v2774 = vpack.c.bf16 %v2773, %v2773
  %s2775 = scalar_lea.vmem %s3, 704
  %v2776 = vld [vmem:[%s2775] sm:$0xf]
  %v2777 = vld [vmem:[%s2775 + $0x4] sm:$0xf]
  %v2778 = vld [vmem:[%s2775 + $0x8] sm:$0xf]
  %v2779 = vld [vmem:[%s2775 + $0xc] sm:$0xf]
  %v2780 = vld [vmem:[%s2775 + $0x10] sm:$0xf]
  %v2781 = vld [vmem:[%s2775 + $0x14] sm:$0xf]
  %v2782 = vld [vmem:[%s2775 + $0x18] sm:$0xf]
  %v2783 = vld [vmem:[%s2775 + $0x1c] sm:$0xf]
  %v2784 = vld [vmem:[%s2775 + $0x20] sm:$0xf]
  %v2785 = vld [vmem:[%s2775 + $0x24] sm:$0xf]
  %v2786 = vld [vmem:[%s2775 + $0x28] sm:$0xf]
  %v2787 = vld [vmem:[%s2775 + $0x2c] sm:$0xf]
  %v2788 = vld [vmem:[%s2775 + $0x30] sm:$0xf]
  %v2789 = vld [vmem:[%s2775 + $0x34] sm:$0xf]
  %v2790 = vld [vmem:[%s2775 + $0x38] sm:$0xf]
  %v2791 = vld [vmem:[%s2775 + $0x3c] sm:$0xf]
  %v2808 = vunpack.c.l.b16 %v2776
  %v2809 = vunpack.c.l.b16 %v2777
  %v2810 = vunpack.c.l.b16 %v2778
  %v2811 = vunpack.c.l.b16 %v2779
  %v2812 = vunpack.c.l.b16 %v2780
  %v2813 = vunpack.c.l.b16 %v2781
  %v2814 = vunpack.c.l.b16 %v2782
  %v2815 = vunpack.c.l.b16 %v2783
  %v2816 = vunpack.c.l.b16 %v2784
  %v2817 = vunpack.c.l.b16 %v2785
  %v2818 = vunpack.c.l.b16 %v2786
  %v2819 = vunpack.c.l.b16 %v2787
  %v2820 = vunpack.c.l.b16 %v2788
  %v2821 = vunpack.c.l.b16 %v2789
  %v2822 = vunpack.c.l.b16 %v2790
  %v2823 = vunpack.c.l.b16 %v2791
  %v2824 = vpack.c.b16 %v2809, %v2808
  %v2825 = vpack.c.b16 %v2811, %v2810
  %v2826 = vpack.c.b16 %v2813, %v2812
  %v2827 = vpack.c.b16 %v2815, %v2814
  %v2828 = vpack.c.b16 %v2817, %v2816
  %v2829 = vpack.c.b16 %v2819, %v2818
  %v2830 = vpack.c.b16 %v2821, %v2820
  %v2831 = vpack.c.b16 %v2823, %v2822
  %2840 = vmatpush.bf16.msra.mxu0 %v2831
  %2841 = vmatpush.bf16.msra.mxu0 %v2830
  %2842 = vmatpush.bf16.msra.mxu0 %v2829
  %2843 = vmatpush.bf16.msra.mxu0 %v2828
  %2844 = vmatpush.bf16.msra.mxu0 %v2827
  %2845 = vmatpush.bf16.msra.mxu0 %v2826
  %2846 = vmatpush.bf16.msra.mxu0 %v2825
  %2847 = vmatpush.bf16.msra.mxu0 %v2824
  %2848 = vmatmul.bf16.gmra.mxu0 %v2774
  %v2849 = vpop.f32.mrf.mxu0
  %v2850 = vadd.f32 0.0, %v2849
  %v2851 = vpop.f32.mrf.mxu0
  %2852 = vdwg.mxu0
  %v2853 = vadd.f32 %v2628, %v2850
  %s2854 = scalar_lea.vmem %s0, 384
  %v2855 = vld [vmem:[%s2854] sm:$0xff]
  %v2857 = vunpack.c.l.b16 %v2855
  %v2858 = vunpack.c.h.b16 %v2855
  %v2859 = vpack.c.b16 %v2857, %v2857
  %v2860 = vpack.c.b16 %v2858, %v2858
  %2863 = vmatpush.bf16.msra.mxu0 %v137
  %2864 = vmatpush.bf16.msra.mxu0 %v136
  %2865 = vmatpush.bf16.msra.mxu0 %v135
  %2866 = vmatpush.bf16.msra.mxu0 %v134
  %2867 = vmatpush.bf16.msra.mxu0 %v133
  %2868 = vmatpush.bf16.msra.mxu0 %v132
  %2869 = vmatpush.bf16.msra.mxu0 %v131
  %2870 = vmatpush.bf16.msra.mxu0 %v130
  %2871 = vmatmul.bf16.gmra.mxu0 %v2859
  %v2872 = vpop.f32.mrf.mxu0
  %v2873 = vadd.f32 0.0, %v2872
  %v2874 = vpop.f32.mrf.mxu0
  %2875 = vdwg.mxu0
  %2876 = vmatpush.bf16.msra.mxu0 %v145
  %2877 = vmatpush.bf16.msra.mxu0 %v144
  %2878 = vmatpush.bf16.msra.mxu0 %v143
  %2879 = vmatpush.bf16.msra.mxu0 %v142
  %2880 = vmatpush.bf16.msra.mxu0 %v141
  %2881 = vmatpush.bf16.msra.mxu0 %v140
  %2882 = vmatpush.bf16.msra.mxu0 %v139
  %2883 = vmatpush.bf16.msra.mxu0 %v138
  %2884 = vmatmul.bf16.gmra.mxu0 %v2860
  %v2885 = vpop.f32.mrf.mxu0
  %v2886 = vadd.f32 %v2873, %v2885
  %v2887 = vpop.f32.mrf.mxu0
  %2888 = vdwg.mxu0
  %s2889 = scalar_lea.vmem %s0, 392
  %v2890 = vld [vmem:[%s2889] sm:$0xff]
  %v2892 = vunpack.c.l.b16 %v2890
  %v2893 = vunpack.c.h.b16 %v2890
  %v2894 = vpack.c.b16 %v2892, %v2892
  %v2895 = vpack.c.b16 %v2893, %v2893
  %2898 = vmatpush.bf16.msra.mxu0 %v137
  %2899 = vmatpush.bf16.msra.mxu0 %v136
  %2900 = vmatpush.bf16.msra.mxu0 %v135
  %2901 = vmatpush.bf16.msra.mxu0 %v134
  %2902 = vmatpush.bf16.msra.mxu0 %v133
  %2903 = vmatpush.bf16.msra.mxu0 %v132
  %2904 = vmatpush.bf16.msra.mxu0 %v131
  %2905 = vmatpush.bf16.msra.mxu0 %v130
  %2906 = vmatmul.bf16.gmra.mxu0 %v2894
  %v2907 = vpop.f32.mrf.mxu0
  %v2908 = vadd.f32 0.0, %v2907
  %v2909 = vpop.f32.mrf.mxu0
  %2910 = vdwg.mxu0
  %2911 = vmatpush.bf16.msra.mxu0 %v145
  %2912 = vmatpush.bf16.msra.mxu0 %v144
  %2913 = vmatpush.bf16.msra.mxu0 %v143
  %2914 = vmatpush.bf16.msra.mxu0 %v142
  %2915 = vmatpush.bf16.msra.mxu0 %v141
  %2916 = vmatpush.bf16.msra.mxu0 %v140
  %2917 = vmatpush.bf16.msra.mxu0 %v139
  %2918 = vmatpush.bf16.msra.mxu0 %v138
  %2919 = vmatmul.bf16.gmra.mxu0 %v2895
  %v2920 = vpop.f32.mrf.mxu0
  %v2921 = vadd.f32 %v2908, %v2920
  %v2922 = vpop.f32.mrf.mxu0
  %2923 = vdwg.mxu0
  %v2924 = vmax.f32 %v2886, %v2921
  %s2925 = scalar_lea.vmem %s0, 400
  %v2926 = vld [vmem:[%s2925] sm:$0xff]
  %v2928 = vunpack.c.l.b16 %v2926
  %v2929 = vunpack.c.h.b16 %v2926
  %v2930 = vpack.c.b16 %v2928, %v2928
  %v2931 = vpack.c.b16 %v2929, %v2929
  %2934 = vmatpush.bf16.msra.mxu0 %v137
  %2935 = vmatpush.bf16.msra.mxu0 %v136
  %2936 = vmatpush.bf16.msra.mxu0 %v135
  %2937 = vmatpush.bf16.msra.mxu0 %v134
  %2938 = vmatpush.bf16.msra.mxu0 %v133
  %2939 = vmatpush.bf16.msra.mxu0 %v132
  %2940 = vmatpush.bf16.msra.mxu0 %v131
  %2941 = vmatpush.bf16.msra.mxu0 %v130
  %2942 = vmatmul.bf16.gmra.mxu0 %v2930
  %v2943 = vpop.f32.mrf.mxu0
  %v2944 = vadd.f32 0.0, %v2943
  %v2945 = vpop.f32.mrf.mxu0
  %2946 = vdwg.mxu0
  %2947 = vmatpush.bf16.msra.mxu0 %v145
  %2948 = vmatpush.bf16.msra.mxu0 %v144
  %2949 = vmatpush.bf16.msra.mxu0 %v143
  %2950 = vmatpush.bf16.msra.mxu0 %v142
  %2951 = vmatpush.bf16.msra.mxu0 %v141
  %2952 = vmatpush.bf16.msra.mxu0 %v140
  %2953 = vmatpush.bf16.msra.mxu0 %v139
  %2954 = vmatpush.bf16.msra.mxu0 %v138
  %2955 = vmatmul.bf16.gmra.mxu0 %v2931
  %v2956 = vpop.f32.mrf.mxu0
  %v2957 = vadd.f32 %v2944, %v2956
  %v2958 = vpop.f32.mrf.mxu0
  %2959 = vdwg.mxu0
  %v2960 = vmax.f32 %v2924, %v2957
  %s2961 = scalar_lea.vmem %s0, 408
  %v2962 = vld [vmem:[%s2961] sm:$0xff]
  %v2964 = vunpack.c.l.b16 %v2962
  %v2965 = vunpack.c.h.b16 %v2962
  %v2966 = vpack.c.b16 %v2964, %v2964
  %v2967 = vpack.c.b16 %v2965, %v2965
  %2970 = vmatpush.bf16.msra.mxu0 %v137
  %2971 = vmatpush.bf16.msra.mxu0 %v136
  %2972 = vmatpush.bf16.msra.mxu0 %v135
  %2973 = vmatpush.bf16.msra.mxu0 %v134
  %2974 = vmatpush.bf16.msra.mxu0 %v133
  %2975 = vmatpush.bf16.msra.mxu0 %v132
  %2976 = vmatpush.bf16.msra.mxu0 %v131
  %2977 = vmatpush.bf16.msra.mxu0 %v130
  %2978 = vmatmul.bf16.gmra.mxu0 %v2966
  %v2979 = vpop.f32.mrf.mxu0
  %v2980 = vadd.f32 0.0, %v2979
  %v2981 = vpop.f32.mrf.mxu0
  %2982 = vdwg.mxu0
  %2983 = vmatpush.bf16.msra.mxu0 %v145
  %2984 = vmatpush.bf16.msra.mxu0 %v144
  %2985 = vmatpush.bf16.msra.mxu0 %v143
  %2986 = vmatpush.bf16.msra.mxu0 %v142
  %2987 = vmatpush.bf16.msra.mxu0 %v141
  %2988 = vmatpush.bf16.msra.mxu0 %v140
  %2989 = vmatpush.bf16.msra.mxu0 %v139
  %2990 = vmatpush.bf16.msra.mxu0 %v138
  %2991 = vmatmul.bf16.gmra.mxu0 %v2967
  %v2992 = vpop.f32.mrf.mxu0
  %v2993 = vadd.f32 %v2980, %v2992
  %v2994 = vpop.f32.mrf.mxu0
  %2995 = vdwg.mxu0
  %v2996 = vmax.f32 %v2960, %v2993
  %v2997 = vadd.f32 %v2996, %v298
  %v2998 = vmax.f32 %v2997, 0.0
  %v2999 = vpack.c.bf16 %v2998, %v2998
  %s3000 = scalar_lea.vmem %s3, 768
  %v3001 = vld [vmem:[%s3000] sm:$0xf]
  %v3002 = vld [vmem:[%s3000 + $0x4] sm:$0xf]
  %v3003 = vld [vmem:[%s3000 + $0x8] sm:$0xf]
  %v3004 = vld [vmem:[%s3000 + $0xc] sm:$0xf]
  %v3005 = vld [vmem:[%s3000 + $0x10] sm:$0xf]
  %v3006 = vld [vmem:[%s3000 + $0x14] sm:$0xf]
  %v3007 = vld [vmem:[%s3000 + $0x18] sm:$0xf]
  %v3008 = vld [vmem:[%s3000 + $0x1c] sm:$0xf]
  %v3009 = vld [vmem:[%s3000 + $0x20] sm:$0xf]
  %v3010 = vld [vmem:[%s3000 + $0x24] sm:$0xf]
  %v3011 = vld [vmem:[%s3000 + $0x28] sm:$0xf]
  %v3012 = vld [vmem:[%s3000 + $0x2c] sm:$0xf]
  %v3013 = vld [vmem:[%s3000 + $0x30] sm:$0xf]
  %v3014 = vld [vmem:[%s3000 + $0x34] sm:$0xf]
  %v3015 = vld [vmem:[%s3000 + $0x38] sm:$0xf]
  %v3016 = vld [vmem:[%s3000 + $0x3c] sm:$0xf]
  %v3033 = vunpack.c.l.b16 %v3001
  %v3034 = vunpack.c.l.b16 %v3002
  %v3035 = vunpack.c.l.b16 %v3003
  %v3036 = vunpack.c.l.b16 %v3004
  %v3037 = vunpack.c.l.b16 %v3005
  %v3038 = vunpack.c.l.b16 %v3006
  %v3039 = vunpack.c.l.b16 %v3007
  %v3040 = vunpack.c.l.b16 %v3008
  %v3041 = vunpack.c.l.b16 %v3009
  %v3042 = vunpack.c.l.b16 %v3010
  %v3043 = vunpack.c.l.b16 %v3011
  %v3044 = vunpack.c.l.b16 %v3012
  %v3045 = vunpack.c.l.b16 %v3013
  %v3046 = vunpack.c.l.b16 %v3014
  %v3047 = vunpack.c.l.b16 %v3015
  %v3048 = vunpack.c.l.b16 %v3016
  %v3049 = vpack.c.b16 %v3034, %v3033
  %v3050 = vpack.c.b16 %v3036, %v3035
  %v3051 = vpack.c.b16 %v3038, %v3037
  %v3052 = vpack.c.b16 %v3040, %v3039
  %v3053 = vpack.c.b16 %v3042, %v3041
  %v3054 = vpack.c.b16 %v3044, %v3043
  %v3055 = vpack.c.b16 %v3046, %v3045
  %v3056 = vpack.c.b16 %v3048, %v3047
  %3065 = vmatpush.bf16.msra.mxu0 %v3056
  %3066 = vmatpush.bf16.msra.mxu0 %v3055
  %3067 = vmatpush.bf16.msra.mxu0 %v3054
  %3068 = vmatpush.bf16.msra.mxu0 %v3053
  %3069 = vmatpush.bf16.msra.mxu0 %v3052
  %3070 = vmatpush.bf16.msra.mxu0 %v3051
  %3071 = vmatpush.bf16.msra.mxu0 %v3050
  %3072 = vmatpush.bf16.msra.mxu0 %v3049
  %3073 = vmatmul.bf16.gmra.mxu0 %v2999
  %v3074 = vpop.f32.mrf.mxu0
  %v3075 = vadd.f32 0.0, %v3074
  %v3076 = vpop.f32.mrf.mxu0
  %3077 = vdwg.mxu0
  %v3078 = vadd.f32 %v2853, %v3075
  %s3079 = scalar_lea.vmem %s0, 416
  %v3080 = vld [vmem:[%s3079] sm:$0xff]
  %v3082 = vunpack.c.l.b16 %v3080
  %v3083 = vunpack.c.h.b16 %v3080
  %v3084 = vpack.c.b16 %v3082, %v3082
  %v3085 = vpack.c.b16 %v3083, %v3083
  %3088 = vmatpush.bf16.msra.mxu0 %v137
  %3089 = vmatpush.bf16.msra.mxu0 %v136
  %3090 = vmatpush.bf16.msra.mxu0 %v135
  %3091 = vmatpush.bf16.msra.mxu0 %v134
  %3092 = vmatpush.bf16.msra.mxu0 %v133
  %3093 = vmatpush.bf16.msra.mxu0 %v132
  %3094 = vmatpush.bf16.msra.mxu0 %v131
  %3095 = vmatpush.bf16.msra.mxu0 %v130
  %3096 = vmatmul.bf16.gmra.mxu0 %v3084
  %v3097 = vpop.f32.mrf.mxu0
  %v3098 = vadd.f32 0.0, %v3097
  %v3099 = vpop.f32.mrf.mxu0
  %3100 = vdwg.mxu0
  %3101 = vmatpush.bf16.msra.mxu0 %v145
  %3102 = vmatpush.bf16.msra.mxu0 %v144
  %3103 = vmatpush.bf16.msra.mxu0 %v143
  %3104 = vmatpush.bf16.msra.mxu0 %v142
  %3105 = vmatpush.bf16.msra.mxu0 %v141
  %3106 = vmatpush.bf16.msra.mxu0 %v140
  %3107 = vmatpush.bf16.msra.mxu0 %v139
  %3108 = vmatpush.bf16.msra.mxu0 %v138
  %3109 = vmatmul.bf16.gmra.mxu0 %v3085
  %v3110 = vpop.f32.mrf.mxu0
  %v3111 = vadd.f32 %v3098, %v3110
  %v3112 = vpop.f32.mrf.mxu0
  %3113 = vdwg.mxu0
  %s3114 = scalar_lea.vmem %s0, 424
  %v3115 = vld [vmem:[%s3114] sm:$0xff]
  %v3117 = vunpack.c.l.b16 %v3115
  %v3118 = vunpack.c.h.b16 %v3115
  %v3119 = vpack.c.b16 %v3117, %v3117
  %v3120 = vpack.c.b16 %v3118, %v3118
  %3123 = vmatpush.bf16.msra.mxu0 %v137
  %3124 = vmatpush.bf16.msra.mxu0 %v136
  %3125 = vmatpush.bf16.msra.mxu0 %v135
  %3126 = vmatpush.bf16.msra.mxu0 %v134
  %3127 = vmatpush.bf16.msra.mxu0 %v133
  %3128 = vmatpush.bf16.msra.mxu0 %v132
  %3129 = vmatpush.bf16.msra.mxu0 %v131
  %3130 = vmatpush.bf16.msra.mxu0 %v130
  %3131 = vmatmul.bf16.gmra.mxu0 %v3119
  %v3132 = vpop.f32.mrf.mxu0
  %v3133 = vadd.f32 0.0, %v3132
  %v3134 = vpop.f32.mrf.mxu0
  %3135 = vdwg.mxu0
  %3136 = vmatpush.bf16.msra.mxu0 %v145
  %3137 = vmatpush.bf16.msra.mxu0 %v144
  %3138 = vmatpush.bf16.msra.mxu0 %v143
  %3139 = vmatpush.bf16.msra.mxu0 %v142
  %3140 = vmatpush.bf16.msra.mxu0 %v141
  %3141 = vmatpush.bf16.msra.mxu0 %v140
  %3142 = vmatpush.bf16.msra.mxu0 %v139
  %3143 = vmatpush.bf16.msra.mxu0 %v138
  %3144 = vmatmul.bf16.gmra.mxu0 %v3120
  %v3145 = vpop.f32.mrf.mxu0
  %v3146 = vadd.f32 %v3133, %v3145
  %v3147 = vpop.f32.mrf.mxu0
  %3148 = vdwg.mxu0
  %v3149 = vmax.f32 %v3111, %v3146
  %s3150 = scalar_lea.vmem %s0, 432
  %v3151 = vld [vmem:[%s3150] sm:$0xff]
  %v3153 = vunpack.c.l.b16 %v3151
  %v3154 = vunpack.c.h.b16 %v3151
  %v3155 = vpack.c.b16 %v3153, %v3153
  %v3156 = vpack.c.b16 %v3154, %v3154
  %3159 = vmatpush.bf16.msra.mxu0 %v137
  %3160 = vmatpush.bf16.msra.mxu0 %v136
  %3161 = vmatpush.bf16.msra.mxu0 %v135
  %3162 = vmatpush.bf16.msra.mxu0 %v134
  %3163 = vmatpush.bf16.msra.mxu0 %v133
  %3164 = vmatpush.bf16.msra.mxu0 %v132
  %3165 = vmatpush.bf16.msra.mxu0 %v131
  %3166 = vmatpush.bf16.msra.mxu0 %v130
  %3167 = vmatmul.bf16.gmra.mxu0 %v3155
  %v3168 = vpop.f32.mrf.mxu0
  %v3169 = vadd.f32 0.0, %v3168
  %v3170 = vpop.f32.mrf.mxu0
  %3171 = vdwg.mxu0
  %3172 = vmatpush.bf16.msra.mxu0 %v145
  %3173 = vmatpush.bf16.msra.mxu0 %v144
  %3174 = vmatpush.bf16.msra.mxu0 %v143
  %3175 = vmatpush.bf16.msra.mxu0 %v142
  %3176 = vmatpush.bf16.msra.mxu0 %v141
  %3177 = vmatpush.bf16.msra.mxu0 %v140
  %3178 = vmatpush.bf16.msra.mxu0 %v139
  %3179 = vmatpush.bf16.msra.mxu0 %v138
  %3180 = vmatmul.bf16.gmra.mxu0 %v3156
  %v3181 = vpop.f32.mrf.mxu0
  %v3182 = vadd.f32 %v3169, %v3181
  %v3183 = vpop.f32.mrf.mxu0
  %3184 = vdwg.mxu0
  %v3185 = vmax.f32 %v3149, %v3182
  %s3186 = scalar_lea.vmem %s0, 440
  %v3187 = vld [vmem:[%s3186] sm:$0xff]
  %v3189 = vunpack.c.l.b16 %v3187
  %v3190 = vunpack.c.h.b16 %v3187
  %v3191 = vpack.c.b16 %v3189, %v3189
  %v3192 = vpack.c.b16 %v3190, %v3190
  %3195 = vmatpush.bf16.msra.mxu0 %v137
  %3196 = vmatpush.bf16.msra.mxu0 %v136
  %3197 = vmatpush.bf16.msra.mxu0 %v135
  %3198 = vmatpush.bf16.msra.mxu0 %v134
  %3199 = vmatpush.bf16.msra.mxu0 %v133
  %3200 = vmatpush.bf16.msra.mxu0 %v132
  %3201 = vmatpush.bf16.msra.mxu0 %v131
  %3202 = vmatpush.bf16.msra.mxu0 %v130
  %3203 = vmatmul.bf16.gmra.mxu0 %v3191
  %v3204 = vpop.f32.mrf.mxu0
  %v3205 = vadd.f32 0.0, %v3204
  %v3206 = vpop.f32.mrf.mxu0
  %3207 = vdwg.mxu0
  %3208 = vmatpush.bf16.msra.mxu0 %v145
  %3209 = vmatpush.bf16.msra.mxu0 %v144
  %3210 = vmatpush.bf16.msra.mxu0 %v143
  %3211 = vmatpush.bf16.msra.mxu0 %v142
  %3212 = vmatpush.bf16.msra.mxu0 %v141
  %3213 = vmatpush.bf16.msra.mxu0 %v140
  %3214 = vmatpush.bf16.msra.mxu0 %v139
  %3215 = vmatpush.bf16.msra.mxu0 %v138
  %3216 = vmatmul.bf16.gmra.mxu0 %v3192
  %v3217 = vpop.f32.mrf.mxu0
  %v3218 = vadd.f32 %v3205, %v3217
  %v3219 = vpop.f32.mrf.mxu0
  %3220 = vdwg.mxu0
  %v3221 = vmax.f32 %v3185, %v3218
  %v3222 = vadd.f32 %v3221, %v298
  %v3223 = vmax.f32 %v3222, 0.0
  %v3224 = vpack.c.bf16 %v3223, %v3223
  %s3225 = scalar_lea.vmem %s3, 832
  %v3226 = vld [vmem:[%s3225] sm:$0xf]
  %v3227 = vld [vmem:[%s3225 + $0x4] sm:$0xf]
  %v3228 = vld [vmem:[%s3225 + $0x8] sm:$0xf]
  %v3229 = vld [vmem:[%s3225 + $0xc] sm:$0xf]
  %v3230 = vld [vmem:[%s3225 + $0x10] sm:$0xf]
  %v3231 = vld [vmem:[%s3225 + $0x14] sm:$0xf]
  %v3232 = vld [vmem:[%s3225 + $0x18] sm:$0xf]
  %v3233 = vld [vmem:[%s3225 + $0x1c] sm:$0xf]
  %v3234 = vld [vmem:[%s3225 + $0x20] sm:$0xf]
  %v3235 = vld [vmem:[%s3225 + $0x24] sm:$0xf]
  %v3236 = vld [vmem:[%s3225 + $0x28] sm:$0xf]
  %v3237 = vld [vmem:[%s3225 + $0x2c] sm:$0xf]
  %v3238 = vld [vmem:[%s3225 + $0x30] sm:$0xf]
  %v3239 = vld [vmem:[%s3225 + $0x34] sm:$0xf]
  %v3240 = vld [vmem:[%s3225 + $0x38] sm:$0xf]
  %v3241 = vld [vmem:[%s3225 + $0x3c] sm:$0xf]
  %v3258 = vunpack.c.l.b16 %v3226
  %v3259 = vunpack.c.l.b16 %v3227
  %v3260 = vunpack.c.l.b16 %v3228
  %v3261 = vunpack.c.l.b16 %v3229
  %v3262 = vunpack.c.l.b16 %v3230
  %v3263 = vunpack.c.l.b16 %v3231
  %v3264 = vunpack.c.l.b16 %v3232
  %v3265 = vunpack.c.l.b16 %v3233
  %v3266 = vunpack.c.l.b16 %v3234
  %v3267 = vunpack.c.l.b16 %v3235
  %v3268 = vunpack.c.l.b16 %v3236
  %v3269 = vunpack.c.l.b16 %v3237
  %v3270 = vunpack.c.l.b16 %v3238
  %v3271 = vunpack.c.l.b16 %v3239
  %v3272 = vunpack.c.l.b16 %v3240
  %v3273 = vunpack.c.l.b16 %v3241
  %v3274 = vpack.c.b16 %v3259, %v3258
  %v3275 = vpack.c.b16 %v3261, %v3260
  %v3276 = vpack.c.b16 %v3263, %v3262
  %v3277 = vpack.c.b16 %v3265, %v3264
  %v3278 = vpack.c.b16 %v3267, %v3266
  %v3279 = vpack.c.b16 %v3269, %v3268
  %v3280 = vpack.c.b16 %v3271, %v3270
  %v3281 = vpack.c.b16 %v3273, %v3272
  %3290 = vmatpush.bf16.msra.mxu0 %v3281
  %3291 = vmatpush.bf16.msra.mxu0 %v3280
  %3292 = vmatpush.bf16.msra.mxu0 %v3279
  %3293 = vmatpush.bf16.msra.mxu0 %v3278
  %3294 = vmatpush.bf16.msra.mxu0 %v3277
  %3295 = vmatpush.bf16.msra.mxu0 %v3276
  %3296 = vmatpush.bf16.msra.mxu0 %v3275
  %3297 = vmatpush.bf16.msra.mxu0 %v3274
  %3298 = vmatmul.bf16.gmra.mxu0 %v3224
  %v3299 = vpop.f32.mrf.mxu0
  %v3300 = vadd.f32 0.0, %v3299
  %v3301 = vpop.f32.mrf.mxu0
  %3302 = vdwg.mxu0
  %v3303 = vadd.f32 %v3078, %v3300
  %s3304 = scalar_lea.vmem %s0, 448
  %v3305 = vld [vmem:[%s3304] sm:$0xff]
  %v3307 = vunpack.c.l.b16 %v3305
  %v3308 = vunpack.c.h.b16 %v3305
  %v3309 = vpack.c.b16 %v3307, %v3307
  %v3310 = vpack.c.b16 %v3308, %v3308
  %3313 = vmatpush.bf16.msra.mxu0 %v137
  %3314 = vmatpush.bf16.msra.mxu0 %v136
  %3315 = vmatpush.bf16.msra.mxu0 %v135
  %3316 = vmatpush.bf16.msra.mxu0 %v134
  %3317 = vmatpush.bf16.msra.mxu0 %v133
  %3318 = vmatpush.bf16.msra.mxu0 %v132
  %3319 = vmatpush.bf16.msra.mxu0 %v131
  %3320 = vmatpush.bf16.msra.mxu0 %v130
  %3321 = vmatmul.bf16.gmra.mxu0 %v3309
  %v3322 = vpop.f32.mrf.mxu0
  %v3323 = vadd.f32 0.0, %v3322
  %v3324 = vpop.f32.mrf.mxu0
  %3325 = vdwg.mxu0
  %3326 = vmatpush.bf16.msra.mxu0 %v145
  %3327 = vmatpush.bf16.msra.mxu0 %v144
  %3328 = vmatpush.bf16.msra.mxu0 %v143
  %3329 = vmatpush.bf16.msra.mxu0 %v142
  %3330 = vmatpush.bf16.msra.mxu0 %v141
  %3331 = vmatpush.bf16.msra.mxu0 %v140
  %3332 = vmatpush.bf16.msra.mxu0 %v139
  %3333 = vmatpush.bf16.msra.mxu0 %v138
  %3334 = vmatmul.bf16.gmra.mxu0 %v3310
  %v3335 = vpop.f32.mrf.mxu0
  %v3336 = vadd.f32 %v3323, %v3335
  %v3337 = vpop.f32.mrf.mxu0
  %3338 = vdwg.mxu0
  %s3339 = scalar_lea.vmem %s0, 456
  %v3340 = vld [vmem:[%s3339] sm:$0xff]
  %v3342 = vunpack.c.l.b16 %v3340
  %v3343 = vunpack.c.h.b16 %v3340
  %v3344 = vpack.c.b16 %v3342, %v3342
  %v3345 = vpack.c.b16 %v3343, %v3343
  %3348 = vmatpush.bf16.msra.mxu0 %v137
  %3349 = vmatpush.bf16.msra.mxu0 %v136
  %3350 = vmatpush.bf16.msra.mxu0 %v135
  %3351 = vmatpush.bf16.msra.mxu0 %v134
  %3352 = vmatpush.bf16.msra.mxu0 %v133
  %3353 = vmatpush.bf16.msra.mxu0 %v132
  %3354 = vmatpush.bf16.msra.mxu0 %v131
  %3355 = vmatpush.bf16.msra.mxu0 %v130
  %3356 = vmatmul.bf16.gmra.mxu0 %v3344
  %v3357 = vpop.f32.mrf.mxu0
  %v3358 = vadd.f32 0.0, %v3357
  %v3359 = vpop.f32.mrf.mxu0
  %3360 = vdwg.mxu0
  %3361 = vmatpush.bf16.msra.mxu0 %v145
  %3362 = vmatpush.bf16.msra.mxu0 %v144
  %3363 = vmatpush.bf16.msra.mxu0 %v143
  %3364 = vmatpush.bf16.msra.mxu0 %v142
  %3365 = vmatpush.bf16.msra.mxu0 %v141
  %3366 = vmatpush.bf16.msra.mxu0 %v140
  %3367 = vmatpush.bf16.msra.mxu0 %v139
  %3368 = vmatpush.bf16.msra.mxu0 %v138
  %3369 = vmatmul.bf16.gmra.mxu0 %v3345
  %v3370 = vpop.f32.mrf.mxu0
  %v3371 = vadd.f32 %v3358, %v3370
  %v3372 = vpop.f32.mrf.mxu0
  %3373 = vdwg.mxu0
  %v3374 = vmax.f32 %v3336, %v3371
  %s3375 = scalar_lea.vmem %s0, 464
  %v3376 = vld [vmem:[%s3375] sm:$0xff]
  %v3378 = vunpack.c.l.b16 %v3376
  %v3379 = vunpack.c.h.b16 %v3376
  %v3380 = vpack.c.b16 %v3378, %v3378
  %v3381 = vpack.c.b16 %v3379, %v3379
  %3384 = vmatpush.bf16.msra.mxu0 %v137
  %3385 = vmatpush.bf16.msra.mxu0 %v136
  %3386 = vmatpush.bf16.msra.mxu0 %v135
  %3387 = vmatpush.bf16.msra.mxu0 %v134
  %3388 = vmatpush.bf16.msra.mxu0 %v133
  %3389 = vmatpush.bf16.msra.mxu0 %v132
  %3390 = vmatpush.bf16.msra.mxu0 %v131
  %3391 = vmatpush.bf16.msra.mxu0 %v130
  %3392 = vmatmul.bf16.gmra.mxu0 %v3380
  %v3393 = vpop.f32.mrf.mxu0
  %v3394 = vadd.f32 0.0, %v3393
  %v3395 = vpop.f32.mrf.mxu0
  %3396 = vdwg.mxu0
  %3397 = vmatpush.bf16.msra.mxu0 %v145
  %3398 = vmatpush.bf16.msra.mxu0 %v144
  %3399 = vmatpush.bf16.msra.mxu0 %v143
  %3400 = vmatpush.bf16.msra.mxu0 %v142
  %3401 = vmatpush.bf16.msra.mxu0 %v141
  %3402 = vmatpush.bf16.msra.mxu0 %v140
  %3403 = vmatpush.bf16.msra.mxu0 %v139
  %3404 = vmatpush.bf16.msra.mxu0 %v138
  %3405 = vmatmul.bf16.gmra.mxu0 %v3381
  %v3406 = vpop.f32.mrf.mxu0
  %v3407 = vadd.f32 %v3394, %v3406
  %v3408 = vpop.f32.mrf.mxu0
  %3409 = vdwg.mxu0
  %v3410 = vmax.f32 %v3374, %v3407
  %s3411 = scalar_lea.vmem %s0, 472
  %v3412 = vld [vmem:[%s3411] sm:$0xff]
  %v3414 = vunpack.c.l.b16 %v3412
  %v3415 = vunpack.c.h.b16 %v3412
  %v3416 = vpack.c.b16 %v3414, %v3414
  %v3417 = vpack.c.b16 %v3415, %v3415
  %3420 = vmatpush.bf16.msra.mxu0 %v137
  %3421 = vmatpush.bf16.msra.mxu0 %v136
  %3422 = vmatpush.bf16.msra.mxu0 %v135
  %3423 = vmatpush.bf16.msra.mxu0 %v134
  %3424 = vmatpush.bf16.msra.mxu0 %v133
  %3425 = vmatpush.bf16.msra.mxu0 %v132
  %3426 = vmatpush.bf16.msra.mxu0 %v131
  %3427 = vmatpush.bf16.msra.mxu0 %v130
  %3428 = vmatmul.bf16.gmra.mxu0 %v3416
  %v3429 = vpop.f32.mrf.mxu0
  %v3430 = vadd.f32 0.0, %v3429
  %v3431 = vpop.f32.mrf.mxu0
  %3432 = vdwg.mxu0
  %3433 = vmatpush.bf16.msra.mxu0 %v145
  %3434 = vmatpush.bf16.msra.mxu0 %v144
  %3435 = vmatpush.bf16.msra.mxu0 %v143
  %3436 = vmatpush.bf16.msra.mxu0 %v142
  %3437 = vmatpush.bf16.msra.mxu0 %v141
  %3438 = vmatpush.bf16.msra.mxu0 %v140
  %3439 = vmatpush.bf16.msra.mxu0 %v139
  %3440 = vmatpush.bf16.msra.mxu0 %v138
  %3441 = vmatmul.bf16.gmra.mxu0 %v3417
  %v3442 = vpop.f32.mrf.mxu0
  %v3443 = vadd.f32 %v3430, %v3442
  %v3444 = vpop.f32.mrf.mxu0
  %3445 = vdwg.mxu0
  %v3446 = vmax.f32 %v3410, %v3443
  %v3447 = vadd.f32 %v3446, %v298
  %v3448 = vmax.f32 %v3447, 0.0
  %v3449 = vpack.c.bf16 %v3448, %v3448
  %s3450 = scalar_lea.vmem %s3, 896
  %v3451 = vld [vmem:[%s3450] sm:$0xf]
  %v3452 = vld [vmem:[%s3450 + $0x4] sm:$0xf]
  %v3453 = vld [vmem:[%s3450 + $0x8] sm:$0xf]
  %v3454 = vld [vmem:[%s3450 + $0xc] sm:$0xf]
  %v3455 = vld [vmem:[%s3450 + $0x10] sm:$0xf]
  %v3456 = vld [vmem:[%s3450 + $0x14] sm:$0xf]
  %v3457 = vld [vmem:[%s3450 + $0x18] sm:$0xf]
  %v3458 = vld [vmem:[%s3450 + $0x1c] sm:$0xf]
  %v3459 = vld [vmem:[%s3450 + $0x20] sm:$0xf]
  %v3460 = vld [vmem:[%s3450 + $0x24] sm:$0xf]
  %v3461 = vld [vmem:[%s3450 + $0x28] sm:$0xf]
  %v3462 = vld [vmem:[%s3450 + $0x2c] sm:$0xf]
  %v3463 = vld [vmem:[%s3450 + $0x30] sm:$0xf]
  %v3464 = vld [vmem:[%s3450 + $0x34] sm:$0xf]
  %v3465 = vld [vmem:[%s3450 + $0x38] sm:$0xf]
  %v3466 = vld [vmem:[%s3450 + $0x3c] sm:$0xf]
  %v3483 = vunpack.c.l.b16 %v3451
  %v3484 = vunpack.c.l.b16 %v3452
  %v3485 = vunpack.c.l.b16 %v3453
  %v3486 = vunpack.c.l.b16 %v3454
  %v3487 = vunpack.c.l.b16 %v3455
  %v3488 = vunpack.c.l.b16 %v3456
  %v3489 = vunpack.c.l.b16 %v3457
  %v3490 = vunpack.c.l.b16 %v3458
  %v3491 = vunpack.c.l.b16 %v3459
  %v3492 = vunpack.c.l.b16 %v3460
  %v3493 = vunpack.c.l.b16 %v3461
  %v3494 = vunpack.c.l.b16 %v3462
  %v3495 = vunpack.c.l.b16 %v3463
  %v3496 = vunpack.c.l.b16 %v3464
  %v3497 = vunpack.c.l.b16 %v3465
  %v3498 = vunpack.c.l.b16 %v3466
  %v3499 = vpack.c.b16 %v3484, %v3483
  %v3500 = vpack.c.b16 %v3486, %v3485
  %v3501 = vpack.c.b16 %v3488, %v3487
  %v3502 = vpack.c.b16 %v3490, %v3489
  %v3503 = vpack.c.b16 %v3492, %v3491
  %v3504 = vpack.c.b16 %v3494, %v3493
  %v3505 = vpack.c.b16 %v3496, %v3495
  %v3506 = vpack.c.b16 %v3498, %v3497
  %3515 = vmatpush.bf16.msra.mxu0 %v3506
  %3516 = vmatpush.bf16.msra.mxu0 %v3505
  %3517 = vmatpush.bf16.msra.mxu0 %v3504
  %3518 = vmatpush.bf16.msra.mxu0 %v3503
  %3519 = vmatpush.bf16.msra.mxu0 %v3502
  %3520 = vmatpush.bf16.msra.mxu0 %v3501
  %3521 = vmatpush.bf16.msra.mxu0 %v3500
  %3522 = vmatpush.bf16.msra.mxu0 %v3499
  %3523 = vmatmul.bf16.gmra.mxu0 %v3449
  %v3524 = vpop.f32.mrf.mxu0
  %v3525 = vadd.f32 0.0, %v3524
  %v3526 = vpop.f32.mrf.mxu0
  %3527 = vdwg.mxu0
  %v3528 = vadd.f32 %v3303, %v3525
  %s3529 = scalar_lea.vmem %s0, 480
  %v3530 = vld [vmem:[%s3529] sm:$0xff]
  %v3532 = vunpack.c.l.b16 %v3530
  %v3533 = vunpack.c.h.b16 %v3530
  %v3534 = vpack.c.b16 %v3532, %v3532
  %v3535 = vpack.c.b16 %v3533, %v3533
  %3538 = vmatpush.bf16.msra.mxu0 %v137
  %3539 = vmatpush.bf16.msra.mxu0 %v136
  %3540 = vmatpush.bf16.msra.mxu0 %v135
  %3541 = vmatpush.bf16.msra.mxu0 %v134
  %3542 = vmatpush.bf16.msra.mxu0 %v133
  %3543 = vmatpush.bf16.msra.mxu0 %v132
  %3544 = vmatpush.bf16.msra.mxu0 %v131
  %3545 = vmatpush.bf16.msra.mxu0 %v130
  %3546 = vmatmul.bf16.gmra.mxu0 %v3534
  %v3547 = vpop.f32.mrf.mxu0
  %v3548 = vadd.f32 0.0, %v3547
  %v3549 = vpop.f32.mrf.mxu0
  %3550 = vdwg.mxu0
  %3551 = vmatpush.bf16.msra.mxu0 %v145
  %3552 = vmatpush.bf16.msra.mxu0 %v144
  %3553 = vmatpush.bf16.msra.mxu0 %v143
  %3554 = vmatpush.bf16.msra.mxu0 %v142
  %3555 = vmatpush.bf16.msra.mxu0 %v141
  %3556 = vmatpush.bf16.msra.mxu0 %v140
  %3557 = vmatpush.bf16.msra.mxu0 %v139
  %3558 = vmatpush.bf16.msra.mxu0 %v138
  %3559 = vmatmul.bf16.gmra.mxu0 %v3535
  %v3560 = vpop.f32.mrf.mxu0
  %v3561 = vadd.f32 %v3548, %v3560
  %v3562 = vpop.f32.mrf.mxu0
  %3563 = vdwg.mxu0
  %s3564 = scalar_lea.vmem %s0, 488
  %v3565 = vld [vmem:[%s3564] sm:$0xff]
  %v3567 = vunpack.c.l.b16 %v3565
  %v3568 = vunpack.c.h.b16 %v3565
  %v3569 = vpack.c.b16 %v3567, %v3567
  %v3570 = vpack.c.b16 %v3568, %v3568
  %3573 = vmatpush.bf16.msra.mxu0 %v137
  %3574 = vmatpush.bf16.msra.mxu0 %v136
  %3575 = vmatpush.bf16.msra.mxu0 %v135
  %3576 = vmatpush.bf16.msra.mxu0 %v134
  %3577 = vmatpush.bf16.msra.mxu0 %v133
  %3578 = vmatpush.bf16.msra.mxu0 %v132
  %3579 = vmatpush.bf16.msra.mxu0 %v131
  %3580 = vmatpush.bf16.msra.mxu0 %v130
  %3581 = vmatmul.bf16.gmra.mxu0 %v3569
  %v3582 = vpop.f32.mrf.mxu0
  %v3583 = vadd.f32 0.0, %v3582
  %v3584 = vpop.f32.mrf.mxu0
  %3585 = vdwg.mxu0
  %3586 = vmatpush.bf16.msra.mxu0 %v145
  %3587 = vmatpush.bf16.msra.mxu0 %v144
  %3588 = vmatpush.bf16.msra.mxu0 %v143
  %3589 = vmatpush.bf16.msra.mxu0 %v142
  %3590 = vmatpush.bf16.msra.mxu0 %v141
  %3591 = vmatpush.bf16.msra.mxu0 %v140
  %3592 = vmatpush.bf16.msra.mxu0 %v139
  %3593 = vmatpush.bf16.msra.mxu0 %v138
  %3594 = vmatmul.bf16.gmra.mxu0 %v3570
  %v3595 = vpop.f32.mrf.mxu0
  %v3596 = vadd.f32 %v3583, %v3595
  %v3597 = vpop.f32.mrf.mxu0
  %3598 = vdwg.mxu0
  %v3599 = vmax.f32 %v3561, %v3596
  %s3600 = scalar_lea.vmem %s0, 496
  %v3601 = vld [vmem:[%s3600] sm:$0xff]
  %v3603 = vunpack.c.l.b16 %v3601
  %v3604 = vunpack.c.h.b16 %v3601
  %v3605 = vpack.c.b16 %v3603, %v3603
  %v3606 = vpack.c.b16 %v3604, %v3604
  %3609 = vmatpush.bf16.msra.mxu0 %v137
  %3610 = vmatpush.bf16.msra.mxu0 %v136
  %3611 = vmatpush.bf16.msra.mxu0 %v135
  %3612 = vmatpush.bf16.msra.mxu0 %v134
  %3613 = vmatpush.bf16.msra.mxu0 %v133
  %3614 = vmatpush.bf16.msra.mxu0 %v132
  %3615 = vmatpush.bf16.msra.mxu0 %v131
  %3616 = vmatpush.bf16.msra.mxu0 %v130
  %3617 = vmatmul.bf16.gmra.mxu0 %v3605
  %v3618 = vpop.f32.mrf.mxu0
  %v3619 = vadd.f32 0.0, %v3618
  %v3620 = vpop.f32.mrf.mxu0
  %3621 = vdwg.mxu0
  %3622 = vmatpush.bf16.msra.mxu0 %v145
  %3623 = vmatpush.bf16.msra.mxu0 %v144
  %3624 = vmatpush.bf16.msra.mxu0 %v143
  %3625 = vmatpush.bf16.msra.mxu0 %v142
  %3626 = vmatpush.bf16.msra.mxu0 %v141
  %3627 = vmatpush.bf16.msra.mxu0 %v140
  %3628 = vmatpush.bf16.msra.mxu0 %v139
  %3629 = vmatpush.bf16.msra.mxu0 %v138
  %3630 = vmatmul.bf16.gmra.mxu0 %v3606
  %v3631 = vpop.f32.mrf.mxu0
  %v3632 = vadd.f32 %v3619, %v3631
  %v3633 = vpop.f32.mrf.mxu0
  %3634 = vdwg.mxu0
  %v3635 = vmax.f32 %v3599, %v3632
  %s3636 = scalar_lea.vmem %s0, 504
  %v3637 = vld [vmem:[%s3636] sm:$0xff]
  %v3639 = vunpack.c.l.b16 %v3637
  %v3640 = vunpack.c.h.b16 %v3637
  %v3641 = vpack.c.b16 %v3639, %v3639
  %v3642 = vpack.c.b16 %v3640, %v3640
  %3645 = vmatpush.bf16.msra.mxu0 %v137
  %3646 = vmatpush.bf16.msra.mxu0 %v136
  %3647 = vmatpush.bf16.msra.mxu0 %v135
  %3648 = vmatpush.bf16.msra.mxu0 %v134
  %3649 = vmatpush.bf16.msra.mxu0 %v133
  %3650 = vmatpush.bf16.msra.mxu0 %v132
  %3651 = vmatpush.bf16.msra.mxu0 %v131
  %3652 = vmatpush.bf16.msra.mxu0 %v130
  %3653 = vmatmul.bf16.gmra.mxu0 %v3641
  %v3654 = vpop.f32.mrf.mxu0
  %v3655 = vadd.f32 0.0, %v3654
  %v3656 = vpop.f32.mrf.mxu0
  %3657 = vdwg.mxu0
  %3658 = vmatpush.bf16.msra.mxu0 %v145
  %3659 = vmatpush.bf16.msra.mxu0 %v144
  %3660 = vmatpush.bf16.msra.mxu0 %v143
  %3661 = vmatpush.bf16.msra.mxu0 %v142
  %3662 = vmatpush.bf16.msra.mxu0 %v141
  %3663 = vmatpush.bf16.msra.mxu0 %v140
  %3664 = vmatpush.bf16.msra.mxu0 %v139
  %3665 = vmatpush.bf16.msra.mxu0 %v138
  %3666 = vmatmul.bf16.gmra.mxu0 %v3642
  %v3667 = vpop.f32.mrf.mxu0
  %v3668 = vadd.f32 %v3655, %v3667
  %v3669 = vpop.f32.mrf.mxu0
  %3670 = vdwg.mxu0
  %v3671 = vmax.f32 %v3635, %v3668
  %v3672 = vadd.f32 %v3671, %v298
  %v3673 = vmax.f32 %v3672, 0.0
  %v3674 = vpack.c.bf16 %v3673, %v3673
  %s3675 = scalar_lea.vmem %s3, 960
  %v3676 = vld [vmem:[%s3675] sm:$0xf]
  %v3677 = vld [vmem:[%s3675 + $0x4] sm:$0xf]
  %v3678 = vld [vmem:[%s3675 + $0x8] sm:$0xf]
  %v3679 = vld [vmem:[%s3675 + $0xc] sm:$0xf]
  %v3680 = vld [vmem:[%s3675 + $0x10] sm:$0xf]
  %v3681 = vld [vmem:[%s3675 + $0x14] sm:$0xf]
  %v3682 = vld [vmem:[%s3675 + $0x18] sm:$0xf]
  %v3683 = vld [vmem:[%s3675 + $0x1c] sm:$0xf]
  %v3684 = vld [vmem:[%s3675 + $0x20] sm:$0xf]
  %v3685 = vld [vmem:[%s3675 + $0x24] sm:$0xf]
  %v3686 = vld [vmem:[%s3675 + $0x28] sm:$0xf]
  %v3687 = vld [vmem:[%s3675 + $0x2c] sm:$0xf]
  %v3688 = vld [vmem:[%s3675 + $0x30] sm:$0xf]
  %v3689 = vld [vmem:[%s3675 + $0x34] sm:$0xf]
  %v3690 = vld [vmem:[%s3675 + $0x38] sm:$0xf]
  %v3691 = vld [vmem:[%s3675 + $0x3c] sm:$0xf]
  %v3708 = vunpack.c.l.b16 %v3676
  %v3709 = vunpack.c.l.b16 %v3677
  %v3710 = vunpack.c.l.b16 %v3678
  %v3711 = vunpack.c.l.b16 %v3679
  %v3712 = vunpack.c.l.b16 %v3680
  %v3713 = vunpack.c.l.b16 %v3681
  %v3714 = vunpack.c.l.b16 %v3682
  %v3715 = vunpack.c.l.b16 %v3683
  %v3716 = vunpack.c.l.b16 %v3684
  %v3717 = vunpack.c.l.b16 %v3685
  %v3718 = vunpack.c.l.b16 %v3686
  %v3719 = vunpack.c.l.b16 %v3687
  %v3720 = vunpack.c.l.b16 %v3688
  %v3721 = vunpack.c.l.b16 %v3689
  %v3722 = vunpack.c.l.b16 %v3690
  %v3723 = vunpack.c.l.b16 %v3691
  %v3724 = vpack.c.b16 %v3709, %v3708
  %v3725 = vpack.c.b16 %v3711, %v3710
  %v3726 = vpack.c.b16 %v3713, %v3712
  %v3727 = vpack.c.b16 %v3715, %v3714
  %v3728 = vpack.c.b16 %v3717, %v3716
  %v3729 = vpack.c.b16 %v3719, %v3718
  %v3730 = vpack.c.b16 %v3721, %v3720
  %v3731 = vpack.c.b16 %v3723, %v3722
  %3740 = vmatpush.bf16.msra.mxu0 %v3731
  %3741 = vmatpush.bf16.msra.mxu0 %v3730
  %3742 = vmatpush.bf16.msra.mxu0 %v3729
  %3743 = vmatpush.bf16.msra.mxu0 %v3728
  %3744 = vmatpush.bf16.msra.mxu0 %v3727
  %3745 = vmatpush.bf16.msra.mxu0 %v3726
  %3746 = vmatpush.bf16.msra.mxu0 %v3725
  %3747 = vmatpush.bf16.msra.mxu0 %v3724
  %3748 = vmatmul.bf16.gmra.mxu0 %v3674
  %v3749 = vpop.f32.mrf.mxu0
  %v3750 = vadd.f32 0.0, %v3749
  %v3751 = vpop.f32.mrf.mxu0
  %3752 = vdwg.mxu0
  %v3753 = vadd.f32 %v3528, %v3750
  %v3754 = vld [vmem:[%s4] sm:$0x1]
  %v3756 = vperm.slane %v3754, 0
  %v3758 = vadd.f32 %v3753, %v3756
  %v3759 = vmax.f32 %v3758, 0.0
  %v3760 = vpack.c.bf16 %v3759, %v3759
  %v3761 = vld [vmem:[%s5] sm:$0xf]
  %v3762 = vld [vmem:[%s5 + $0x4] sm:$0xf]
  %v3763 = vld [vmem:[%s5 + $0x8] sm:$0xf]
  %v3764 = vld [vmem:[%s5 + $0xc] sm:$0xf]
  %v3765 = vld [vmem:[%s5 + $0x10] sm:$0xf]
  %v3766 = vld [vmem:[%s5 + $0x14] sm:$0xf]
  %v3767 = vld [vmem:[%s5 + $0x18] sm:$0xf]
  %v3768 = vld [vmem:[%s5 + $0x1c] sm:$0xf]
  %v3769 = vld [vmem:[%s5 + $0x20] sm:$0xf]
  %v3770 = vld [vmem:[%s5 + $0x24] sm:$0xf]
  %v3771 = vld [vmem:[%s5 + $0x28] sm:$0xf]
  %v3772 = vld [vmem:[%s5 + $0x2c] sm:$0xf]
  %v3773 = vld [vmem:[%s5 + $0x30] sm:$0xf]
  %v3774 = vld [vmem:[%s5 + $0x34] sm:$0xf]
  %v3775 = vld [vmem:[%s5 + $0x38] sm:$0xf]
  %v3776 = vld [vmem:[%s5 + $0x3c] sm:$0xf]
  %v3777 = vld [vmem:[%s6] sm:$0x1]
  %v3779 = vperm.slane %v3777, 0
  %v3797 = vunpack.c.l.b16 %v3761
  %v3798 = vunpack.c.l.b16 %v3762
  %v3799 = vunpack.c.l.b16 %v3763
  %v3800 = vunpack.c.l.b16 %v3764
  %v3801 = vunpack.c.l.b16 %v3765
  %v3802 = vunpack.c.l.b16 %v3766
  %v3803 = vunpack.c.l.b16 %v3767
  %v3804 = vunpack.c.l.b16 %v3768
  %v3805 = vunpack.c.l.b16 %v3769
  %v3806 = vunpack.c.l.b16 %v3770
  %v3807 = vunpack.c.l.b16 %v3771
  %v3808 = vunpack.c.l.b16 %v3772
  %v3809 = vunpack.c.l.b16 %v3773
  %v3810 = vunpack.c.l.b16 %v3774
  %v3811 = vunpack.c.l.b16 %v3775
  %v3812 = vunpack.c.l.b16 %v3776
  %v3813 = vpack.c.b16 %v3798, %v3797
  %v3814 = vpack.c.b16 %v3800, %v3799
  %v3815 = vpack.c.b16 %v3802, %v3801
  %v3816 = vpack.c.b16 %v3804, %v3803
  %v3817 = vpack.c.b16 %v3806, %v3805
  %v3818 = vpack.c.b16 %v3808, %v3807
  %v3819 = vpack.c.b16 %v3810, %v3809
  %v3820 = vpack.c.b16 %v3812, %v3811
  %3829 = vmatpush.bf16.msra.mxu0 %v3820
  %3830 = vmatpush.bf16.msra.mxu0 %v3819
  %3831 = vmatpush.bf16.msra.mxu0 %v3818
  %3832 = vmatpush.bf16.msra.mxu0 %v3817
  %3833 = vmatpush.bf16.msra.mxu0 %v3816
  %3834 = vmatpush.bf16.msra.mxu0 %v3815
  %3835 = vmatpush.bf16.msra.mxu0 %v3814
  %3836 = vmatpush.bf16.msra.mxu0 %v3813
  %3837 = vmatmul.bf16.gmra.mxu0 %v3760
  %v3838 = vpop.f32.mrf.mxu0
  %v3839 = vadd.f32 %v3779, %v3838
  %v3840 = vpop.f32.mrf.mxu0
  %3841 = vdwg.mxu0
  %v3842 = vlaneseq
  %v3843 = vand.u32 %v3842, 127
  %vm3844 = vcmp.lt.s32.totalorder %v3843, 10
  %v3845 = vsel %vm3844, %v3839, -inf
  %3846 = vmax.xlane.f32.xlu0 %v3845
  %v3847 = vpop.xlane.xlu0 %3846
  %v3848 = vsub.f32 %v3845, %v3847
  %v3849 = vmul.f32 %v3848, 1.442695
  %v3850 = vpow.pop %v3849
  %3851 = vadd.xlane.f32.xlu0 %v3850
  %v3852 = vpop.xlane.xlu0 %3851
  %v3853 = vlog2.pop %v3852
  %v3854 = vmul.f32 %v3853, 0.6931472
  %v3855 = vadd.f32 %v3847, %v3854
  %v3856 = vsub.f32 %v3845, %v3855
  %3857 = vst [vmem:[%s7] sm:$0xff] %v3856
  // Predicated region
  $region30: #{my_network_forward.3} parent=0 // pred_check
    _
  $region31: #{my_network_forward.3} parent=0 // pred_check_branch
    %3859 = sbr.rel (0) target = $region33
  $region32: #{my_network_forward.3} parent=0 // pred_region
    _
  $region33: #{my_network_forward.3} parent=0 // pred_fallthru
    _
  // Predicated region
  $region34: #{my_network_forward.3} parent=0 // pred_check
    _
  $region35: #{my_network_forward.3} parent=0 // pred_check_branch
    %3861 = sbr.rel (0) target = $region37
  $region36: #{my_network_forward.3} parent=0 // pred_region
    _
  $region37: #{my_network_forward.3} parent=0 // pred_fallthru
    _

</llo_original>
